<compile_context>
chip_gen: v6e
topology: v6e:2x2x1
jax: 0.10.0
libtpu: 0.0.40
codegen_flags: <defaults>
</compile_context>

<pallas_src>
import functools
import math

import jax
import jax.numpy as jnp
from jax.experimental import pallas as pl
from jax.experimental.pallas import tpu as pltpu


def _round_up(x, m):
    return ((x + m - 1) // m) * m


# ---------------------------------------------------------------------------
# In-kernel helpers (plain arrays already loaded from VMEM refs)
# ---------------------------------------------------------------------------

def _layer_norm(x, g, b, eps):
    """LayerNorm over the last axis (PyTorch nn.LayerNorm semantics). g, b: (1, D), f32."""
    mu = jnp.mean(x, axis=-1, keepdims=True)
    xc = x - mu
    var = jnp.mean(xc * xc, axis=-1, keepdims=True)
    return xc * jax.lax.rsqrt(var + eps) * g + b


# ---------------------------------------------------------------------------
# Fused decoder-layer kernel (one grid step == one batch element)
# ---------------------------------------------------------------------------

def _decoder_layer_kernel(*refs, nhead, head_dim, eps, normalize_before,
                          has_qpos, has_pos, l_valid, s_valid):
    refs = list(refs)
    out_ref = refs.pop()                               # outputs follow inputs; no scratch
    tgt_ref = refs.pop(0)                              # (Lp, E)  f32
    qpos_ref = refs.pop(0) if has_qpos else None       # (Lp, E)  f32
    memk_ref = refs.pop(0)                             # (Sp, E)  bf16  (memory + pos)
    memv_ref = refs.pop(0) if has_pos else memk_ref    # (Sp, E)  bf16  (memory)
    (w_qk_sa, b_qk_sa, w_v_sa, b_v_sa, w_o_sa, b_o_sa, ln1_g, ln1_b,
     w_q_ca, b_q_ca, w_k_ca, b_k_ca, w_v_ca, b_v_ca, w_o_ca, b_o_ca,
     ln2_g, ln2_b, w_ff1, b_ff1, w_ff2, b_ff2, ln3_g, ln3_b) = refs

    E = nhead * head_dim
    scale = 1.0 / math.sqrt(head_dim)

    tgt = tgt_ref[...].astype(jnp.float32)
    qpos = qpos_ref[...].astype(jnp.float32) if has_qpos else None
    memk = memk_ref[...]          # bf16: only ever feeds bf16 MXU dots
    memv = memv_ref[...]

    add_qpos = (lambda x: x + qpos) if has_qpos else (lambda x: x)

    def proj(x, w_ref, b_ref):
        # bf16 operands, f32 accumulation; bias stays f32.
        y = jnp.dot(x.astype(jnp.bfloat16), w_ref[...],
                    preferred_element_type=jnp.float32)
        return y + b_ref[...]

    def mha(q, k, v, w_o_ref, b_o_ref, kv_valid):
        """Head-batched attention + full-K output projection.

        q: (Lq, E) f32, k/v: (Sk, E) f32.  concat over heads is reassembled to (Lq, E)
        so out_proj is a single (Lq,E)@(E,E) matmul.
        """
        Lq, Sk = q.shape[0], k.shape[0]
        qh = jnp.transpose(q.reshape(Lq, nhead, head_dim), (1, 0, 2)).astype(jnp.bfloat16)
        kh = jnp.transpose(k.reshape(Sk, nhead, head_dim), (1, 0, 2)).astype(jnp.bfloat16)
        vh = jnp.transpose(v.reshape(Sk, nhead, head_dim), (1, 0, 2)).astype(jnp.bfloat16)
        # (H, Lq, Sk) batched over heads, f32 accumulation
        s = jnp.einsum('hqd,hkd->hqk', qh, kh,
                       preferred_element_type=jnp.float32) * scale
        if kv_valid < Sk:  # static: mask padded key columns
            col = jax.lax.broadcasted_iota(jnp.int32, s.shape, 2)
            s = jnp.where(col < kv_valid, s, jnp.float32(-1e30))
        s = s - jnp.max(s, axis=-1, keepdims=True)
        p = jnp.exp(s)
        p = p * pl.reciprocal(jnp.sum(p, axis=-1, keepdims=True), approx=True)
        o = jnp.einsum('hqk,hkd->hqd', p.astype(jnp.bfloat16), vh,
                       preferred_element_type=jnp.float32)           # (H, Lq, hd)
        o = jnp.transpose(o, (1, 0, 2)).reshape(Lq, E)                # concat heads -> (Lq, E)
        return jnp.dot(o.astype(jnp.bfloat16), w_o_ref[...],
                       preferred_element_type=jnp.float32) + b_o_ref[...]

    def self_attn(x_qk, x_v):
        qk = proj(x_qk, w_qk_sa, b_qk_sa)          # fused Q|K: one (Lp, E)@(E, 2E) matmul
        vp = proj(x_v, w_v_sa, b_v_sa)
        return mha(qk[:, :E], qk[:, E:], vp, w_o_sa, b_o_sa, l_valid)

    def cross_attn(x_q):
        qp = proj(x_q, w_q_ca, b_q_ca)
        kp = proj(memk, w_k_ca, b_k_ca)            # memory + pos, precomputed in wrapper
        vp = proj(memv, w_v_ca, b_v_ca)            # memory
        return mha(qp, kp, vp, w_o_ca, b_o_ca, s_valid)

    def ffn(x):
        h = jnp.maximum(proj(x, w_ff1, b_ff1), 0.0)    # ReLU
        return proj(h, w_ff2, b_ff2)

    def ln(x, g_ref, b_ref):
        return _layer_norm(x, g_ref[...], b_ref[...], eps)

    if not normalize_before:       # forward_post (module default)
        t = tgt
        t = ln(t + self_attn(add_qpos(t), t), ln1_g, ln1_b)
        t = ln(t + cross_attn(add_qpos(t)), ln2_g, ln2_b)
        t = ln(t + ffn(t), ln3_g, ln3_b)
    else:                          # forward_pre
        t = tgt
        n1 = ln(t, ln1_g, ln1_b)
        t = t + self_attn(add_qpos(n1), n1)
        n2 = ln(t, ln2_g, ln2_b)
        t = t + cross_attn(add_qpos(n2))
        n3 = ln(t, ln3_g, ln3_b)
        t = t + ffn(n3)

    out_ref[...] = t.astype(out_ref.dtype)


# ---------------------------------------------------------------------------
# Host-side wrapper
# ---------------------------------------------------------------------------

_PARAM_ORDER = (
    "w_qk_sa", "b_qk_sa", "w_v_sa", "b_v_sa", "w_o_sa", "b_o_sa", "ln1_g", "ln1_b",
    "w_q_ca", "b_q_ca", "w_k_ca", "b_k_ca", "w_v_ca", "b_v_ca", "w_o_ca", "b_o_ca",
    "ln2_g", "ln2_b",
    "w_ff1", "b_ff1", "w_ff2", "b_ff2", "ln3_g", "ln3_b",
)


def transformer_decoder_layer_forward(packed, tgt, memory, pos=None, query_pos=None,
                                      *, nhead, normalize_before=False, eps=1e-5):
    """Equivalent of TransformerDecoderLayer.forward (dropout = eval / identity).

    tgt: (L, N, E) seq-first, memory: (S, N, E), pos: (S, N, E) or None,
    query_pos: (L, N, E) or None.  Returns (L, N, E).
    """
    # TODO(synk): attn_mask / key_padding_mask paths not implemented (inputs must be None).
    L, N, E = tgt.shape
    S = memory.shape[0]
    assert E % nhead == 0
    head_dim = E // nhead
    has_qpos = query_pos is not None
    has_pos = pos is not None

    Lp = _round_up(L, 8)
    Sp = _round_up(S, 8)

    # One seq-first -> batch-first permute at the layer boundary (not per-op).
    tgt_b = jnp.transpose(tgt, (1, 0, 2))
    mem_b = jnp.transpose(memory, (1, 0, 2))
    qpos_b = jnp.transpose(query_pos, (1, 0, 2)) if has_qpos else None
    # Cross-attn K input (memory + pos) precomputed ONCE here; bf16 because it only feeds
    # bf16 MXU dots inside the kernel (halves its DMA bytes).
    if has_pos:
        memk_b = (mem_b + jnp.transpose(pos, (1, 0, 2))).astype(jnp.bfloat16)
        memv_b = mem_b.astype(jnp.bfloat16)
    else:
        memk_b = mem_b.astype(jnp.bfloat16)
        memv_b = None

    # Pad L / S up to sublane multiples; padded key columns are masked in-kernel and padded
    # query rows are sliced off below.
    if Lp != L:
        tgt_b = jnp.pad(tgt_b, ((0, 0), (0, Lp - L), (0, 0)))
        if has_qpos:
            qpos_b = jnp.pad(qpos_b, ((0, 0), (0, Lp - L), (0, 0)))
    if Sp != S:
        memk_b = jnp.pad(memk_b, ((0, 0), (0, Sp - S), (0, 0)))
        if has_pos:
            memv_b = jnp.pad(memv_b, ((0, 0), (0, Sp - S), (0, 0)))

    acts = [tgt_b] + ([qpos_b] if has_qpos else []) + [memk_b] + ([memv_b] if has_pos else [])
    weights = [packed[k] for k in _PARAM_ORDER]

    def _act_spec(rows):
        return pl.BlockSpec((pl.Squeezed(), rows, E), lambda n: (n, 0, 0))

    act_specs = ([_act_spec(Lp)] + ([_act_spec(Lp)] if has_qpos else [])
                 + [_act_spec(Sp)] + ([_act_spec(Sp)] if has_pos else []))
    # Weights/biases/LN params: constant index_map -> single-buffer them (no refetch anyway).
    weight_specs = [pl.BlockSpec(w.shape, lambda n: (0, 0), pipeline_mode=pl.Buffered(1))
                    for w in weights]

    # Scoped-VMEM budget: weights (single-buffered) + double-buffered activation blocks +
    # attention-score / FFN intermediates, with headroom.
    itemb = lambda a: jnp.dtype(a.dtype).itemsize
    weight_bytes = sum(int(w.size) * itemb(w) for w in weights)
    act_block_bytes = sum(int(a.size) // N * itemb(a) for a in acts) + Lp * E * itemb(tgt)
    dff = packed["w_ff1"].shape[1]
    inter_bytes = 4 * (2 * nhead * Lp * max(Lp, Sp) + Lp * (dff + 4 * E))
    vmem_limit = int(min(96 * 2 ** 20,
                         max(24 * 2 ** 20,
                             2 * (weight_bytes + 2 * act_block_bytes + inter_bytes))))

    out_b = pl.pallas_call(
        functools.partial(_decoder_layer_kernel, nhead=nhead, head_dim=head_dim, eps=eps,
                          normalize_before=normalize_before, has_qpos=has_qpos,
                          has_pos=has_pos, l_valid=L, s_valid=S),
        out_shape=jax.ShapeDtypeStruct((N, Lp, E), tgt.dtype),
        grid=(N,),
        in_specs=act_specs + weight_specs,
        out_specs=pl.BlockSpec((pl.Squeezed(), Lp, E), lambda n: (n, 0, 0)),
        compiler_params=pltpu.CompilerParams(
            dimension_semantics=("parallel",),
            vmem_limit_bytes=vmem_limit),
    )(*acts, *weights)

    return jnp.transpose(out_b[:, :L, :], (1, 0, 2))   # back to seq-first (L, N, E)


# ---------------------------------------------------------------------------
# Deterministic parameter construction (PyTorch layout) and one-time repacking
# ---------------------------------------------------------------------------

def _xavier(key, shape):
    fan_out, fan_in = shape
    a = math.sqrt(6.0 / (fan_in + fan_out))
    return jax.random.uniform(key, shape, jnp.float32, -a, a)


def init_decoder_layer_params(key, d_model, dim_feedforward):
    """Parameters in PyTorch layout (as TransformerDecoderLayer stores them)."""
    ks = jax.random.split(key, 6)

    def mha(kw, ko):
        return {
            "in_proj_weight": _xavier(kw, (3 * d_model, d_model)),
            "in_proj_bias": jnp.zeros((3 * d_model,), jnp.float32),
            "out_proj_weight": _xavier(ko, (d_model, d_model)),
            "out_proj_bias": jnp.zeros((d_model,), jnp.float32),
        }

    def ln():
        return (jnp.ones((d_model,), jnp.float32), jnp.zeros((d_model,), jnp.float32))

    return {
        "self_attn": mha(ks[0], ks[1]),
        "multihead_attn": mha(ks[2], ks[3]),
        "linear1_weight": _xavier(ks[4], (dim_feedforward, d_model)),
        "linear1_bias": jnp.zeros((dim_feedforward,), jnp.float32),
        "linear2_weight": _xavier(ks[5], (d_model, dim_feedforward)),
        "linear2_bias": jnp.zeros((d_model,), jnp.float32),
        "norm1": ln(), "norm2": ln(), "norm3": ln(),
    }


def pack_decoder_layer_params(p, d_model):
    """One-time repack: weights transposed to (K, N) and stored bf16 for the MXU; self-attn
    Q|K fused into one (E, 2E) matrix; biases and LayerNorm params kept f32 as (1, N)."""
    E = d_model
    sa, ca = p["self_attn"], p["multihead_attn"]
    Wsa, bsa = sa["in_proj_weight"], sa["in_proj_bias"]
    Wca, bca = ca["in_proj_weight"], ca["in_proj_bias"]
    row = lambda v: v.reshape(1, -1).astype(jnp.float32)
    w = lambda m: m.astype(jnp.bfloat16)
    return {
        # self-attention: fused [Wq.T | Wk.T] so q and k come from one matmul
        "w_qk_sa": w(jnp.concatenate([Wsa[:E].T, Wsa[E:2 * E].T], axis=1)),   # (E, 2E)
        "b_qk_sa": row(jnp.concatenate([bsa[:E], bsa[E:2 * E]])),
        "w_v_sa": w(Wsa[2 * E:].T), "b_v_sa": row(bsa[2 * E:]),
        "w_o_sa": w(sa["out_proj_weight"].T), "b_o_sa": row(sa["out_proj_bias"]),
        "ln1_g": row(p["norm1"][0]), "ln1_b": row(p["norm1"][1]),
        # cross-attention
        "w_q_ca": w(Wca[:E].T), "b_q_ca": row(bca[:E]),
        "w_k_ca": w(Wca[E:2 * E].T), "b_k_ca": row(bca[E:2 * E]),
        "w_v_ca": w(Wca[2 * E:].T), "b_v_ca": row(bca[2 * E:]),
        "w_o_ca": w(ca["out_proj_weight"].T), "b_o_ca": row(ca["out_proj_bias"]),
        "ln2_g": row(p["norm2"][0]), "ln2_b": row(p["norm2"][1]),
        # FFN
        "w_ff1": w(p["linear1_weight"].T), "b_ff1": row(p["linear1_bias"]),
        "w_ff2": w(p["linear2_weight"].T), "b_ff2": row(p["linear2_bias"]),
        "ln3_g": row(p["norm3"][0]), "ln3_b": row(p["norm3"][1]),
    }


# ---------------------------------------------------------------------------
# Main
# ---------------------------------------------------------------------------

if __name__ == "__main__":
    d_model, nhead, dim_feedforward = 32, 4, 64
    # num_queries / hw deliberately not multiples of 8 to exercise the pad + key-mask path.
    num_queries, bs, hw = 6, 2, 20   # tgt seq len, batch, memory seq len (h*w)

    root = jax.random.PRNGKey(0)
    kp, kt, km, kpos, kq = jax.random.split(root, 5)

    torch_layout_params = init_decoder_layer_params(kp, d_model, dim_feedforward)
    packed = pack_decoder_layer_params(torch_layout_params, d_model)   # one-time repack

    tgt = jax.random.normal(kt, (num_queries, bs, d_model), jnp.float32)
    memory = jax.random.normal(km, (hw, bs, d_model), jnp.float32)
    pos = jax.random.normal(kpos, (hw, bs, d_model), jnp.float32)
    query_pos = jax.random.normal(kq, (num_queries, bs, d_model), jnp.float32)

    fwd = jax.jit(functools.partial(transformer_decoder_layer_forward, nhead=nhead))
    out = fwd(packed, tgt, memory, pos, query_pos)
    jax.block_until_ready(out)

    assert out.shape == (num_queries, bs, d_model)
    assert bool(jnp.all(jnp.isfinite(out)))
    print("KERNEL_OK")
</pallas_src>

<mosaic_0001>
module attributes {stable_mosaic.version = 11 : i64} {
  func.func @_decoder_layer_kernel(%arg0: i32, %arg1: memref<1x8x32xf32, #tpu.memory_space<vmem>>, %arg2: memref<1x8x32xf32, #tpu.memory_space<vmem>>, %arg3: memref<1x24x32xbf16, #tpu.memory_space<vmem>>, %arg4: memref<1x24x32xbf16, #tpu.memory_space<vmem>>, %arg5: memref<32x64xbf16, #tpu.memory_space<vmem>>, %arg6: memref<1x64xf32, #tpu.memory_space<vmem>>, %arg7: memref<32x32xbf16, #tpu.memory_space<vmem>>, %arg8: memref<1x32xf32, #tpu.memory_space<vmem>>, %arg9: memref<32x32xbf16, #tpu.memory_space<vmem>>, %arg10: memref<1x32xf32, #tpu.memory_space<vmem>>, %arg11: memref<1x32xf32, #tpu.memory_space<vmem>>, %arg12: memref<1x32xf32, #tpu.memory_space<vmem>>, %arg13: memref<32x32xbf16, #tpu.memory_space<vmem>>, %arg14: memref<1x32xf32, #tpu.memory_space<vmem>>, %arg15: memref<32x32xbf16, #tpu.memory_space<vmem>>, %arg16: memref<1x32xf32, #tpu.memory_space<vmem>>, %arg17: memref<32x32xbf16, #tpu.memory_space<vmem>>, %arg18: memref<1x32xf32, #tpu.memory_space<vmem>>, %arg19: memref<32x32xbf16, #tpu.memory_space<vmem>>, %arg20: memref<1x32xf32, #tpu.memory_space<vmem>>, %arg21: memref<1x32xf32, #tpu.memory_space<vmem>>, %arg22: memref<1x32xf32, #tpu.memory_space<vmem>>, %arg23: memref<32x64xbf16, #tpu.memory_space<vmem>>, %arg24: memref<1x64xf32, #tpu.memory_space<vmem>>, %arg25: memref<64x32xbf16, #tpu.memory_space<vmem>>, %arg26: memref<1x32xf32, #tpu.memory_space<vmem>>, %arg27: memref<1x32xf32, #tpu.memory_space<vmem>>, %arg28: memref<1x32xf32, #tpu.memory_space<vmem>>, %arg29: memref<1x8x32xf32, #tpu.memory_space<vmem>>) attributes {dimension_semantics = [#tpu.dimension_semantics<parallel>], iteration_bounds = array<i64: 2>, scalar_prefetch = 0 : i64, scratch_operands = 0 : i64, tpu.core_type = #tpu.core_type<tc>, window_params = [{transform_indices = @transform_0, window_bounds = array<i64: 1, 8, 32>}, {transform_indices = @transform_1, window_bounds = array<i64: 1, 8, 32>}, {transform_indices = @transform_2, window_bounds = array<i64: 1, 24, 32>}, {transform_indices = @transform_3, window_bounds = array<i64: 1, 24, 32>}, {pipeline_mode = #tpu.pipeline_mode<synchronous>, transform_indices = @transform_4, window_bounds = array<i64: 32, 64>}, {pipeline_mode = #tpu.pipeline_mode<synchronous>, transform_indices = @transform_5, window_bounds = array<i64: 1, 64>}, {pipeline_mode = #tpu.pipeline_mode<synchronous>, transform_indices = @transform_6, window_bounds = array<i64: 32, 32>}, {pipeline_mode = #tpu.pipeline_mode<synchronous>, transform_indices = @transform_7, window_bounds = array<i64: 1, 32>}, {pipeline_mode = #tpu.pipeline_mode<synchronous>, transform_indices = @transform_8, window_bounds = array<i64: 32, 32>}, {pipeline_mode = #tpu.pipeline_mode<synchronous>, transform_indices = @transform_9, window_bounds = array<i64: 1, 32>}, {pipeline_mode = #tpu.pipeline_mode<synchronous>, transform_indices = @transform_10, window_bounds = array<i64: 1, 32>}, {pipeline_mode = #tpu.pipeline_mode<synchronous>, transform_indices = @transform_11, window_bounds = array<i64: 1, 32>}, {pipeline_mode = #tpu.pipeline_mode<synchronous>, transform_indices = @transform_12, window_bounds = array<i64: 32, 32>}, {pipeline_mode = #tpu.pipeline_mode<synchronous>, transform_indices = @transform_13, window_bounds = array<i64: 1, 32>}, {pipeline_mode = #tpu.pipeline_mode<synchronous>, transform_indices = @transform_14, window_bounds = array<i64: 32, 32>}, {pipeline_mode = #tpu.pipeline_mode<synchronous>, transform_indices = @transform_15, window_bounds = array<i64: 1, 32>}, {pipeline_mode = #tpu.pipeline_mode<synchronous>, transform_indices = @transform_16, window_bounds = array<i64: 32, 32>}, {pipeline_mode = #tpu.pipeline_mode<synchronous>, transform_indices = @transform_17, window_bounds = array<i64: 1, 32>}, {pipeline_mode = #tpu.pipeline_mode<synchronous>, transform_indices = @transform_18, window_bounds = array<i64: 32, 32>}, {pipeline_mode = #tpu.pipeline_mode<synchronous>, transform_indices = @transform_19, window_bounds = array<i64: 1, 32>}, {pipeline_mode = #tpu.pipeline_mode<synchronous>, transform_indices = @transform_20, window_bounds = array<i64: 1, 32>}, {pipeline_mode = #tpu.pipeline_mode<synchronous>, transform_indices = @transform_21, window_bounds = array<i64: 1, 32>}, {pipeline_mode = #tpu.pipeline_mode<synchronous>, transform_indices = @transform_22, window_bounds = array<i64: 32, 64>}, {pipeline_mode = #tpu.pipeline_mode<synchronous>, transform_indices = @transform_23, window_bounds = array<i64: 1, 64>}, {pipeline_mode = #tpu.pipeline_mode<synchronous>, transform_indices = @transform_24, window_bounds = array<i64: 64, 32>}, {pipeline_mode = #tpu.pipeline_mode<synchronous>, transform_indices = @transform_25, window_bounds = array<i64: 1, 32>}, {pipeline_mode = #tpu.pipeline_mode<synchronous>, transform_indices = @transform_26, window_bounds = array<i64: 1, 32>}, {pipeline_mode = #tpu.pipeline_mode<synchronous>, transform_indices = @transform_27, window_bounds = array<i64: 1, 32>}, {transform_indices = @transform_28, window_bounds = array<i64: 1, 8, 32>}]} {
    %c0 = arith.constant 0 : index
    %c0_0 = arith.constant 0 : index
    %c0_1 = arith.constant 0 : index
    %0 = vector.load %arg1[%c0, %c0_0, %c0_1] : memref<1x8x32xf32, #tpu.memory_space<vmem>>, vector<1x8x32xf32>
    %1 = vector.shape_cast %0 : vector<1x8x32xf32> to vector<8x32xf32>
    %c0_2 = arith.constant 0 : index
    %c0_3 = arith.constant 0 : index
    %c0_4 = arith.constant 0 : index
    %2 = vector.load %arg2[%c0_2, %c0_3, %c0_4] : memref<1x8x32xf32, #tpu.memory_space<vmem>>, vector<1x8x32xf32>
    %3 = vector.shape_cast %2 : vector<1x8x32xf32> to vector<8x32xf32>
    %c0_5 = arith.constant 0 : index
    %c0_6 = arith.constant 0 : index
    %c0_7 = arith.constant 0 : index
    %4 = vector.load %arg3[%c0_5, %c0_6, %c0_7] : memref<1x24x32xbf16, #tpu.memory_space<vmem>>, vector<1x24x32xbf16>
    %5 = vector.shape_cast %4 : vector<1x24x32xbf16> to vector<24x32xbf16>
    %c0_8 = arith.constant 0 : index
    %c0_9 = arith.constant 0 : index
    %c0_10 = arith.constant 0 : index
    %6 = vector.load %arg4[%c0_8, %c0_9, %c0_10] : memref<1x24x32xbf16, #tpu.memory_space<vmem>>, vector<1x24x32xbf16>
    %7 = vector.shape_cast %6 : vector<1x24x32xbf16> to vector<24x32xbf16>
    %8 = arith.addf %1, %3 : vector<8x32xf32>
    %9 = arith.truncf %8 : vector<8x32xf32> to vector<8x32xbf16>
    %c0_11 = arith.constant 0 : index
    %c0_12 = arith.constant 0 : index
    %10 = vector.load %arg5[%c0_11, %c0_12] : memref<32x64xbf16, #tpu.memory_space<vmem>>, vector<32x64xbf16>
    %cst = arith.constant dense<0.000000e+00> : vector<8x64xf32>
    %11 = tpu.matmul %9, %10, %cst {dimension_numbers = #tpu.dot_dimension_numbers<[1], [0], [0], [1], [0, 0, 1, 1], [], []>} : vector<8x32xbf16>, vector<32x64xbf16>, vector<8x64xf32> -> vector<8x64xf32>
    %c0_13 = arith.constant 0 : index
    %c0_14 = arith.constant 0 : index
    %12 = vector.load %arg6[%c0_13, %c0_14] : memref<1x64xf32, #tpu.memory_space<vmem>>, vector<1x64xf32>
    %13 = vector.broadcast %12 : vector<1x64xf32> to vector<8x64xf32>
    %14 = arith.addf %11, %13 : vector<8x64xf32>
    %15 = arith.truncf %1 : vector<8x32xf32> to vector<8x32xbf16>
    %c0_15 = arith.constant 0 : index
    %c0_16 = arith.constant 0 : index
    %16 = vector.load %arg7[%c0_15, %c0_16] : memref<32x32xbf16, #tpu.memory_space<vmem>>, vector<32x32xbf16>
    %cst_17 = arith.constant dense<0.000000e+00> : vector<8x32xf32>
    %17 = tpu.matmul %15, %16, %cst_17 {dimension_numbers = #tpu.dot_dimension_numbers<[1], [0], [0], [1], [0, 0, 1, 1], [], []>} : vector<8x32xbf16>, vector<32x32xbf16>, vector<8x32xf32> -> vector<8x32xf32>
    %c0_18 = arith.constant 0 : index
    %c0_19 = arith.constant 0 : index
    %18 = vector.load %arg8[%c0_18, %c0_19] : memref<1x32xf32, #tpu.memory_space<vmem>>, vector<1x32xf32>
    %19 = vector.broadcast %18 : vector<1x32xf32> to vector<8x32xf32>
    %20 = arith.addf %17, %19 : vector<8x32xf32>
    %21 = vector.extract_strided_slice %14 {offsets = [0, 0], sizes = [8, 32], strides = [1, 1]} : vector<8x64xf32> to vector<8x32xf32>
    %22 = vector.extract_strided_slice %14 {offsets = [0, 32], sizes = [8, 32], strides = [1, 1]} : vector<8x64xf32> to vector<8x32xf32>
    %23 = vector.shape_cast %21 : vector<8x32xf32> to vector<8x4x8xf32>
    %24 = tpu.transpose %23, [1, 0, 2] : vector<8x4x8xf32> -> vector<4x8x8xf32>
    %25 = arith.truncf %24 : vector<4x8x8xf32> to vector<4x8x8xbf16>
    %26 = vector.shape_cast %22 : vector<8x32xf32> to vector<8x4x8xf32>
    %27 = tpu.transpose %26, [1, 0, 2] : vector<8x4x8xf32> -> vector<4x8x8xf32>
    %28 = arith.truncf %27 : vector<4x8x8xf32> to vector<4x8x8xbf16>
    %29 = vector.shape_cast %20 : vector<8x32xf32> to vector<8x4x8xf32>
    %30 = tpu.transpose %29, [1, 0, 2] : vector<8x4x8xf32> -> vector<4x8x8xf32>
    %31 = arith.truncf %30 : vector<4x8x8xf32> to vector<4x8x8xbf16>
    "tpu.trace_start"() <{level = 10 : i32, message = "hqd,hkd->hqk"}> : () -> ()
    %cst_20 = arith.constant dense<0.000000e+00> : vector<4x8x8xf32>
    %32 = tpu.matmul %25, %28, %cst_20 {dimension_numbers = #tpu.dot_dimension_numbers<[2], [2], [1], [1], [0, 0, 0, 1, 1, 1], [0], [0]>} : vector<4x8x8xbf16>, vector<4x8x8xbf16>, vector<4x8x8xf32> -> vector<4x8x8xf32>
    "tpu.trace_stop"() : () -> ()
    %cst_21 = arith.constant 0.353553385 : f32
    %33 = vector.broadcast %cst_21 : f32 to vector<4x8x8xf32>
    %34 = arith.mulf %32, %33 : vector<4x8x8xf32>
    %35 = tpu.iota {dimensions = array<i32: 2>} : vector<4x8x8xi32>
    %c6_i32 = arith.constant 6 : i32
    %36 = vector.broadcast %c6_i32 : i32 to vector<4x8x8xi32>
    %37 = arith.cmpi slt, %35, %36 : vector<4x8x8xi32>
    %cst_22 = arith.constant -1.000000e+30 : f32
    %38 = vector.broadcast %cst_22 : f32 to vector<4x8x8xf32>
    %39 = arith.select %37, %34, %38 : vector<4x8x8xi1>, vector<4x8x8xf32>
    %cst_23 = arith.constant dense<0xFF800000> : vector<4x8xf32>
    %40 = vector.multi_reduction <maximumf>, %39, %cst_23 [2] : vector<4x8x8xf32> to vector<4x8xf32>
    %41 = vector.shape_cast %40 : vector<4x8xf32> to vector<4x8x1xf32>
    %42 = vector.broadcast %41 : vector<4x8x1xf32> to vector<4x8x8xf32>
    %43 = arith.subf %39, %42 : vector<4x8x8xf32>
    %44 = math.exp %43 : vector<4x8x8xf32>
    %cst_24 = arith.constant dense<0.000000e+00> : vector<4x8xf32>
    %45 = vector.multi_reduction <add>, %44, %cst_24 [2] : vector<4x8x8xf32> to vector<4x8xf32>
    %46 = vector.shape_cast %45 : vector<4x8xf32> to vector<4x8x1xf32>
    %47 = tpu.reciprocal %46 {approx = true} : vector<4x8x1xf32> -> vector<4x8x1xf32>
    %48 = vector.broadcast %47 : vector<4x8x1xf32> to vector<4x8x8xf32>
    %49 = arith.mulf %44, %48 : vector<4x8x8xf32>
    %50 = arith.truncf %49 : vector<4x8x8xf32> to vector<4x8x8xbf16>
    "tpu.trace_start"() <{level = 10 : i32, message = "hqk,hkd->hqd"}> : () -> ()
    %cst_25 = arith.constant dense<0.000000e+00> : vector<4x8x8xf32>
    %51 = tpu.matmul %50, %31, %cst_25 {dimension_numbers = #tpu.dot_dimension_numbers<[2], [1], [1], [2], [0, 0, 0, 1, 1, 2], [0], [0]>} : vector<4x8x8xbf16>, vector<4x8x8xbf16>, vector<4x8x8xf32> -> vector<4x8x8xf32>
    "tpu.trace_stop"() : () -> ()
    %52 = tpu.transpose %51, [1, 0, 2] : vector<4x8x8xf32> -> vector<8x4x8xf32>
    %53 = vector.shape_cast %52 : vector<8x4x8xf32> to vector<8x32xf32>
    %54 = arith.truncf %53 : vector<8x32xf32> to vector<8x32xbf16>
    %c0_26 = arith.constant 0 : index
    %c0_27 = arith.constant 0 : index
    %55 = vector.load %arg9[%c0_26, %c0_27] : memref<32x32xbf16, #tpu.memory_space<vmem>>, vector<32x32xbf16>
    %cst_28 = arith.constant dense<0.000000e+00> : vector<8x32xf32>
    %56 = tpu.matmul %54, %55, %cst_28 {dimension_numbers = #tpu.dot_dimension_numbers<[1], [0], [0], [1], [0, 0, 1, 1], [], []>} : vector<8x32xbf16>, vector<32x32xbf16>, vector<8x32xf32> -> vector<8x32xf32>
    %c0_29 = arith.constant 0 : index
    %c0_30 = arith.constant 0 : index
    %57 = vector.load %arg10[%c0_29, %c0_30] : memref<1x32xf32, #tpu.memory_space<vmem>>, vector<1x32xf32>
    %58 = vector.broadcast %57 : vector<1x32xf32> to vector<8x32xf32>
    %59 = arith.addf %56, %58 : vector<8x32xf32>
    %60 = arith.addf %1, %59 : vector<8x32xf32>
    %c0_31 = arith.constant 0 : index
    %c0_32 = arith.constant 0 : index
    %61 = vector.load %arg11[%c0_31, %c0_32] : memref<1x32xf32, #tpu.memory_space<vmem>>, vector<1x32xf32>
    %c0_33 = arith.constant 0 : index
    %c0_34 = arith.constant 0 : index
    %62 = vector.load %arg12[%c0_33, %c0_34] : memref<1x32xf32, #tpu.memory_space<vmem>>, vector<1x32xf32>
    %cst_35 = arith.constant dense<0.000000e+00> : vector<8xf32>
    %63 = vector.multi_reduction <add>, %60, %cst_35 [1] : vector<8x32xf32> to vector<8xf32>
    %64 = vector.shape_cast %63 : vector<8xf32> to vector<8x1xf32>
    %cst_36 = arith.constant 3.200000e+01 : f32
    %65 = vector.broadcast %cst_36 : f32 to vector<8x1xf32>
    %66 = arith.divf %64, %65 : vector<8x1xf32>
    %67 = vector.broadcast %66 : vector<8x1xf32> to vector<8x32xf32>
    %68 = arith.subf %60, %67 : vector<8x32xf32>
    %69 = arith.mulf %68, %68 : vector<8x32xf32>
    %cst_37 = arith.constant dense<0.000000e+00> : vector<8xf32>
    %70 = vector.multi_reduction <add>, %69, %cst_37 [1] : vector<8x32xf32> to vector<8xf32>
    %71 = vector.shape_cast %70 : vector<8xf32> to vector<8x1xf32>
    %cst_38 = arith.constant 3.200000e+01 : f32
    %72 = vector.broadcast %cst_38 : f32 to vector<8x1xf32>
    %73 = arith.divf %71, %72 : vector<8x1xf32>
    %cst_39 = arith.constant 9.99999974E-6 : f32
    %74 = vector.broadcast %cst_39 : f32 to vector<8x1xf32>
    %75 = arith.addf %73, %74 : vector<8x1xf32>
    %76 = math.rsqrt %75 : vector<8x1xf32>
    %77 = vector.broadcast %76 : vector<8x1xf32> to vector<8x32xf32>
    %78 = arith.mulf %68, %77 : vector<8x32xf32>
    %79 = vector.broadcast %61 : vector<1x32xf32> to vector<8x32xf32>
    %80 = arith.mulf %78, %79 : vector<8x32xf32>
    %81 = vector.broadcast %62 : vector<1x32xf32> to vector<8x32xf32>
    %82 = arith.addf %80, %81 : vector<8x32xf32>
    %83 = arith.addf %82, %3 : vector<8x32xf32>
    %84 = arith.truncf %83 : vector<8x32xf32> to vector<8x32xbf16>
    %c0_40 = arith.constant 0 : index
    %c0_41 = arith.constant 0 : index
    %85 = vector.load %arg13[%c0_40, %c0_41] : memref<32x32xbf16, #tpu.memory_space<vmem>>, vector<32x32xbf16>
    %cst_42 = arith.constant dense<0.000000e+00> : vector<8x32xf32>
    %86 = tpu.matmul %84, %85, %cst_42 {dimension_numbers = #tpu.dot_dimension_numbers<[1], [0], [0], [1], [0, 0, 1, 1], [], []>} : vector<8x32xbf16>, vector<32x32xbf16>, vector<8x32xf32> -> vector<8x32xf32>
    %c0_43 = arith.constant 0 : index
    %c0_44 = arith.constant 0 : index
    %87 = vector.load %arg14[%c0_43, %c0_44] : memref<1x32xf32, #tpu.memory_space<vmem>>, vector<1x32xf32>
    %88 = vector.broadcast %87 : vector<1x32xf32> to vector<8x32xf32>
    %89 = arith.addf %86, %88 : vector<8x32xf32>
    %c0_45 = arith.constant 0 : index
    %c0_46 = arith.constant 0 : index
    %90 = vector.load %arg15[%c0_45, %c0_46] : memref<32x32xbf16, #tpu.memory_space<vmem>>, vector<32x32xbf16>
    %cst_47 = arith.constant dense<0.000000e+00> : vector<24x32xf32>
    %91 = tpu.matmul %5, %90, %cst_47 {dimension_numbers = #tpu.dot_dimension_numbers<[1], [0], [0], [1], [0, 0, 1, 1], [], []>} : vector<24x32xbf16>, vector<32x32xbf16>, vector<24x32xf32> -> vector<24x32xf32>
    %c0_48 = arith.constant 0 : index
    %c0_49 = arith.constant 0 : index
    %92 = vector.load %arg16[%c0_48, %c0_49] : memref<1x32xf32, #tpu.memory_space<vmem>>, vector<1x32xf32>
    %93 = vector.broadcast %92 : vector<1x32xf32> to vector<24x32xf32>
    %94 = arith.addf %91, %93 : vector<24x32xf32>
    %c0_50 = arith.constant 0 : index
    %c0_51 = arith.constant 0 : index
    %95 = vector.load %arg17[%c0_50, %c0_51] : memref<32x32xbf16, #tpu.memory_space<vmem>>, vector<32x32xbf16>
    %cst_52 = arith.constant dense<0.000000e+00> : vector<24x32xf32>
    %96 = tpu.matmul %7, %95, %cst_52 {dimension_numbers = #tpu.dot_dimension_numbers<[1], [0], [0], [1], [0, 0, 1, 1], [], []>} : vector<24x32xbf16>, vector<32x32xbf16>, vector<24x32xf32> -> vector<24x32xf32>
    %c0_53 = arith.constant 0 : index
    %c0_54 = arith.constant 0 : index
    %97 = vector.load %arg18[%c0_53, %c0_54] : memref<1x32xf32, #tpu.memory_space<vmem>>, vector<1x32xf32>
    %98 = vector.broadcast %97 : vector<1x32xf32> to vector<24x32xf32>
    %99 = arith.addf %96, %98 : vector<24x32xf32>
    %100 = vector.shape_cast %89 : vector<8x32xf32> to vector<8x4x8xf32>
    %101 = tpu.transpose %100, [1, 0, 2] : vector<8x4x8xf32> -> vector<4x8x8xf32>
    %102 = arith.truncf %101 : vector<4x8x8xf32> to vector<4x8x8xbf16>
    %103 = vector.shape_cast %94 : vector<24x32xf32> to vector<24x4x8xf32>
    %104 = tpu.transpose %103, [1, 0, 2] : vector<24x4x8xf32> -> vector<4x24x8xf32>
    %105 = arith.truncf %104 : vector<4x24x8xf32> to vector<4x24x8xbf16>
    %106 = vector.shape_cast %99 : vector<24x32xf32> to vector<24x4x8xf32>
    %107 = tpu.transpose %106, [1, 0, 2] : vector<24x4x8xf32> -> vector<4x24x8xf32>
    %108 = arith.truncf %107 : vector<4x24x8xf32> to vector<4x24x8xbf16>
    "tpu.trace_start"() <{level = 10 : i32, message = "hqd,hkd->hqk"}> : () -> ()
    %cst_55 = arith.constant dense<0.000000e+00> : vector<4x8x24xf32>
    %109 = tpu.matmul %102, %105, %cst_55 {dimension_numbers = #tpu.dot_dimension_numbers<[2], [2], [1], [1], [0, 0, 0, 1, 1, 1], [0], [0]>} : vector<4x8x8xbf16>, vector<4x24x8xbf16>, vector<4x8x24xf32> -> vector<4x8x24xf32>
    "tpu.trace_stop"() : () -> ()
    %cst_56 = arith.constant 0.353553385 : f32
    %110 = vector.broadcast %cst_56 : f32 to vector<4x8x24xf32>
    %111 = arith.mulf %109, %110 : vector<4x8x24xf32>
    %112 = tpu.iota {dimensions = array<i32: 2>} : vector<4x8x24xi32>
    %c20_i32 = arith.constant 20 : i32
    %113 = vector.broadcast %c20_i32 : i32 to vector<4x8x24xi32>
    %114 = arith.cmpi slt, %112, %113 : vector<4x8x24xi32>
    %cst_57 = arith.constant -1.000000e+30 : f32
    %115 = vector.broadcast %cst_57 : f32 to vector<4x8x24xf32>
    %116 = arith.select %114, %111, %115 : vector<4x8x24xi1>, vector<4x8x24xf32>
    %cst_58 = arith.constant dense<0xFF800000> : vector<4x8xf32>
    %117 = vector.multi_reduction <maximumf>, %116, %cst_58 [2] : vector<4x8x24xf32> to vector<4x8xf32>
    %118 = vector.shape_cast %117 : vector<4x8xf32> to vector<4x8x1xf32>
    %119 = vector.broadcast %118 : vector<4x8x1xf32> to vector<4x8x24xf32>
    %120 = arith.subf %116, %119 : vector<4x8x24xf32>
    %121 = math.exp %120 : vector<4x8x24xf32>
    %cst_59 = arith.constant dense<0.000000e+00> : vector<4x8xf32>
    %122 = vector.multi_reduction <add>, %121, %cst_59 [2] : vector<4x8x24xf32> to vector<4x8xf32>
    %123 = vector.shape_cast %122 : vector<4x8xf32> to vector<4x8x1xf32>
    %124 = tpu.reciprocal %123 {approx = true} : vector<4x8x1xf32> -> vector<4x8x1xf32>
    %125 = vector.broadcast %124 : vector<4x8x1xf32> to vector<4x8x24xf32>
    %126 = arith.mulf %121, %125 : vector<4x8x24xf32>
    %127 = arith.truncf %126 : vector<4x8x24xf32> to vector<4x8x24xbf16>
    "tpu.trace_start"() <{level = 10 : i32, message = "hqk,hkd->hqd"}> : () -> ()
    %cst_60 = arith.constant dense<0.000000e+00> : vector<4x8x8xf32>
    %128 = tpu.matmul %127, %108, %cst_60 {dimension_numbers = #tpu.dot_dimension_numbers<[2], [1], [1], [2], [0, 0, 0, 1, 1, 2], [0], [0]>} : vector<4x8x24xbf16>, vector<4x24x8xbf16>, vector<4x8x8xf32> -> vector<4x8x8xf32>
    "tpu.trace_stop"() : () -> ()
    %129 = tpu.transpose %128, [1, 0, 2] : vector<4x8x8xf32> -> vector<8x4x8xf32>
    %130 = vector.shape_cast %129 : vector<8x4x8xf32> to vector<8x32xf32>
    %131 = arith.truncf %130 : vector<8x32xf32> to vector<8x32xbf16>
    %c0_61 = arith.constant 0 : index
    %c0_62 = arith.constant 0 : index
    %132 = vector.load %arg19[%c0_61, %c0_62] : memref<32x32xbf16, #tpu.memory_space<vmem>>, vector<32x32xbf16>
    %cst_63 = arith.constant dense<0.000000e+00> : vector<8x32xf32>
    %133 = tpu.matmul %131, %132, %cst_63 {dimension_numbers = #tpu.dot_dimension_numbers<[1], [0], [0], [1], [0, 0, 1, 1], [], []>} : vector<8x32xbf16>, vector<32x32xbf16>, vector<8x32xf32> -> vector<8x32xf32>
    %c0_64 = arith.constant 0 : index
    %c0_65 = arith.constant 0 : index
    %134 = vector.load %arg20[%c0_64, %c0_65] : memref<1x32xf32, #tpu.memory_space<vmem>>, vector<1x32xf32>
    %135 = vector.broadcast %134 : vector<1x32xf32> to vector<8x32xf32>
    %136 = arith.addf %133, %135 : vector<8x32xf32>
    %137 = arith.addf %82, %136 : vector<8x32xf32>
    %c0_66 = arith.constant 0 : index
    %c0_67 = arith.constant 0 : index
    %138 = vector.load %arg21[%c0_66, %c0_67] : memref<1x32xf32, #tpu.memory_space<vmem>>, vector<1x32xf32>
    %c0_68 = arith.constant 0 : index
    %c0_69 = arith.constant 0 : index
    %139 = vector.load %arg22[%c0_68, %c0_69] : memref<1x32xf32, #tpu.memory_space<vmem>>, vector<1x32xf32>
    %cst_70 = arith.constant dense<0.000000e+00> : vector<8xf32>
    %140 = vector.multi_reduction <add>, %137, %cst_70 [1] : vector<8x32xf32> to vector<8xf32>
    %141 = vector.shape_cast %140 : vector<8xf32> to vector<8x1xf32>
    %cst_71 = arith.constant 3.200000e+01 : f32
    %142 = vector.broadcast %cst_71 : f32 to vector<8x1xf32>
    %143 = arith.divf %141, %142 : vector<8x1xf32>
    %144 = vector.broadcast %143 : vector<8x1xf32> to vector<8x32xf32>
    %145 = arith.subf %137, %144 : vector<8x32xf32>
    %146 = arith.mulf %145, %145 : vector<8x32xf32>
    %cst_72 = arith.constant dense<0.000000e+00> : vector<8xf32>
    %147 = vector.multi_reduction <add>, %146, %cst_72 [1] : vector<8x32xf32> to vector<8xf32>
    %148 = vector.shape_cast %147 : vector<8xf32> to vector<8x1xf32>
    %cst_73 = arith.constant 3.200000e+01 : f32
    %149 = vector.broadcast %cst_73 : f32 to vector<8x1xf32>
    %150 = arith.divf %148, %149 : vector<8x1xf32>
    %cst_74 = arith.constant 9.99999974E-6 : f32
    %151 = vector.broadcast %cst_74 : f32 to vector<8x1xf32>
    %152 = arith.addf %150, %151 : vector<8x1xf32>
    %153 = math.rsqrt %152 : vector<8x1xf32>
    %154 = vector.broadcast %153 : vector<8x1xf32> to vector<8x32xf32>
    %155 = arith.mulf %145, %154 : vector<8x32xf32>
    %156 = vector.broadcast %138 : vector<1x32xf32> to vector<8x32xf32>
    %157 = arith.mulf %155, %156 : vector<8x32xf32>
    %158 = vector.broadcast %139 : vector<1x32xf32> to vector<8x32xf32>
    %159 = arith.addf %157, %158 : vector<8x32xf32>
    %160 = arith.truncf %159 : vector<8x32xf32> to vector<8x32xbf16>
    %c0_75 = arith.constant 0 : index
    %c0_76 = arith.constant 0 : index
    %161 = vector.load %arg23[%c0_75, %c0_76] : memref<32x64xbf16, #tpu.memory_space<vmem>>, vector<32x64xbf16>
    %cst_77 = arith.constant dense<0.000000e+00> : vector<8x64xf32>
    %162 = tpu.matmul %160, %161, %cst_77 {dimension_numbers = #tpu.dot_dimension_numbers<[1], [0], [0], [1], [0, 0, 1, 1], [], []>} : vector<8x32xbf16>, vector<32x64xbf16>, vector<8x64xf32> -> vector<8x64xf32>
    %c0_78 = arith.constant 0 : index
    %c0_79 = arith.constant 0 : index
    %163 = vector.load %arg24[%c0_78, %c0_79] : memref<1x64xf32, #tpu.memory_space<vmem>>, vector<1x64xf32>
    %164 = vector.broadcast %163 : vector<1x64xf32> to vector<8x64xf32>
    %165 = arith.addf %162, %164 : vector<8x64xf32>
    %cst_80 = arith.constant 0.000000e+00 : f32
    %166 = vector.broadcast %cst_80 : f32 to vector<8x64xf32>
    %167 = arith.maximumf %165, %166 : vector<8x64xf32>
    %168 = arith.truncf %167 : vector<8x64xf32> to vector<8x64xbf16>
    %c0_81 = arith.constant 0 : index
    %c0_82 = arith.constant 0 : index
    %169 = vector.load %arg25[%c0_81, %c0_82] : memref<64x32xbf16, #tpu.memory_space<vmem>>, vector<64x32xbf16>
    %cst_83 = arith.constant dense<0.000000e+00> : vector<8x32xf32>
    %170 = tpu.matmul %168, %169, %cst_83 {dimension_numbers = #tpu.dot_dimension_numbers<[1], [0], [0], [1], [0, 0, 1, 1], [], []>} : vector<8x64xbf16>, vector<64x32xbf16>, vector<8x32xf32> -> vector<8x32xf32>
    %c0_84 = arith.constant 0 : index
    %c0_85 = arith.constant 0 : index
    %171 = vector.load %arg26[%c0_84, %c0_85] : memref<1x32xf32, #tpu.memory_space<vmem>>, vector<1x32xf32>
    %172 = vector.broadcast %171 : vector<1x32xf32> to vector<8x32xf32>
    %173 = arith.addf %170, %172 : vector<8x32xf32>
    %174 = arith.addf %159, %173 : vector<8x32xf32>
    %c0_86 = arith.constant 0 : index
    %c0_87 = arith.constant 0 : index
    %175 = vector.load %arg27[%c0_86, %c0_87] : memref<1x32xf32, #tpu.memory_space<vmem>>, vector<1x32xf32>
    %c0_88 = arith.constant 0 : index
    %c0_89 = arith.constant 0 : index
    %176 = vector.load %arg28[%c0_88, %c0_89] : memref<1x32xf32, #tpu.memory_space<vmem>>, vector<1x32xf32>
    %cst_90 = arith.constant dense<0.000000e+00> : vector<8xf32>
    %177 = vector.multi_reduction <add>, %174, %cst_90 [1] : vector<8x32xf32> to vector<8xf32>
    %178 = vector.shape_cast %177 : vector<8xf32> to vector<8x1xf32>
    %cst_91 = arith.constant 3.200000e+01 : f32
    %179 = vector.broadcast %cst_91 : f32 to vector<8x1xf32>
    %180 = arith.divf %178, %179 : vector<8x1xf32>
    %181 = vector.broadcast %180 : vector<8x1xf32> to vector<8x32xf32>
    %182 = arith.subf %174, %181 : vector<8x32xf32>
    %183 = arith.mulf %182, %182 : vector<8x32xf32>
    %cst_92 = arith.constant dense<0.000000e+00> : vector<8xf32>
    %184 = vector.multi_reduction <add>, %183, %cst_92 [1] : vector<8x32xf32> to vector<8xf32>
    %185 = vector.shape_cast %184 : vector<8xf32> to vector<8x1xf32>
    %cst_93 = arith.constant 3.200000e+01 : f32
    %186 = vector.broadcast %cst_93 : f32 to vector<8x1xf32>
    %187 = arith.divf %185, %186 : vector<8x1xf32>
    %cst_94 = arith.constant 9.99999974E-6 : f32
    %188 = vector.broadcast %cst_94 : f32 to vector<8x1xf32>
    %189 = arith.addf %187, %188 : vector<8x1xf32>
    %190 = math.rsqrt %189 : vector<8x1xf32>
    %191 = vector.broadcast %190 : vector<8x1xf32> to vector<8x32xf32>
    %192 = arith.mulf %182, %191 : vector<8x32xf32>
    %193 = vector.broadcast %175 : vector<1x32xf32> to vector<8x32xf32>
    %194 = arith.mulf %192, %193 : vector<8x32xf32>
    %195 = vector.broadcast %176 : vector<1x32xf32> to vector<8x32xf32>
    %196 = arith.addf %194, %195 : vector<8x32xf32>
    %c0_95 = arith.constant 0 : index
    %c0_96 = arith.constant 0 : index
    %c0_97 = arith.constant 0 : index
    %197 = vector.load %arg29[%c0_95, %c0_96, %c0_97] : memref<1x8x32xf32, #tpu.memory_space<vmem>>, vector<1x8x32xf32>
    %198 = vector.shape_cast %197 : vector<1x8x32xf32> to vector<8x32xf32>
    %199 = vector.shape_cast %196 : vector<8x32xf32> to vector<1x8x32xf32>
    tpu.vector_store %arg29[%c0_95, %c0_96, %c0_97], %199 {strides = array<i32>} : memref<1x8x32xf32, #tpu.memory_space<vmem>>, vector<1x8x32xf32>,
    return
  }
  func.func @transform_0(%arg0: i32) -> (i32, i32, i32) {
    %c0_i32 = arith.constant 0 : i32
    %c0_i32_0 = arith.constant 0 : i32
    %c0_i32_1 = arith.constant 0 : i32
    return %arg0, %c0_i32, %c0_i32_0 : i32, i32, i32
  }
  func.func @transform_1(%arg0: i32) -> (i32, i32, i32) {
    %c0_i32 = arith.constant 0 : i32
    %c0_i32_0 = arith.constant 0 : i32
    %c0_i32_1 = arith.constant 0 : i32
    return %arg0, %c0_i32, %c0_i32_0 : i32, i32, i32
  }
  func.func @transform_2(%arg0: i32) -> (i32, i32, i32) {
    %c0_i32 = arith.constant 0 : i32
    %c0_i32_0 = arith.constant 0 : i32
    %c0_i32_1 = arith.constant 0 : i32
    return %arg0, %c0_i32, %c0_i32_0 : i32, i32, i32
  }
  func.func @transform_3(%arg0: i32) -> (i32, i32, i32) {
    %c0_i32 = arith.constant 0 : i32
    %c0_i32_0 = arith.constant 0 : i32
    %c0_i32_1 = arith.constant 0 : i32
    return %arg0, %c0_i32, %c0_i32_0 : i32, i32, i32
  }
  func.func @transform_4(%arg0: i32) -> (i32, i32) {
    %c0_i32 = arith.constant 0 : i32
    %c0_i32_0 = arith.constant 0 : i32
    %c0_i32_1 = arith.constant 0 : i32
    return %c0_i32, %c0_i32_0 : i32, i32
  }
  func.func @transform_5(%arg0: i32) -> (i32, i32) {
    %c0_i32 = arith.constant 0 : i32
    %c0_i32_0 = arith.constant 0 : i32
    %c0_i32_1 = arith.constant 0 : i32
    return %c0_i32, %c0_i32_0 : i32, i32
  }
  func.func @transform_6(%arg0: i32) -> (i32, i32) {
    %c0_i32 = arith.constant 0 : i32
    %c0_i32_0 = arith.constant 0 : i32
    %c0_i32_1 = arith.constant 0 : i32
    return %c0_i32, %c0_i32_0 : i32, i32
  }
  func.func @transform_7(%arg0: i32) -> (i32, i32) {
    %c0_i32 = arith.constant 0 : i32
    %c0_i32_0 = arith.constant 0 : i32
    %c0_i32_1 = arith.constant 0 : i32
    return %c0_i32, %c0_i32_0 : i32, i32
  }
  func.func @transform_8(%arg0: i32) -> (i32, i32) {
    %c0_i32 = arith.constant 0 : i32
    %c0_i32_0 = arith.constant 0 : i32
    %c0_i32_1 = arith.constant 0 : i32
    return %c0_i32, %c0_i32_0 : i32, i32
  }
  func.func @transform_9(%arg0: i32) -> (i32, i32) {
    %c0_i32 = arith.constant 0 : i32
    %c0_i32_0 = arith.constant 0 : i32
    %c0_i32_1 = arith.constant 0 : i32
    return %c0_i32, %c0_i32_0 : i32, i32
  }
  func.func @transform_10(%arg0: i32) -> (i32, i32) {
    %c0_i32 = arith.constant 0 : i32
    %c0_i32_0 = arith.constant 0 : i32
    %c0_i32_1 = arith.constant 0 : i32
    return %c0_i32, %c0_i32_0 : i32, i32
  }
  func.func @transform_11(%arg0: i32) -> (i32, i32) {
    %c0_i32 = arith.constant 0 : i32
    %c0_i32_0 = arith.constant 0 : i32
    %c0_i32_1 = arith.constant 0 : i32
    return %c0_i32, %c0_i32_0 : i32, i32
  }
  func.func @transform_12(%arg0: i32) -> (i32, i32) {
    %c0_i32 = arith.constant 0 : i32
    %c0_i32_0 = arith.constant 0 : i32
    %c0_i32_1 = arith.constant 0 : i32
    return %c0_i32, %c0_i32_0 : i32, i32
  }
  func.func @transform_13(%arg0: i32) -> (i32, i32) {
    %c0_i32 = arith.constant 0 : i32
    %c0_i32_0 = arith.constant 0 : i32
    %c0_i32_1 = arith.constant 0 : i32
    return %c0_i32, %c0_i32_0 : i32, i32
  }
  func.func @transform_14(%arg0: i32) -> (i32, i32) {
    %c0_i32 = arith.constant 0 : i32
    %c0_i32_0 = arith.constant 0 : i32
    %c0_i32_1 = arith.constant 0 : i32
    return %c0_i32, %c0_i32_0 : i32, i32
  }
  func.func @transform_15(%arg0: i32) -> (i32, i32) {
    %c0_i32 = arith.constant 0 : i32
    %c0_i32_0 = arith.constant 0 : i32
    %c0_i32_1 = arith.constant 0 : i32
    return %c0_i32, %c0_i32_0 : i32, i32
  }
  func.func @transform_16(%arg0: i32) -> (i32, i32) {
    %c0_i32 = arith.constant 0 : i32
    %c0_i32_0 = arith.constant 0 : i32
    %c0_i32_1 = arith.constant 0 : i32
    return %c0_i32, %c0_i32_0 : i32, i32
  }
  func.func @transform_17(%arg0: i32) -> (i32, i32) {
    %c0_i32 = arith.constant 0 : i32
    %c0_i32_0 = arith.constant 0 : i32
    %c0_i32_1 = arith.constant 0 : i32
    return %c0_i32, %c0_i32_0 : i32, i32
  }
  func.func @transform_18(%arg0: i32) -> (i32, i32) {
    %c0_i32 = arith.constant 0 : i32
    %c0_i32_0 = arith.constant 0 : i32
    %c0_i32_1 = arith.constant 0 : i32
    return %c0_i32, %c0_i32_0 : i32, i32
  }
  func.func @transform_19(%arg0: i32) -> (i32, i32) {
    %c0_i32 = arith.constant 0 : i32
    %c0_i32_0 = arith.constant 0 : i32
    %c0_i32_1 = arith.constant 0 : i32
    return %c0_i32, %c0_i32_0 : i32, i32
  }
  func.func @transform_20(%arg0: i32) -> (i32, i32) {
    %c0_i32 = arith.constant 0 : i32
    %c0_i32_0 = arith.constant 0 : i32
    %c0_i32_1 = arith.constant 0 : i32
    return %c0_i32, %c0_i32_0 : i32, i32
  }
  func.func @transform_21(%arg0: i32) -> (i32, i32) {
    %c0_i32 = arith.constant 0 : i32
    %c0_i32_0 = arith.constant 0 : i32
    %c0_i32_1 = arith.constant 0 : i32
    return %c0_i32, %c0_i32_0 : i32, i32
  }
  func.func @transform_22(%arg0: i32) -> (i32, i32) {
    %c0_i32 = arith.constant 0 : i32
    %c0_i32_0 = arith.constant 0 : i32
    %c0_i32_1 = arith.constant 0 : i32
    return %c0_i32, %c0_i32_0 : i32, i32
  }
  func.func @transform_23(%arg0: i32) -> (i32, i32) {
    %c0_i32 = arith.constant 0 : i32
    %c0_i32_0 = arith.constant 0 : i32
    %c0_i32_1 = arith.constant 0 : i32
    return %c0_i32, %c0_i32_0 : i32, i32
  }
  func.func @transform_24(%arg0: i32) -> (i32, i32) {
    %c0_i32 = arith.constant 0 : i32
    %c0_i32_0 = arith.constant 0 : i32
    %c0_i32_1 = arith.constant 0 : i32
    return %c0_i32, %c0_i32_0 : i32, i32
  }
  func.func @transform_25(%arg0: i32) -> (i32, i32) {
    %c0_i32 = arith.constant 0 : i32
    %c0_i32_0 = arith.constant 0 : i32
    %c0_i32_1 = arith.constant 0 : i32
    return %c0_i32, %c0_i32_0 : i32, i32
  }
  func.func @transform_26(%arg0: i32) -> (i32, i32) {
    %c0_i32 = arith.constant 0 : i32
    %c0_i32_0 = arith.constant 0 : i32
    %c0_i32_1 = arith.constant 0 : i32
    return %c0_i32, %c0_i32_0 : i32, i32
  }
  func.func @transform_27(%arg0: i32) -> (i32, i32) {
    %c0_i32 = arith.constant 0 : i32
    %c0_i32_0 = arith.constant 0 : i32
    %c0_i32_1 = arith.constant 0 : i32
    return %c0_i32, %c0_i32_0 : i32, i32
  }
  func.func @transform_28(%arg0: i32) -> (i32, i32, i32) {
    %c0_i32 = arith.constant 0 : i32
    %c0_i32_0 = arith.constant 0 : i32
    %c0_i32_1 = arith.constant 0 : i32
    return %arg0, %c0_i32, %c0_i32_0 : i32, i32, i32
  }
}

</mosaic_0001>

<llo_original>
// kernel: transformer_decoder_layer_forward.1
$region0: #{transformer_decoder_layer_forward.1}
  #allocation0 [shape = 'u32[]', space=smem, size = 0x4, offset = 0x4, fixed_abs, tag = 'smem constant byte address 0x4 - core index']
  #allocation1 [shape = 'u32[144,128]{1,0:T(1,128)}', space=vmem, size = 0x12000, scoped, tag = 'internal scratch']
  %s0 = inlined_call_operand.vmem [shape: f32[2,8,32], index: 0, kind: input, shape index: {}]
  %s1 = inlined_call_operand.vmem [shape: f32[2,8,32], index: 1, kind: input, shape index: {}]
  %s2 = inlined_call_operand.vmem [shape: bf16[2,24,32], index: 2, kind: input, shape index: {}]
  %s3 = inlined_call_operand.vmem [shape: bf16[2,24,32], index: 3, kind: input, shape index: {}]
  %s4 = inlined_call_operand.vmem [shape: bf16[32,64], index: 4, kind: input, shape index: {}]
  %s5 = inlined_call_operand.vmem [shape: f32[1,64], index: 5, kind: input, shape index: {}]
  %s6 = inlined_call_operand.vmem [shape: bf16[32,32], index: 6, kind: input, shape index: {}]
  %s7 = inlined_call_operand.vmem [shape: f32[1,32], index: 7, kind: input, shape index: {}]
  %s8 = inlined_call_operand.vmem [shape: bf16[32,32], index: 8, kind: input, shape index: {}]
  %s9 = inlined_call_operand.vmem [shape: f32[1,32], index: 9, kind: input, shape index: {}]
  %s10 = inlined_call_operand.vmem [shape: f32[1,32], index: 10, kind: input, shape index: {}]
  %s11 = inlined_call_operand.vmem [shape: f32[1,32], index: 11, kind: input, shape index: {}]
  %s12 = inlined_call_operand.vmem [shape: bf16[32,32], index: 12, kind: input, shape index: {}]
  %s13 = inlined_call_operand.vmem [shape: f32[1,32], index: 13, kind: input, shape index: {}]
  %s14 = inlined_call_operand.vmem [shape: bf16[32,32], index: 14, kind: input, shape index: {}]
  %s15 = inlined_call_operand.vmem [shape: f32[1,32], index: 15, kind: input, shape index: {}]
  %s16 = inlined_call_operand.vmem [shape: bf16[32,32], index: 16, kind: input, shape index: {}]
  %s17 = inlined_call_operand.vmem [shape: f32[1,32], index: 17, kind: input, shape index: {}]
  %s18 = inlined_call_operand.vmem [shape: bf16[32,32], index: 18, kind: input, shape index: {}]
  %s19 = inlined_call_operand.vmem [shape: f32[1,32], index: 19, kind: input, shape index: {}]
  %s20 = inlined_call_operand.vmem [shape: f32[1,32], index: 20, kind: input, shape index: {}]
  %s21 = inlined_call_operand.vmem [shape: f32[1,32], index: 21, kind: input, shape index: {}]
  %s22 = inlined_call_operand.vmem [shape: bf16[32,64], index: 22, kind: input, shape index: {}]
  %s23 = inlined_call_operand.vmem [shape: f32[1,64], index: 23, kind: input, shape index: {}]
  %s24 = inlined_call_operand.vmem [shape: bf16[64,32], index: 24, kind: input, shape index: {}]
  %s25 = inlined_call_operand.vmem [shape: f32[1,32], index: 25, kind: input, shape index: {}]
  %s26 = inlined_call_operand.vmem [shape: f32[1,32], index: 26, kind: input, shape index: {}]
  %s27 = inlined_call_operand.vmem [shape: f32[1,32], index: 27, kind: input, shape index: {}]
  %s28 = inlined_call_operand.vmem [shape: f32[2,8,32], index: 28, kind: output, shape index: {}]
  %s29 = sld [smem:[#allocation0]]
  $region145: #{transformer_decoder_layer_forward.1} parent=0
    _
  %s31 = ssub.s32 1, %s29
  %s32 = scalar_select 0, %s31, %s29
  loop: start=0, step=1, limit=4
  $region2: #{transformer_decoder_layer_forward.1} parent=0 // loop_pre_header
    _
  $region3: #{transformer_decoder_layer_forward.1} parent=0 // loop_header
    %s34 = sphi 0, %s38
    %p35 = scmp.ge.s32.totalorder %s34, 4
    %s44 = sphi 0, %s46
    %s47 = sphi 0, %s44
    %s48 = sphi 0, %s47
    %s64 = sphi 0, %s48
    %s70 = sphi 0, %s72
    %s73 = sphi 0, %s70
    %s74 = sphi 0, %s73
    %s90 = sphi 0, %s74
    %s96 = sphi 0, %s98
    %s99 = sphi 0, %s96
    %s100 = sphi 0, %s99
    %s116 = sphi 0, %s100
    %s122 = sphi 0, %s124
    %s125 = sphi 0, %s122
    %s126 = sphi 0, %s125
    %s142 = sphi 0, %s126
    %s146 = sphi 0, %s146
    %s148 = sphi 0, %s146
    %s149 = sphi 0, %s148
    %s163 = sphi 0, %s149
    %s167 = sphi 0, %s167
    %s169 = sphi 0, %s167
    %s170 = sphi 0, %s169
    %s184 = sphi 0, %s170
    %s188 = sphi 0, %s188
    %s190 = sphi 0, %s188
    %s191 = sphi 0, %s190
    %s205 = sphi 0, %s191
    %s209 = sphi 0, %s209
    %s211 = sphi 0, %s209
    %s212 = sphi 0, %s211
    %s226 = sphi 0, %s212
    %s230 = sphi 0, %s230
    %s232 = sphi 0, %s230
    %s233 = sphi 0, %s232
    %s247 = sphi 0, %s233
    %s251 = sphi 0, %s251
    %s253 = sphi 0, %s251
    %s254 = sphi 0, %s253
    %s268 = sphi 0, %s254
    %s272 = sphi 0, %s272
    %s274 = sphi 0, %s272
    %s275 = sphi 0, %s274
    %s289 = sphi 0, %s275
    %s293 = sphi 0, %s293
    %s295 = sphi 0, %s293
    %s296 = sphi 0, %s295
    %s310 = sphi 0, %s296
    %s314 = sphi 0, %s314
    %s316 = sphi 0, %s314
    %s317 = sphi 0, %s316
    %s331 = sphi 0, %s317
    %s335 = sphi 0, %s335
    %s337 = sphi 0, %s335
    %s338 = sphi 0, %s337
    %s352 = sphi 0, %s338
    %s356 = sphi 0, %s356
    %s358 = sphi 0, %s356
    %s359 = sphi 0, %s358
    %s373 = sphi 0, %s359
    %s377 = sphi 0, %s377
    %s379 = sphi 0, %s377
    %s380 = sphi 0, %s379
    %s394 = sphi 0, %s380
    %s398 = sphi 0, %s398
    %s400 = sphi 0, %s398
    %s401 = sphi 0, %s400
    %s415 = sphi 0, %s401
    %s419 = sphi 0, %s419
    %s421 = sphi 0, %s419
    %s422 = sphi 0, %s421
    %s436 = sphi 0, %s422
    %s440 = sphi 0, %s440
    %s442 = sphi 0, %s440
    %s443 = sphi 0, %s442
    %s457 = sphi 0, %s443
    %s461 = sphi 0, %s461
    %s463 = sphi 0, %s461
    %s464 = sphi 0, %s463
    %s478 = sphi 0, %s464
    %s482 = sphi 0, %s482
    %s484 = sphi 0, %s482
    %s485 = sphi 0, %s484
    %s499 = sphi 0, %s485
    %s503 = sphi 0, %s503
    %s505 = sphi 0, %s503
    %s506 = sphi 0, %s505
    %s520 = sphi 0, %s506
    %s524 = sphi 0, %s524
    %s526 = sphi 0, %s524
    %s527 = sphi 0, %s526
    %s541 = sphi 0, %s527
    %s545 = sphi 0, %s545
    %s547 = sphi 0, %s545
    %s548 = sphi 0, %s547
    %s562 = sphi 0, %s548
    %s566 = sphi 0, %s566
    %s568 = sphi 0, %s566
    %s569 = sphi 0, %s568
    %s583 = sphi 0, %s569
    %s587 = sphi 0, %s587
    %s589 = sphi 0, %s587
    %s590 = sphi 0, %s589
    %s604 = sphi 0, %s590
    %s608 = sphi 0, %s608
    %s610 = sphi 0, %s608
    %s611 = sphi 0, %s610
    %s625 = sphi 0, %s611
    %s629 = sphi 0, %s629
    %s631 = sphi 0, %s629
    %s632 = sphi 0, %s631
    %s646 = sphi 0, %s632
    %s652 = sphi 0, %s654
    %s655 = sphi 0, %s652
    %s656 = sphi 0, %s655
    %s672 = sphi 0, %s656
  $region4: #{transformer_decoder_layer_forward.1} parent=0 // loop_header_branch
    %37 = sbr.rel (%p35) target = $region8
  $region5: #{transformer_decoder_layer_forward.1} parent=0 // loop_body
    %s39 = ssub.s32 %s34, 1
    %s40 = ssub.s32 %s34, 2
    %s41 = sadd.s32 %s34, 1
    %s42 = ssub.s32 %s34, %s41
    %p43 = scmp.eq.s32.totalorder %s42, 0
    %s45 = sadd.s32 %s44, 1
    %s46 = scalar_select %p43, %s44, %s45
    %p49 = pneg %p43
    %p50 = scmp.eq.s32.totalorder %s34, 1
    %p51 = por %p49, %p50
    %p52 = scmp.ne.s32.totalorder %s44, %s47
    %p53 = scmp.eq.s32.totalorder %s34, 0
    %p54 = por %p52, %p53
    %p55 = scmp.ne.s32.totalorder %s44, %s47
    %p56 = scmp.eq.s32.totalorder %s39, 1
    %p57 = por %p55, %p56
    %p58 = scmp.ne.s32.totalorder %s47, %s48
    %p59 = scmp.eq.s32.totalorder %s39, 0
    %p60 = por %p58, %p59
    %p61 = scmp.ne.s32.totalorder %s47, %s48
    %p62 = scmp.eq.s32.totalorder %s40, 1
    %p63 = por %p61, %p62
    %p65 = scmp.ne.s32.totalorder %s48, %s64
    %p66 = scmp.eq.s32.totalorder %s40, 0
    %p67 = por %p65, %p66
    %s68 = ssub.s32 %s34, %s41
    %p69 = scmp.eq.s32.totalorder %s68, 0
    %s71 = sadd.s32 %s70, 1
    %s72 = scalar_select %p69, %s70, %s71
    %p75 = pneg %p69
    %p76 = scmp.eq.s32.totalorder %s34, 1
    %p77 = por %p75, %p76
    %p78 = scmp.ne.s32.totalorder %s70, %s73
    %p79 = scmp.eq.s32.totalorder %s34, 0
    %p80 = por %p78, %p79
    %p81 = scmp.ne.s32.totalorder %s70, %s73
    %p82 = scmp.eq.s32.totalorder %s39, 1
    %p83 = por %p81, %p82
    %p84 = scmp.ne.s32.totalorder %s73, %s74
    %p85 = scmp.eq.s32.totalorder %s39, 0
    %p86 = por %p84, %p85
    %p87 = scmp.ne.s32.totalorder %s73, %s74
    %p88 = scmp.eq.s32.totalorder %s40, 1
    %p89 = por %p87, %p88
    %p91 = scmp.ne.s32.totalorder %s74, %s90
    %p92 = scmp.eq.s32.totalorder %s40, 0
    %p93 = por %p91, %p92
    %s94 = ssub.s32 %s34, %s41
    %p95 = scmp.eq.s32.totalorder %s94, 0
    %s97 = sadd.s32 %s96, 1
    %s98 = scalar_select %p95, %s96, %s97
    %p101 = pneg %p95
    %p102 = scmp.eq.s32.totalorder %s34, 1
    %p103 = por %p101, %p102
    %p104 = scmp.ne.s32.totalorder %s96, %s99
    %p105 = scmp.eq.s32.totalorder %s34, 0
    %p106 = por %p104, %p105
    %p107 = scmp.ne.s32.totalorder %s96, %s99
    %p108 = scmp.eq.s32.totalorder %s39, 1
    %p109 = por %p107, %p108
    %p110 = scmp.ne.s32.totalorder %s99, %s100
    %p111 = scmp.eq.s32.totalorder %s39, 0
    %p112 = por %p110, %p111
    %p113 = scmp.ne.s32.totalorder %s99, %s100
    %p114 = scmp.eq.s32.totalorder %s40, 1
    %p115 = por %p113, %p114
    %p117 = scmp.ne.s32.totalorder %s100, %s116
    %p118 = scmp.eq.s32.totalorder %s40, 0
    %p119 = por %p117, %p118
    %s120 = ssub.s32 %s34, %s41
    %p121 = scmp.eq.s32.totalorder %s120, 0
    %s123 = sadd.s32 %s122, 1
    %s124 = scalar_select %p121, %s122, %s123
    %p127 = pneg %p121
    %p128 = scmp.eq.s32.totalorder %s34, 1
    %p129 = por %p127, %p128
    %p130 = scmp.ne.s32.totalorder %s122, %s125
    %p131 = scmp.eq.s32.totalorder %s34, 0
    %p132 = por %p130, %p131
    %p133 = scmp.ne.s32.totalorder %s122, %s125
    %p134 = scmp.eq.s32.totalorder %s39, 1
    %p135 = por %p133, %p134
    %p136 = scmp.ne.s32.totalorder %s125, %s126
    %p137 = scmp.eq.s32.totalorder %s39, 0
    %p138 = por %p136, %p137
    %p139 = scmp.ne.s32.totalorder %s125, %s126
    %p140 = scmp.eq.s32.totalorder %s40, 1
    %p141 = por %p139, %p140
    %p143 = scmp.ne.s32.totalorder %s126, %s142
    %p144 = scmp.eq.s32.totalorder %s40, 0
    %p145 = por %p143, %p144
    %s147 = sadd.s32 %s146, 1
    %p150 = scmp.eq.s32.totalorder %s34, 1
    %p151 = scmp.ne.s32.totalorder %s146, %s148
    %p152 = scmp.eq.s32.totalorder %s34, 0
    %p153 = por %p151, %p152
    %p154 = scmp.ne.s32.totalorder %s146, %s148
    %p155 = scmp.eq.s32.totalorder %s39, 1
    %p156 = por %p154, %p155
    %p157 = scmp.ne.s32.totalorder %s148, %s149
    %p158 = scmp.eq.s32.totalorder %s39, 0
    %p159 = por %p157, %p158
    %p160 = scmp.ne.s32.totalorder %s148, %s149
    %p161 = scmp.eq.s32.totalorder %s40, 1
    %p162 = por %p160, %p161
    %p164 = scmp.ne.s32.totalorder %s149, %s163
    %p165 = scmp.eq.s32.totalorder %s40, 0
    %p166 = por %p164, %p165
    %s168 = sadd.s32 %s167, 1
    %p171 = scmp.eq.s32.totalorder %s34, 1
    %p172 = scmp.ne.s32.totalorder %s167, %s169
    %p173 = scmp.eq.s32.totalorder %s34, 0
    %p174 = por %p172, %p173
    %p175 = scmp.ne.s32.totalorder %s167, %s169
    %p176 = scmp.eq.s32.totalorder %s39, 1
    %p177 = por %p175, %p176
    %p178 = scmp.ne.s32.totalorder %s169, %s170
    %p179 = scmp.eq.s32.totalorder %s39, 0
    %p180 = por %p178, %p179
    %p181 = scmp.ne.s32.totalorder %s169, %s170
    %p182 = scmp.eq.s32.totalorder %s40, 1
    %p183 = por %p181, %p182
    %p185 = scmp.ne.s32.totalorder %s170, %s184
    %p186 = scmp.eq.s32.totalorder %s40, 0
    %p187 = por %p185, %p186
    %s189 = sadd.s32 %s188, 1
    %p192 = scmp.eq.s32.totalorder %s34, 1
    %p193 = scmp.ne.s32.totalorder %s188, %s190
    %p194 = scmp.eq.s32.totalorder %s34, 0
    %p195 = por %p193, %p194
    %p196 = scmp.ne.s32.totalorder %s188, %s190
    %p197 = scmp.eq.s32.totalorder %s39, 1
    %p198 = por %p196, %p197
    %p199 = scmp.ne.s32.totalorder %s190, %s191
    %p200 = scmp.eq.s32.totalorder %s39, 0
    %p201 = por %p199, %p200
    %p202 = scmp.ne.s32.totalorder %s190, %s191
    %p203 = scmp.eq.s32.totalorder %s40, 1
    %p204 = por %p202, %p203
    %p206 = scmp.ne.s32.totalorder %s191, %s205
    %p207 = scmp.eq.s32.totalorder %s40, 0
    %p208 = por %p206, %p207
    %s210 = sadd.s32 %s209, 1
    %p213 = scmp.eq.s32.totalorder %s34, 1
    %p214 = scmp.ne.s32.totalorder %s209, %s211
    %p215 = scmp.eq.s32.totalorder %s34, 0
    %p216 = por %p214, %p215
    %p217 = scmp.ne.s32.totalorder %s209, %s211
    %p218 = scmp.eq.s32.totalorder %s39, 1
    %p219 = por %p217, %p218
    %p220 = scmp.ne.s32.totalorder %s211, %s212
    %p221 = scmp.eq.s32.totalorder %s39, 0
    %p222 = por %p220, %p221
    %p223 = scmp.ne.s32.totalorder %s211, %s212
    %p224 = scmp.eq.s32.totalorder %s40, 1
    %p225 = por %p223, %p224
    %p227 = scmp.ne.s32.totalorder %s212, %s226
    %p228 = scmp.eq.s32.totalorder %s40, 0
    %p229 = por %p227, %p228
    %s231 = sadd.s32 %s230, 1
    %p234 = scmp.eq.s32.totalorder %s34, 1
    %p235 = scmp.ne.s32.totalorder %s230, %s232
    %p236 = scmp.eq.s32.totalorder %s34, 0
    %p237 = por %p235, %p236
    %p238 = scmp.ne.s32.totalorder %s230, %s232
    %p239 = scmp.eq.s32.totalorder %s39, 1
    %p240 = por %p238, %p239
    %p241 = scmp.ne.s32.totalorder %s232, %s233
    %p242 = scmp.eq.s32.totalorder %s39, 0
    %p243 = por %p241, %p242
    %p244 = scmp.ne.s32.totalorder %s232, %s233
    %p245 = scmp.eq.s32.totalorder %s40, 1
    %p246 = por %p244, %p245
    %p248 = scmp.ne.s32.totalorder %s233, %s247
    %p249 = scmp.eq.s32.totalorder %s40, 0
    %p250 = por %p248, %p249
    %s252 = sadd.s32 %s251, 1
    %p255 = scmp.eq.s32.totalorder %s34, 1
    %p256 = scmp.ne.s32.totalorder %s251, %s253
    %p257 = scmp.eq.s32.totalorder %s34, 0
    %p258 = por %p256, %p257
    %p259 = scmp.ne.s32.totalorder %s251, %s253
    %p260 = scmp.eq.s32.totalorder %s39, 1
    %p261 = por %p259, %p260
    %p262 = scmp.ne.s32.totalorder %s253, %s254
    %p263 = scmp.eq.s32.totalorder %s39, 0
    %p264 = por %p262, %p263
    %p265 = scmp.ne.s32.totalorder %s253, %s254
    %p266 = scmp.eq.s32.totalorder %s40, 1
    %p267 = por %p265, %p266
    %p269 = scmp.ne.s32.totalorder %s254, %s268
    %p270 = scmp.eq.s32.totalorder %s40, 0
    %p271 = por %p269, %p270
    %s273 = sadd.s32 %s272, 1
    %p276 = scmp.eq.s32.totalorder %s34, 1
    %p277 = scmp.ne.s32.totalorder %s272, %s274
    %p278 = scmp.eq.s32.totalorder %s34, 0
    %p279 = por %p277, %p278
    %p280 = scmp.ne.s32.totalorder %s272, %s274
    %p281 = scmp.eq.s32.totalorder %s39, 1
    %p282 = por %p280, %p281
    %p283 = scmp.ne.s32.totalorder %s274, %s275
    %p284 = scmp.eq.s32.totalorder %s39, 0
    %p285 = por %p283, %p284
    %p286 = scmp.ne.s32.totalorder %s274, %s275
    %p287 = scmp.eq.s32.totalorder %s40, 1
    %p288 = por %p286, %p287
    %p290 = scmp.ne.s32.totalorder %s275, %s289
    %p291 = scmp.eq.s32.totalorder %s40, 0
    %p292 = por %p290, %p291
    %s294 = sadd.s32 %s293, 1
    %p297 = scmp.eq.s32.totalorder %s34, 1
    %p298 = scmp.ne.s32.totalorder %s293, %s295
    %p299 = scmp.eq.s32.totalorder %s34, 0
    %p300 = por %p298, %p299
    %p301 = scmp.ne.s32.totalorder %s293, %s295
    %p302 = scmp.eq.s32.totalorder %s39, 1
    %p303 = por %p301, %p302
    %p304 = scmp.ne.s32.totalorder %s295, %s296
    %p305 = scmp.eq.s32.totalorder %s39, 0
    %p306 = por %p304, %p305
    %p307 = scmp.ne.s32.totalorder %s295, %s296
    %p308 = scmp.eq.s32.totalorder %s40, 1
    %p309 = por %p307, %p308
    %p311 = scmp.ne.s32.totalorder %s296, %s310
    %p312 = scmp.eq.s32.totalorder %s40, 0
    %p313 = por %p311, %p312
    %s315 = sadd.s32 %s314, 1
    %p318 = scmp.eq.s32.totalorder %s34, 1
    %p319 = scmp.ne.s32.totalorder %s314, %s316
    %p320 = scmp.eq.s32.totalorder %s34, 0
    %p321 = por %p319, %p320
    %p322 = scmp.ne.s32.totalorder %s314, %s316
    %p323 = scmp.eq.s32.totalorder %s39, 1
    %p324 = por %p322, %p323
    %p325 = scmp.ne.s32.totalorder %s316, %s317
    %p326 = scmp.eq.s32.totalorder %s39, 0
    %p327 = por %p325, %p326
    %p328 = scmp.ne.s32.totalorder %s316, %s317
    %p329 = scmp.eq.s32.totalorder %s40, 1
    %p330 = por %p328, %p329
    %p332 = scmp.ne.s32.totalorder %s317, %s331
    %p333 = scmp.eq.s32.totalorder %s40, 0
    %p334 = por %p332, %p333
    %s336 = sadd.s32 %s335, 1
    %p339 = scmp.eq.s32.totalorder %s34, 1
    %p340 = scmp.ne.s32.totalorder %s335, %s337
    %p341 = scmp.eq.s32.totalorder %s34, 0
    %p342 = por %p340, %p341
    %p343 = scmp.ne.s32.totalorder %s335, %s337
    %p344 = scmp.eq.s32.totalorder %s39, 1
    %p345 = por %p343, %p344
    %p346 = scmp.ne.s32.totalorder %s337, %s338
    %p347 = scmp.eq.s32.totalorder %s39, 0
    %p348 = por %p346, %p347
    %p349 = scmp.ne.s32.totalorder %s337, %s338
    %p350 = scmp.eq.s32.totalorder %s40, 1
    %p351 = por %p349, %p350
    %p353 = scmp.ne.s32.totalorder %s338, %s352
    %p354 = scmp.eq.s32.totalorder %s40, 0
    %p355 = por %p353, %p354
    %s357 = sadd.s32 %s356, 1
    %p360 = scmp.eq.s32.totalorder %s34, 1
    %p361 = scmp.ne.s32.totalorder %s356, %s358
    %p362 = scmp.eq.s32.totalorder %s34, 0
    %p363 = por %p361, %p362
    %p364 = scmp.ne.s32.totalorder %s356, %s358
    %p365 = scmp.eq.s32.totalorder %s39, 1
    %p366 = por %p364, %p365
    %p367 = scmp.ne.s32.totalorder %s358, %s359
    %p368 = scmp.eq.s32.totalorder %s39, 0
    %p369 = por %p367, %p368
    %p370 = scmp.ne.s32.totalorder %s358, %s359
    %p371 = scmp.eq.s32.totalorder %s40, 1
    %p372 = por %p370, %p371
    %p374 = scmp.ne.s32.totalorder %s359, %s373
    %p375 = scmp.eq.s32.totalorder %s40, 0
    %p376 = por %p374, %p375
    %s378 = sadd.s32 %s377, 1
    %p381 = scmp.eq.s32.totalorder %s34, 1
    %p382 = scmp.ne.s32.totalorder %s377, %s379
    %p383 = scmp.eq.s32.totalorder %s34, 0
    %p384 = por %p382, %p383
    %p385 = scmp.ne.s32.totalorder %s377, %s379
    %p386 = scmp.eq.s32.totalorder %s39, 1
    %p387 = por %p385, %p386
    %p388 = scmp.ne.s32.totalorder %s379, %s380
    %p389 = scmp.eq.s32.totalorder %s39, 0
    %p390 = por %p388, %p389
    %p391 = scmp.ne.s32.totalorder %s379, %s380
    %p392 = scmp.eq.s32.totalorder %s40, 1
    %p393 = por %p391, %p392
    %p395 = scmp.ne.s32.totalorder %s380, %s394
    %p396 = scmp.eq.s32.totalorder %s40, 0
    %p397 = por %p395, %p396
    %s399 = sadd.s32 %s398, 1
    %p402 = scmp.eq.s32.totalorder %s34, 1
    %p403 = scmp.ne.s32.totalorder %s398, %s400
    %p404 = scmp.eq.s32.totalorder %s34, 0
    %p405 = por %p403, %p404
    %p406 = scmp.ne.s32.totalorder %s398, %s400
    %p407 = scmp.eq.s32.totalorder %s39, 1
    %p408 = por %p406, %p407
    %p409 = scmp.ne.s32.totalorder %s400, %s401
    %p410 = scmp.eq.s32.totalorder %s39, 0
    %p411 = por %p409, %p410
    %p412 = scmp.ne.s32.totalorder %s400, %s401
    %p413 = scmp.eq.s32.totalorder %s40, 1
    %p414 = por %p412, %p413
    %p416 = scmp.ne.s32.totalorder %s401, %s415
    %p417 = scmp.eq.s32.totalorder %s40, 0
    %p418 = por %p416, %p417
    %s420 = sadd.s32 %s419, 1
    %p423 = scmp.eq.s32.totalorder %s34, 1
    %p424 = scmp.ne.s32.totalorder %s419, %s421
    %p425 = scmp.eq.s32.totalorder %s34, 0
    %p426 = por %p424, %p425
    %p427 = scmp.ne.s32.totalorder %s419, %s421
    %p428 = scmp.eq.s32.totalorder %s39, 1
    %p429 = por %p427, %p428
    %p430 = scmp.ne.s32.totalorder %s421, %s422
    %p431 = scmp.eq.s32.totalorder %s39, 0
    %p432 = por %p430, %p431
    %p433 = scmp.ne.s32.totalorder %s421, %s422
    %p434 = scmp.eq.s32.totalorder %s40, 1
    %p435 = por %p433, %p434
    %p437 = scmp.ne.s32.totalorder %s422, %s436
    %p438 = scmp.eq.s32.totalorder %s40, 0
    %p439 = por %p437, %p438
    %s441 = sadd.s32 %s440, 1
    %p444 = scmp.eq.s32.totalorder %s34, 1
    %p445 = scmp.ne.s32.totalorder %s440, %s442
    %p446 = scmp.eq.s32.totalorder %s34, 0
    %p447 = por %p445, %p446
    %p448 = scmp.ne.s32.totalorder %s440, %s442
    %p449 = scmp.eq.s32.totalorder %s39, 1
    %p450 = por %p448, %p449
    %p451 = scmp.ne.s32.totalorder %s442, %s443
    %p452 = scmp.eq.s32.totalorder %s39, 0
    %p453 = por %p451, %p452
    %p454 = scmp.ne.s32.totalorder %s442, %s443
    %p455 = scmp.eq.s32.totalorder %s40, 1
    %p456 = por %p454, %p455
    %p458 = scmp.ne.s32.totalorder %s443, %s457
    %p459 = scmp.eq.s32.totalorder %s40, 0
    %p460 = por %p458, %p459
    %s462 = sadd.s32 %s461, 1
    %p465 = scmp.eq.s32.totalorder %s34, 1
    %p466 = scmp.ne.s32.totalorder %s461, %s463
    %p467 = scmp.eq.s32.totalorder %s34, 0
    %p468 = por %p466, %p467
    %p469 = scmp.ne.s32.totalorder %s461, %s463
    %p470 = scmp.eq.s32.totalorder %s39, 1
    %p471 = por %p469, %p470
    %p472 = scmp.ne.s32.totalorder %s463, %s464
    %p473 = scmp.eq.s32.totalorder %s39, 0
    %p474 = por %p472, %p473
    %p475 = scmp.ne.s32.totalorder %s463, %s464
    %p476 = scmp.eq.s32.totalorder %s40, 1
    %p477 = por %p475, %p476
    %p479 = scmp.ne.s32.totalorder %s464, %s478
    %p480 = scmp.eq.s32.totalorder %s40, 0
    %p481 = por %p479, %p480
    %s483 = sadd.s32 %s482, 1
    %p486 = scmp.eq.s32.totalorder %s34, 1
    %p487 = scmp.ne.s32.totalorder %s482, %s484
    %p488 = scmp.eq.s32.totalorder %s34, 0
    %p489 = por %p487, %p488
    %p490 = scmp.ne.s32.totalorder %s482, %s484
    %p491 = scmp.eq.s32.totalorder %s39, 1
    %p492 = por %p490, %p491
    %p493 = scmp.ne.s32.totalorder %s484, %s485
    %p494 = scmp.eq.s32.totalorder %s39, 0
    %p495 = por %p493, %p494
    %p496 = scmp.ne.s32.totalorder %s484, %s485
    %p497 = scmp.eq.s32.totalorder %s40, 1
    %p498 = por %p496, %p497
    %p500 = scmp.ne.s32.totalorder %s485, %s499
    %p501 = scmp.eq.s32.totalorder %s40, 0
    %p502 = por %p500, %p501
    %s504 = sadd.s32 %s503, 1
    %p507 = scmp.eq.s32.totalorder %s34, 1
    %p508 = scmp.ne.s32.totalorder %s503, %s505
    %p509 = scmp.eq.s32.totalorder %s34, 0
    %p510 = por %p508, %p509
    %p511 = scmp.ne.s32.totalorder %s503, %s505
    %p512 = scmp.eq.s32.totalorder %s39, 1
    %p513 = por %p511, %p512
    %p514 = scmp.ne.s32.totalorder %s505, %s506
    %p515 = scmp.eq.s32.totalorder %s39, 0
    %p516 = por %p514, %p515
    %p517 = scmp.ne.s32.totalorder %s505, %s506
    %p518 = scmp.eq.s32.totalorder %s40, 1
    %p519 = por %p517, %p518
    %p521 = scmp.ne.s32.totalorder %s506, %s520
    %p522 = scmp.eq.s32.totalorder %s40, 0
    %p523 = por %p521, %p522
    %s525 = sadd.s32 %s524, 1
    %p528 = scmp.eq.s32.totalorder %s34, 1
    %p529 = scmp.ne.s32.totalorder %s524, %s526
    %p530 = scmp.eq.s32.totalorder %s34, 0
    %p531 = por %p529, %p530
    %p532 = scmp.ne.s32.totalorder %s524, %s526
    %p533 = scmp.eq.s32.totalorder %s39, 1
    %p534 = por %p532, %p533
    %p535 = scmp.ne.s32.totalorder %s526, %s527
    %p536 = scmp.eq.s32.totalorder %s39, 0
    %p537 = por %p535, %p536
    %p538 = scmp.ne.s32.totalorder %s526, %s527
    %p539 = scmp.eq.s32.totalorder %s40, 1
    %p540 = por %p538, %p539
    %p542 = scmp.ne.s32.totalorder %s527, %s541
    %p543 = scmp.eq.s32.totalorder %s40, 0
    %p544 = por %p542, %p543
    %s546 = sadd.s32 %s545, 1
    %p549 = scmp.eq.s32.totalorder %s34, 1
    %p550 = scmp.ne.s32.totalorder %s545, %s547
    %p551 = scmp.eq.s32.totalorder %s34, 0
    %p552 = por %p550, %p551
    %p553 = scmp.ne.s32.totalorder %s545, %s547
    %p554 = scmp.eq.s32.totalorder %s39, 1
    %p555 = por %p553, %p554
    %p556 = scmp.ne.s32.totalorder %s547, %s548
    %p557 = scmp.eq.s32.totalorder %s39, 0
    %p558 = por %p556, %p557
    %p559 = scmp.ne.s32.totalorder %s547, %s548
    %p560 = scmp.eq.s32.totalorder %s40, 1
    %p561 = por %p559, %p560
    %p563 = scmp.ne.s32.totalorder %s548, %s562
    %p564 = scmp.eq.s32.totalorder %s40, 0
    %p565 = por %p563, %p564
    %s567 = sadd.s32 %s566, 1
    %p570 = scmp.eq.s32.totalorder %s34, 1
    %p571 = scmp.ne.s32.totalorder %s566, %s568
    %p572 = scmp.eq.s32.totalorder %s34, 0
    %p573 = por %p571, %p572
    %p574 = scmp.ne.s32.totalorder %s566, %s568
    %p575 = scmp.eq.s32.totalorder %s39, 1
    %p576 = por %p574, %p575
    %p577 = scmp.ne.s32.totalorder %s568, %s569
    %p578 = scmp.eq.s32.totalorder %s39, 0
    %p579 = por %p577, %p578
    %p580 = scmp.ne.s32.totalorder %s568, %s569
    %p581 = scmp.eq.s32.totalorder %s40, 1
    %p582 = por %p580, %p581
    %p584 = scmp.ne.s32.totalorder %s569, %s583
    %p585 = scmp.eq.s32.totalorder %s40, 0
    %p586 = por %p584, %p585
    %s588 = sadd.s32 %s587, 1
    %p591 = scmp.eq.s32.totalorder %s34, 1
    %p592 = scmp.ne.s32.totalorder %s587, %s589
    %p593 = scmp.eq.s32.totalorder %s34, 0
    %p594 = por %p592, %p593
    %p595 = scmp.ne.s32.totalorder %s587, %s589
    %p596 = scmp.eq.s32.totalorder %s39, 1
    %p597 = por %p595, %p596
    %p598 = scmp.ne.s32.totalorder %s589, %s590
    %p599 = scmp.eq.s32.totalorder %s39, 0
    %p600 = por %p598, %p599
    %p601 = scmp.ne.s32.totalorder %s589, %s590
    %p602 = scmp.eq.s32.totalorder %s40, 1
    %p603 = por %p601, %p602
    %p605 = scmp.ne.s32.totalorder %s590, %s604
    %p606 = scmp.eq.s32.totalorder %s40, 0
    %p607 = por %p605, %p606
    %s609 = sadd.s32 %s608, 1
    %p612 = scmp.eq.s32.totalorder %s34, 1
    %p613 = scmp.ne.s32.totalorder %s608, %s610
    %p614 = scmp.eq.s32.totalorder %s34, 0
    %p615 = por %p613, %p614
    %p616 = scmp.ne.s32.totalorder %s608, %s610
    %p617 = scmp.eq.s32.totalorder %s39, 1
    %p618 = por %p616, %p617
    %p619 = scmp.ne.s32.totalorder %s610, %s611
    %p620 = scmp.eq.s32.totalorder %s39, 0
    %p621 = por %p619, %p620
    %p622 = scmp.ne.s32.totalorder %s610, %s611
    %p623 = scmp.eq.s32.totalorder %s40, 1
    %p624 = por %p622, %p623
    %p626 = scmp.ne.s32.totalorder %s611, %s625
    %p627 = scmp.eq.s32.totalorder %s40, 0
    %p628 = por %p626, %p627
    %s630 = sadd.s32 %s629, 1
    %p633 = scmp.eq.s32.totalorder %s34, 1
    %p634 = scmp.ne.s32.totalorder %s629, %s631
    %p635 = scmp.eq.s32.totalorder %s34, 0
    %p636 = por %p634, %p635
    %p637 = scmp.ne.s32.totalorder %s629, %s631
    %p638 = scmp.eq.s32.totalorder %s39, 1
    %p639 = por %p637, %p638
    %p640 = scmp.ne.s32.totalorder %s631, %s632
    %p641 = scmp.eq.s32.totalorder %s39, 0
    %p642 = por %p640, %p641
    %p643 = scmp.ne.s32.totalorder %s631, %s632
    %p644 = scmp.eq.s32.totalorder %s40, 1
    %p645 = por %p643, %p644
    %p647 = scmp.ne.s32.totalorder %s632, %s646
    %p648 = scmp.eq.s32.totalorder %s40, 0
    %p649 = por %p647, %p648
    %s650 = ssub.s32 %s34, %s41
    %p651 = scmp.eq.s32.totalorder %s650, 0
    %s653 = sadd.s32 %s652, 1
    %s654 = scalar_select %p651, %s652, %s653
    %p657 = pneg %p651
    %p658 = scmp.eq.s32.totalorder %s34, 1
    %p659 = por %p657, %p658
    %p660 = scmp.ne.s32.totalorder %s652, %s655
    %p661 = scmp.eq.s32.totalorder %s34, 0
    %p662 = por %p660, %p661
    %p663 = scmp.ne.s32.totalorder %s652, %s655
    %p664 = scmp.eq.s32.totalorder %s39, 1
    %p665 = por %p663, %p664
    %p666 = scmp.ne.s32.totalorder %s655, %s656
    %p667 = scmp.eq.s32.totalorder %s39, 0
    %p668 = por %p666, %p667
    %p669 = scmp.ne.s32.totalorder %s655, %s656
    %p670 = scmp.eq.s32.totalorder %s40, 1
    %p671 = por %p669, %p670
    %p673 = scmp.ne.s32.totalorder %s656, %s672
    %p674 = scmp.eq.s32.totalorder %s40, 0
    %p675 = por %p673, %p674
    %p676 = scmp.le.s32.totalorder 1, %s34
    %p677 = scmp.lt.s32.totalorder %s34, 3
    %p678 = pnand %p676, %p677
    %p679 = pneg %p678
    // Predicated region
    $region9: #{transformer_decoder_layer_forward.1} parent=5 // pred_check
      _
    $region10: #{transformer_decoder_layer_forward.1} parent=5 // pred_check_branch
      %681 = sbr.rel (%p678) target = $region12
    $region11: #{transformer_decoder_layer_forward.1} parent=5 // pred_region
      %s682 = ssub.s32 %s34, 1
      // Predicated region
      $region13: #{transformer_decoder_layer_forward.1} parent=11 // pred_check
        %p683 = pneg %p159
      $region14: #{transformer_decoder_layer_forward.1} parent=11 // pred_check_branch
        %685 = sbr.rel (%p683) target = $region16
      $region15: #{transformer_decoder_layer_forward.1} parent=11 // pred_region
        _
      $region16: #{transformer_decoder_layer_forward.1} parent=11 // pred_fallthru
        _
      // Predicated region
      $region17: #{transformer_decoder_layer_forward.1} parent=11 // pred_check
        %p686 = pneg %p180
      $region18: #{transformer_decoder_layer_forward.1} parent=11 // pred_check_branch
        %688 = sbr.rel (%p686) target = $region20
      $region19: #{transformer_decoder_layer_forward.1} parent=11 // pred_region
        _
      $region20: #{transformer_decoder_layer_forward.1} parent=11 // pred_fallthru
        _
      // Predicated region
      $region21: #{transformer_decoder_layer_forward.1} parent=11 // pred_check
        %p689 = pneg %p201
      $region22: #{transformer_decoder_layer_forward.1} parent=11 // pred_check_branch
        %691 = sbr.rel (%p689) target = $region24
      $region23: #{transformer_decoder_layer_forward.1} parent=11 // pred_region
        _
      $region24: #{transformer_decoder_layer_forward.1} parent=11 // pred_fallthru
        _
      // Predicated region
      $region25: #{transformer_decoder_layer_forward.1} parent=11 // pred_check
        %p692 = pneg %p222
      $region26: #{transformer_decoder_layer_forward.1} parent=11 // pred_check_branch
        %694 = sbr.rel (%p692) target = $region28
      $region27: #{transformer_decoder_layer_forward.1} parent=11 // pred_region
        _
      $region28: #{transformer_decoder_layer_forward.1} parent=11 // pred_fallthru
        _
      // Predicated region
      $region29: #{transformer_decoder_layer_forward.1} parent=11 // pred_check
        %p695 = pneg %p243
      $region30: #{transformer_decoder_layer_forward.1} parent=11 // pred_check_branch
        %697 = sbr.rel (%p695) target = $region32
      $region31: #{transformer_decoder_layer_forward.1} parent=11 // pred_region
        _
      $region32: #{transformer_decoder_layer_forward.1} parent=11 // pred_fallthru
        _
      // Predicated region
      $region33: #{transformer_decoder_layer_forward.1} parent=11 // pred_check
        %p698 = pneg %p264
      $region34: #{transformer_decoder_layer_forward.1} parent=11 // pred_check_branch
        %700 = sbr.rel (%p698) target = $region36
      $region35: #{transformer_decoder_layer_forward.1} parent=11 // pred_region
        _
      $region36: #{transformer_decoder_layer_forward.1} parent=11 // pred_fallthru
        _
      // Predicated region
      $region37: #{transformer_decoder_layer_forward.1} parent=11 // pred_check
        %p701 = pneg %p285
      $region38: #{transformer_decoder_layer_forward.1} parent=11 // pred_check_branch
        %703 = sbr.rel (%p701) target = $region40
      $region39: #{transformer_decoder_layer_forward.1} parent=11 // pred_region
        _
      $region40: #{transformer_decoder_layer_forward.1} parent=11 // pred_fallthru
        _
      // Predicated region
      $region41: #{transformer_decoder_layer_forward.1} parent=11 // pred_check
        %p704 = pneg %p306
      $region42: #{transformer_decoder_layer_forward.1} parent=11 // pred_check_branch
        %706 = sbr.rel (%p704) target = $region44
      $region43: #{transformer_decoder_layer_forward.1} parent=11 // pred_region
        _
      $region44: #{transformer_decoder_layer_forward.1} parent=11 // pred_fallthru
        _
      // Predicated region
      $region45: #{transformer_decoder_layer_forward.1} parent=11 // pred_check
        %p707 = pneg %p327
      $region46: #{transformer_decoder_layer_forward.1} parent=11 // pred_check_branch
        %709 = sbr.rel (%p707) target = $region48
      $region47: #{transformer_decoder_layer_forward.1} parent=11 // pred_region
        _
      $region48: #{transformer_decoder_layer_forward.1} parent=11 // pred_fallthru
        _
      // Predicated region
      $region49: #{transformer_decoder_layer_forward.1} parent=11 // pred_check
        %p710 = pneg %p348
      $region50: #{transformer_decoder_layer_forward.1} parent=11 // pred_check_branch
        %712 = sbr.rel (%p710) target = $region52
      $region51: #{transformer_decoder_layer_forward.1} parent=11 // pred_region
        _
      $region52: #{transformer_decoder_layer_forward.1} parent=11 // pred_fallthru
        _
      // Predicated region
      $region53: #{transformer_decoder_layer_forward.1} parent=11 // pred_check
        %p713 = pneg %p369
      $region54: #{transformer_decoder_layer_forward.1} parent=11 // pred_check_branch
        %715 = sbr.rel (%p713) target = $region56
      $region55: #{transformer_decoder_layer_forward.1} parent=11 // pred_region
        _
      $region56: #{transformer_decoder_layer_forward.1} parent=11 // pred_fallthru
        _
      // Predicated region
      $region57: #{transformer_decoder_layer_forward.1} parent=11 // pred_check
        %p716 = pneg %p390
      $region58: #{transformer_decoder_layer_forward.1} parent=11 // pred_check_branch
        %718 = sbr.rel (%p716) target = $region60
      $region59: #{transformer_decoder_layer_forward.1} parent=11 // pred_region
        _
      $region60: #{transformer_decoder_layer_forward.1} parent=11 // pred_fallthru
        _
      // Predicated region
      $region61: #{transformer_decoder_layer_forward.1} parent=11 // pred_check
        %p719 = pneg %p411
      $region62: #{transformer_decoder_layer_forward.1} parent=11 // pred_check_branch
        %721 = sbr.rel (%p719) target = $region64
      $region63: #{transformer_decoder_layer_forward.1} parent=11 // pred_region
        _
      $region64: #{transformer_decoder_layer_forward.1} parent=11 // pred_fallthru
        _
      // Predicated region
      $region65: #{transformer_decoder_layer_forward.1} parent=11 // pred_check
        %p722 = pneg %p432
      $region66: #{transformer_decoder_layer_forward.1} parent=11 // pred_check_branch
        %724 = sbr.rel (%p722) target = $region68
      $region67: #{transformer_decoder_layer_forward.1} parent=11 // pred_region
        _
      $region68: #{transformer_decoder_layer_forward.1} parent=11 // pred_fallthru
        _
      // Predicated region
      $region69: #{transformer_decoder_layer_forward.1} parent=11 // pred_check
        %p725 = pneg %p453
      $region70: #{transformer_decoder_layer_forward.1} parent=11 // pred_check_branch
        %727 = sbr.rel (%p725) target = $region72
      $region71: #{transformer_decoder_layer_forward.1} parent=11 // pred_region
        _
      $region72: #{transformer_decoder_layer_forward.1} parent=11 // pred_fallthru
        _
      // Predicated region
      $region73: #{transformer_decoder_layer_forward.1} parent=11 // pred_check
        %p728 = pneg %p474
      $region74: #{transformer_decoder_layer_forward.1} parent=11 // pred_check_branch
        %730 = sbr.rel (%p728) target = $region76
      $region75: #{transformer_decoder_layer_forward.1} parent=11 // pred_region
        _
      $region76: #{transformer_decoder_layer_forward.1} parent=11 // pred_fallthru
        _
      // Predicated region
      $region77: #{transformer_decoder_layer_forward.1} parent=11 // pred_check
        %p731 = pneg %p495
      $region78: #{transformer_decoder_layer_forward.1} parent=11 // pred_check_branch
        %733 = sbr.rel (%p731) target = $region80
      $region79: #{transformer_decoder_layer_forward.1} parent=11 // pred_region
        _
      $region80: #{transformer_decoder_layer_forward.1} parent=11 // pred_fallthru
        _
      // Predicated region
      $region81: #{transformer_decoder_layer_forward.1} parent=11 // pred_check
        %p734 = pneg %p516
      $region82: #{transformer_decoder_layer_forward.1} parent=11 // pred_check_branch
        %736 = sbr.rel (%p734) target = $region84
      $region83: #{transformer_decoder_layer_forward.1} parent=11 // pred_region
        _
      $region84: #{transformer_decoder_layer_forward.1} parent=11 // pred_fallthru
        _
      // Predicated region
      $region85: #{transformer_decoder_layer_forward.1} parent=11 // pred_check
        %p737 = pneg %p537
      $region86: #{transformer_decoder_layer_forward.1} parent=11 // pred_check_branch
        %739 = sbr.rel (%p737) target = $region88
      $region87: #{transformer_decoder_layer_forward.1} parent=11 // pred_region
        _
      $region88: #{transformer_decoder_layer_forward.1} parent=11 // pred_fallthru
        _
      // Predicated region
      $region89: #{transformer_decoder_layer_forward.1} parent=11 // pred_check
        %p740 = pneg %p558
      $region90: #{transformer_decoder_layer_forward.1} parent=11 // pred_check_branch
        %742 = sbr.rel (%p740) target = $region92
      $region91: #{transformer_decoder_layer_forward.1} parent=11 // pred_region
        _
      $region92: #{transformer_decoder_layer_forward.1} parent=11 // pred_fallthru
        _
      // Predicated region
      $region93: #{transformer_decoder_layer_forward.1} parent=11 // pred_check
        %p743 = pneg %p579
      $region94: #{transformer_decoder_layer_forward.1} parent=11 // pred_check_branch
        %745 = sbr.rel (%p743) target = $region96
      $region95: #{transformer_decoder_layer_forward.1} parent=11 // pred_region
        _
      $region96: #{transformer_decoder_layer_forward.1} parent=11 // pred_fallthru
        _
      // Predicated region
      $region97: #{transformer_decoder_layer_forward.1} parent=11 // pred_check
        %p746 = pneg %p600
      $region98: #{transformer_decoder_layer_forward.1} parent=11 // pred_check_branch
        %748 = sbr.rel (%p746) target = $region100
      $region99: #{transformer_decoder_layer_forward.1} parent=11 // pred_region
        _
      $region100: #{transformer_decoder_layer_forward.1} parent=11 // pred_fallthru
        _
      // Predicated region
      $region101: #{transformer_decoder_layer_forward.1} parent=11 // pred_check
        %p749 = pneg %p621
      $region102: #{transformer_decoder_layer_forward.1} parent=11 // pred_check_branch
        %751 = sbr.rel (%p749) target = $region104
      $region103: #{transformer_decoder_layer_forward.1} parent=11 // pred_region
        _
      $region104: #{transformer_decoder_layer_forward.1} parent=11 // pred_fallthru
        _
      // Predicated region
      $region105: #{transformer_decoder_layer_forward.1} parent=11 // pred_check
        %p752 = pneg %p642
      $region106: #{transformer_decoder_layer_forward.1} parent=11 // pred_check_branch
        %754 = sbr.rel (%p752) target = $region108
      $region107: #{transformer_decoder_layer_forward.1} parent=11 // pred_region
        _
      $region108: #{transformer_decoder_layer_forward.1} parent=11 // pred_fallthru
        _
    $region12: #{transformer_decoder_layer_forward.1} parent=5 // pred_fallthru
      _
    %p755 = scmp.lt.s32.totalorder %s34, 2
    // Predicated region
    $region109: #{transformer_decoder_layer_forward.1} parent=5 // pred_check
      %p756 = pneg %p755
    $region110: #{transformer_decoder_layer_forward.1} parent=5 // pred_check_branch
      %758 = sbr.rel (%p756) target = $region112
    $region111: #{transformer_decoder_layer_forward.1} parent=5 // pred_region
      // Predicated region
      $region113: #{transformer_decoder_layer_forward.1} parent=111 // pred_check
        %p759 = pneg %p54
      $region114: #{transformer_decoder_layer_forward.1} parent=111 // pred_check_branch
        %761 = sbr.rel (%p759) target = $region116
      $region115: #{transformer_decoder_layer_forward.1} parent=111 // pred_region
        %p762 = scmp.lt.s32.totalorder %s34, 1
        %s763 = scalar_select %p762, %s34, 1
        %s764 = smul.addr %s763, 8
        %s765 = scalar_lea.vmem %s0, %s764
      $region116: #{transformer_decoder_layer_forward.1} parent=111 // pred_fallthru
        _
      // Predicated region
      $region117: #{transformer_decoder_layer_forward.1} parent=111 // pred_check
        %p766 = pneg %p80
      $region118: #{transformer_decoder_layer_forward.1} parent=111 // pred_check_branch
        %768 = sbr.rel (%p766) target = $region120
      $region119: #{transformer_decoder_layer_forward.1} parent=111 // pred_region
        %p769 = scmp.lt.s32.totalorder %s34, 1
        %s770 = scalar_select %p769, %s34, 1
        %s771 = smul.addr %s770, 8
        %s772 = scalar_lea.vmem %s1, %s771
      $region120: #{transformer_decoder_layer_forward.1} parent=111 // pred_fallthru
        _
      // Predicated region
      $region121: #{transformer_decoder_layer_forward.1} parent=111 // pred_check
        %p773 = pneg %p106
      $region122: #{transformer_decoder_layer_forward.1} parent=111 // pred_check_branch
        %775 = sbr.rel (%p773) target = $region124
      $region123: #{transformer_decoder_layer_forward.1} parent=111 // pred_region
        %p776 = scmp.lt.s32.totalorder %s34, 1
        %s777 = scalar_select %p776, %s34, 1
        %s778 = smul.addr %s777, 3
        %s779 = smul.addr %s778, 4
        %s780 = scalar_lea.vmem %s2, %s779
      $region124: #{transformer_decoder_layer_forward.1} parent=111 // pred_fallthru
        _
      // Predicated region
      $region125: #{transformer_decoder_layer_forward.1} parent=111 // pred_check
        %p781 = pneg %p132
      $region126: #{transformer_decoder_layer_forward.1} parent=111 // pred_check_branch
        %783 = sbr.rel (%p781) target = $region128
      $region127: #{transformer_decoder_layer_forward.1} parent=111 // pred_region
        %p784 = scmp.lt.s32.totalorder %s34, 1
        %s785 = scalar_select %p784, %s34, 1
        %s786 = smul.addr %s785, 3
        %s787 = smul.addr %s786, 4
        %s788 = scalar_lea.vmem %s3, %s787
      $region128: #{transformer_decoder_layer_forward.1} parent=111 // pred_fallthru
        _
    $region112: #{transformer_decoder_layer_forward.1} parent=5 // pred_fallthru
      _
    %p789 = scmp.le.s32.totalorder 1, %s34
    %p790 = scmp.lt.s32.totalorder %s34, 3
    %p791 = pnand %p789, %p790
    %p792 = pneg %p791
    // Predicated region
    $region129: #{transformer_decoder_layer_forward.1} parent=5 // pred_check
      _
    $region130: #{transformer_decoder_layer_forward.1} parent=5 // pred_check_branch
      %794 = sbr.rel (%p791) target = $region132
    $region131: #{transformer_decoder_layer_forward.1} parent=5 // pred_region
      %s795 = ssub.s32 %s34, 1
      %p796 = scmp.lt.s32.totalorder %s39, 1
      %s797 = scalar_select %p796, %s39, 1
      %s798 = smul.addr %s797, 8
      %s799 = scalar_lea.vmem %s0, %s798
      %p800 = pneg %p60
      %p801 = pneg %p57
      %p802 = scmp.lt.s32.totalorder %s39, 1
      %s803 = scalar_select %p802, %s39, 1
      %s804 = smul.addr %s803, 8
      %s805 = scalar_lea.vmem %s1, %s804
      %p806 = pneg %p86
      %p807 = pneg %p83
      %p808 = scmp.lt.s32.totalorder %s39, 1
      %s809 = scalar_select %p808, %s39, 1
      %s810 = smul.addr %s809, 3
      %s811 = smul.addr %s810, 4
      %s812 = scalar_lea.vmem %s2, %s811
      %p813 = pneg %p112
      %p814 = pneg %p109
      %p815 = scmp.lt.s32.totalorder %s39, 1
      %s816 = scalar_select %p815, %s39, 1
      %s817 = smul.addr %s816, 3
      %s818 = smul.addr %s817, 4
      %s819 = scalar_lea.vmem %s3, %s818
      %p820 = pneg %p138
      %p821 = pneg %p135
      %p822 = pneg %p159
      %p823 = pneg %p156
      %p824 = pneg %p180
      %p825 = pneg %p177
      %p826 = pneg %p201
      %p827 = pneg %p198
      %p828 = pneg %p222
      %p829 = pneg %p219
      %p830 = pneg %p243
      %p831 = pneg %p240
      %p832 = pneg %p264
      %p833 = pneg %p261
      %p834 = pneg %p285
      %p835 = pneg %p282
      %p836 = pneg %p306
      %p837 = pneg %p303
      %p838 = pneg %p327
      %p839 = pneg %p324
      %p840 = pneg %p348
      %p841 = pneg %p345
      %p842 = pneg %p369
      %p843 = pneg %p366
      %p844 = pneg %p390
      %p845 = pneg %p387
      %p846 = pneg %p411
      %p847 = pneg %p408
      %p848 = pneg %p432
      %p849 = pneg %p429
      %p850 = pneg %p453
      %p851 = pneg %p450
      %p852 = pneg %p474
      %p853 = pneg %p471
      %p854 = pneg %p495
      %p855 = pneg %p492
      %p856 = pneg %p516
      %p857 = pneg %p513
      %p858 = pneg %p537
      %p859 = pneg %p534
      %p860 = pneg %p558
      %p861 = pneg %p555
      %p862 = pneg %p579
      %p863 = pneg %p576
      %p864 = pneg %p600
      %p865 = pneg %p597
      %p866 = pneg %p621
      %p867 = pneg %p618
      %p868 = pneg %p642
      %p869 = pneg %p639
      %p870 = pneg %p668
      %p871 = pneg %p665
      %p872 = scmp.lt.s32.totalorder %s39, 1
      %s873 = scalar_select %p872, %s39, 1
      %s874 = smul.addr %s873, 8
      %s875 = scalar_lea.vmem %s28, %s874
      %p876 = scmp.lt.s32.totalorder %s39, 1
      %s877 = scalar_select %p876, %s39, 1
      %s878 = smul.addr %s877, 8
      %s879 = scalar_lea.vmem %s0, %s878
      %p880 = scmp.lt.s32.totalorder %s39, 1
      %s881 = scalar_select %p880, %s39, 1
      %s882 = smul.addr %s881, 8
      %s883 = scalar_lea.vmem %s1, %s882
      %p884 = scmp.lt.s32.totalorder %s39, 1
      %s885 = scalar_select %p884, %s39, 1
      %s886 = smul.addr %s885, 3
      %s887 = smul.addr %s886, 4
      %s888 = scalar_lea.vmem %s2, %s887
      %p889 = scmp.lt.s32.totalorder %s39, 1
      %s890 = scalar_select %p889, %s39, 1
      %s891 = smul.addr %s890, 3
      %s892 = smul.addr %s891, 4
      %s893 = scalar_lea.vmem %s3, %s892
      %p894 = scmp.lt.s32.totalorder %s39, 1
      %s895 = scalar_select %p894, %s39, 1
      %s896 = smul.addr %s895, 8
      %s897 = scalar_lea.vmem %s28, %s896
      %v899 = vld [vmem:[%s879] sm:$0xff]
      %v900 = vld [vmem:[%s883] sm:$0xff]
      %v901 = vld [vmem:[%s888] sm:$0xf]
      %v902 = vld [vmem:[%s888 + $0x4] sm:$0xf]
      %v903 = vld [vmem:[%s888 + $0x8] sm:$0xf]
      %v904 = vld [vmem:[%s893] sm:$0xf]
      %v905 = vld [vmem:[%s893 + $0x4] sm:$0xf]
      %v906 = vld [vmem:[%s893 + $0x8] sm:$0xf]
      %v907 = vadd.f32 %v899, %v900
      %v908 = vpack.c.bf16 %v907, %v907
      %v909 = vld [vmem:[%s4] sm:$0xf]
      %v910 = vld [vmem:[%s4 + $0x4] sm:$0xf]
      %v911 = vld [vmem:[%s4 + $0x8] sm:$0xf]
      %v912 = vld [vmem:[%s4 + $0xc] sm:$0xf]
      %v913 = vld [vmem:[%s5] sm:$0x1]
      %v915 = vlaneseq
      %v916 = vshrl.u32 %v915, 7
      %v917 = vsub.s32 0, %v916
      %v918 = vrot.slane %v913, %v917
      %v924 = vunpack.c.l.b16 %v909
      %v925 = vunpack.c.l.b16 %v910
      %v926 = vunpack.c.l.b16 %v911
      %v927 = vunpack.c.l.b16 %v912
      %v928 = vpack.c.b16 %v925, %v924
      %v929 = vpack.c.b16 %v927, %v926
      %vm932 = vcmask 261120
      %v934 = vsel %vm932, %v908, 0
      %936 = vmatprep.subr.bf16.mxu0 0
      %937 = vmatpush1.bf16.msra.mxu0 0
      %938 = vmatprep.subr.bf16.mxu0 0
      %939 = vmatpush1.bf16.msra.mxu0 0
      %940 = vmatprep.subr.bf16.mxu0 0
      %941 = vmatpush1.bf16.msra.mxu0 0
      %942 = vmatprep.subr.bf16.mxu0 0
      %943 = vmatpush1.bf16.msra.mxu0 0
      %944 = vmatprep.subr.bf16.mxu0 0
      %945 = vmatpush1.bf16.msra.mxu0 0
      %946 = vmatprep.subr.bf16.mxu0 0
      %947 = vmatpush1.bf16.msra.mxu0 0
      %948 = vmatprep.subr.bf16.mxu0 0
      %949 = vmatpush1.bf16.msra.mxu0 %v929
      %950 = vmatprep.subr.bf16.mxu0 0
      %951 = vmatpush1.bf16.msra.mxu0 %v928
      %952 = vmatprep.subr.bf16.mxu0 0
      %953 = vmatpush2.bf16.msra.mxu0 0
      %954 = vmatprep.subr.bf16.mxu0 0
      %955 = vmatpush2.bf16.msra.mxu0 0
      %956 = vmatprep.subr.bf16.mxu0 0
      %957 = vmatpush2.bf16.msra.mxu0 0
      %958 = vmatprep.subr.bf16.mxu0 0
      %959 = vmatpush2.bf16.msra.mxu0 0
      %960 = vmatprep.subr.bf16.mxu0 0
      %961 = vmatpush2.bf16.msra.mxu0 0
      %962 = vmatprep.subr.bf16.mxu0 0
      %963 = vmatpush2.bf16.msra.mxu0 0
      %964 = vmatprep.subr.bf16.mxu0 0
      %965 = vmatpush2.bf16.msra.mxu0 0
      %966 = vmatprep.subr.bf16.mxu0 0
      %967 = vmatpush2.bf16.msra.mxu0 0
      %968 = vmatprep.mubr.bf16.mxu0 0
      %969 = vmatmul.mubr.bf16.gmra.mxu0 %v934
      %v970 = vpop.f32.mrf.mxu0
      %v971 = vadd.f32 %v918, %v970
      %v972 = vpop.f32.mrf.mxu0
      %v973 = vpop.f32.mrf.mxu0
      %v974 = vpop.f32.mrf.mxu0
      %975 = vdwg.mxu0
      %v976 = vpack.c.bf16 %v899, %v899
      %v977 = vld [vmem:[%s6] sm:$0xf]
      %v978 = vld [vmem:[%s6 + $0x4] sm:$0xf]
      %v979 = vld [vmem:[%s6 + $0x8] sm:$0xf]
      %v980 = vld [vmem:[%s6 + $0xc] sm:$0xf]
      %v981 = vld [vmem:[%s7] sm:$0x1]
      %v983 = vlaneseq
      %v984 = vshrl.u32 %v983, 7
      %v985 = vsub.s32 0, %v984
      %v986 = vrot.slane %v981, %v985
      %v992 = vunpack.c.l.b16 %v977
      %v993 = vunpack.c.l.b16 %v978
      %v994 = vunpack.c.l.b16 %v979
      %v995 = vunpack.c.l.b16 %v980
      %v996 = vpack.c.b16 %v993, %v992
      %v997 = vpack.c.b16 %v995, %v994
      %v1001 = vsel %vm932, %v976, 0
      %1003 = vmatprep.subr.bf16.mxu0 0
      %1004 = vmatpush1.bf16.msra.mxu0 0
      %1005 = vmatprep.subr.bf16.mxu0 0
      %1006 = vmatpush1.bf16.msra.mxu0 0
      %1007 = vmatprep.subr.bf16.mxu0 0
      %1008 = vmatpush1.bf16.msra.mxu0 0
      %1009 = vmatprep.subr.bf16.mxu0 0
      %1010 = vmatpush1.bf16.msra.mxu0 0
      %1011 = vmatprep.subr.bf16.mxu0 0
      %1012 = vmatpush1.bf16.msra.mxu0 0
      %1013 = vmatprep.subr.bf16.mxu0 0
      %1014 = vmatpush1.bf16.msra.mxu0 0
      %1015 = vmatprep.subr.bf16.mxu0 0
      %1016 = vmatpush1.bf16.msra.mxu0 %v997
      %1017 = vmatprep.subr.bf16.mxu0 0
      %1018 = vmatpush1.bf16.msra.mxu0 %v996
      %1019 = vmatprep.subr.bf16.mxu0 0
      %1020 = vmatpush2.bf16.msra.mxu0 0
      %1021 = vmatprep.subr.bf16.mxu0 0
      %1022 = vmatpush2.bf16.msra.mxu0 0
      %1023 = vmatprep.subr.bf16.mxu0 0
      %1024 = vmatpush2.bf16.msra.mxu0 0
      %1025 = vmatprep.subr.bf16.mxu0 0
      %1026 = vmatpush2.bf16.msra.mxu0 0
      %1027 = vmatprep.subr.bf16.mxu0 0
      %1028 = vmatpush2.bf16.msra.mxu0 0
      %1029 = vmatprep.subr.bf16.mxu0 0
      %1030 = vmatpush2.bf16.msra.mxu0 0
      %1031 = vmatprep.subr.bf16.mxu0 0
      %1032 = vmatpush2.bf16.msra.mxu0 0
      %1033 = vmatprep.subr.bf16.mxu0 0
      %1034 = vmatpush2.bf16.msra.mxu0 0
      %1035 = vmatprep.mubr.bf16.mxu0 0
      %1036 = vmatmul.mubr.bf16.gmra.mxu0 %v1001
      %v1037 = vpop.f32.mrf.mxu0
      %v1038 = vadd.f32 %v986, %v1037
      %v1039 = vpop.f32.mrf.mxu0
      %v1040 = vpop.f32.mrf.mxu0
      %v1041 = vpop.f32.mrf.mxu0
      %1042 = vdwg.mxu0
      %1044 = vrot.lane.b32.xlu0 %v971, 120
      %v1045 = vpop.permute.xlu0 %1044
      %1047 = vrot.lane.b32.xlu0 %v971, 112
      %v1048 = vpop.permute.xlu0 %1047
      %1050 = vrot.lane.b32.xlu0 %v971, 104
      %v1051 = vpop.permute.xlu0 %1050
      %v1053 = vcombine.low %v971, %v1048
      %v1054 = vcombine.high %v971, %v1048
      %v1056 = vunpack.c.l.s4 1983009808
      %v1057 = vunpack.c.0.s8 %v1056
      %v1058 = vlaneseq
      %v1059 = vshrl.u32 %v1058, 7
      %v1060 = vsub.s32 %v1057, %v1059
      %v1061 = vrot.slane %v1053, %v1060
      %v1063 = vunpack.c.l.s4 1983009808
      %v1064 = vunpack.c.0.s8 %v1063
      %v1065 = vlaneseq
      %v1066 = vshrl.u32 %v1065, 7
      %v1067 = vsub.s32 %v1064, %v1066
      %v1068 = vrot.slane %v1054, %v1067
      %v1069 = vcombine.low %v1045, %v1051
      %v1070 = vcombine.high %v1045, %v1051
      %v1072 = vunpack.c.l.s4 1983009808
      %v1073 = vunpack.c.0.s8 %v1072
      %v1074 = vlaneseq
      %v1075 = vshrl.u32 %v1074, 7
      %v1076 = vsub.s32 %v1073, %v1075
      %v1077 = vrot.slane %v1069, %v1076
      %v1079 = vunpack.c.l.s4 1983009808
      %v1080 = vunpack.c.0.s8 %v1079
      %v1081 = vlaneseq
      %v1082 = vshrl.u32 %v1081, 7
      %v1083 = vsub.s32 %v1080, %v1082
      %v1084 = vrot.slane %v1070, %v1083
      %v1085 = vcombine.low %v1061, %v1077
      %v1086 = vcombine.high %v1061, %v1077
      %v1088 = vunpack.c.l.s4 1934713408
      %v1089 = vunpack.c.0.s8 %v1088
      %v1090 = vlaneseq
      %v1091 = vshrl.u32 %v1090, 7
      %v1092 = vsub.s32 %v1089, %v1091
      %v1093 = vrot.slane %v1085, %v1092
      %v1095 = vunpack.c.l.s4 1934713408
      %v1096 = vunpack.c.0.s8 %v1095
      %v1097 = vlaneseq
      %v1098 = vshrl.u32 %v1097, 7
      %v1099 = vsub.s32 %v1096, %v1098
      %v1100 = vrot.slane %v1086, %v1099
      %v1101 = vcombine.low %v1068, %v1084
      %v1102 = vcombine.high %v1068, %v1084
      %v1104 = vunpack.c.l.s4 1934713408
      %v1105 = vunpack.c.0.s8 %v1104
      %v1106 = vlaneseq
      %v1107 = vshrl.u32 %v1106, 7
      %v1108 = vsub.s32 %v1105, %v1107
      %v1109 = vrot.slane %v1101, %v1108
      %v1111 = vunpack.c.l.s4 1934713408
      %v1112 = vunpack.c.0.s8 %v1111
      %v1113 = vlaneseq
      %v1114 = vshrl.u32 %v1113, 7
      %v1115 = vsub.s32 %v1112, %v1114
      %v1116 = vrot.slane %v1102, %v1115
      %v1117 = vcombine.high %v1093, 0.0
      %v1118 = vcombine.high %v1100, 0.0
      %v1119 = vcombine.high %v1109, 0.0
      %v1120 = vcombine.high %v1116, 0.0
      %v1121 = vcombine.low %v1093, %v1100
      %v1123 = vunpack.c.l.s4 1983009808
      %v1124 = vunpack.c.0.s8 %v1123
      %v1125 = vlaneseq
      %v1126 = vshrl.u32 %v1125, 7
      %v1127 = vsub.s32 %v1124, %v1126
      %v1128 = vrot.slane %v1121, %v1127
      %v1129 = vcombine.low %v1117, %v1118
      %v1131 = vunpack.c.l.s4 1983009808
      %v1132 = vunpack.c.0.s8 %v1131
      %v1133 = vlaneseq
      %v1134 = vshrl.u32 %v1133, 7
      %v1135 = vsub.s32 %v1132, %v1134
      %v1136 = vrot.slane %v1129, %v1135
      %v1137 = vcombine.low %v1109, %v1116
      %v1139 = vunpack.c.l.s4 1983009808
      %v1140 = vunpack.c.0.s8 %v1139
      %v1141 = vlaneseq
      %v1142 = vshrl.u32 %v1141, 7
      %v1143 = vsub.s32 %v1140, %v1142
      %v1144 = vrot.slane %v1137, %v1143
      %v1145 = vcombine.low %v1119, %v1120
      %v1147 = vunpack.c.l.s4 1983009808
      %v1148 = vunpack.c.0.s8 %v1147
      %v1149 = vlaneseq
      %v1150 = vshrl.u32 %v1149, 7
      %v1151 = vsub.s32 %v1148, %v1150
      %v1152 = vrot.slane %v1145, %v1151
      %v1153 = vcombine.low %v1128, %v1136
      %v1154 = vcombine.high %v1128, %v1136
      %v1156 = vunpack.c.l.s4 1934713408
      %v1157 = vunpack.c.0.s8 %v1156
      %v1158 = vlaneseq
      %v1159 = vshrl.u32 %v1158, 7
      %v1160 = vsub.s32 %v1157, %v1159
      %v1161 = vrot.slane %v1153, %v1160
      %v1163 = vunpack.c.l.s4 1934713408
      %v1164 = vunpack.c.0.s8 %v1163
      %v1165 = vlaneseq
      %v1166 = vshrl.u32 %v1165, 7
      %v1167 = vsub.s32 %v1164, %v1166
      %v1168 = vrot.slane %v1154, %v1167
      %v1169 = vcombine.low %v1144, %v1152
      %v1170 = vcombine.high %v1144, %v1152
      %v1172 = vunpack.c.l.s4 1934713408
      %v1173 = vunpack.c.0.s8 %v1172
      %v1174 = vlaneseq
      %v1175 = vshrl.u32 %v1174, 7
      %v1176 = vsub.s32 %v1173, %v1175
      %v1177 = vrot.slane %v1169, %v1176
      %v1179 = vunpack.c.l.s4 1934713408
      %v1180 = vunpack.c.0.s8 %v1179
      %v1181 = vlaneseq
      %v1182 = vshrl.u32 %v1181, 7
      %v1183 = vsub.s32 %v1180, %v1182
      %v1184 = vrot.slane %v1170, %v1183
      %v1185 = vcombine.low %v1161, %v1177
      %v1186 = vcombine.high %v1161, %v1177
      %v1187 = vcombine.low %v1168, %v1184
      %v1188 = vcombine.high %v1168, %v1184
      %v1189 = vpack.c.bf16 %v1185, %v1185
      %v1190 = vpack.c.bf16 %v1186, %v1186
      %v1191 = vpack.c.bf16 %v1187, %v1187
      %v1192 = vpack.c.bf16 %v1188, %v1188
      %1193 = vrot.lane.b32.xlu0 %v971, 96
      %v1194 = vpop.permute.xlu0 %1193
      %1195 = vrot.lane.b32.xlu0 %v1045, 96
      %v1196 = vpop.permute.xlu0 %1195
      %1197 = vrot.lane.b32.xlu0 %v1048, 96
      %v1198 = vpop.permute.xlu0 %1197
      %1199 = vrot.lane.b32.xlu0 %v1051, 96
      %v1200 = vpop.permute.xlu0 %1199
      %v1205 = vcombine.low %v1194, %v1198
      %v1206 = vcombine.high %v1194, %v1198
      %v1208 = vunpack.c.l.s4 1983009808
      %v1209 = vunpack.c.0.s8 %v1208
      %v1210 = vlaneseq
      %v1211 = vshrl.u32 %v1210, 7
      %v1212 = vsub.s32 %v1209, %v1211
      %v1213 = vrot.slane %v1205, %v1212
      %v1215 = vunpack.c.l.s4 1983009808
      %v1216 = vunpack.c.0.s8 %v1215
      %v1217 = vlaneseq
      %v1218 = vshrl.u32 %v1217, 7
      %v1219 = vsub.s32 %v1216, %v1218
      %v1220 = vrot.slane %v1206, %v1219
      %v1221 = vcombine.low %v1196, %v1200
      %v1222 = vcombine.high %v1196, %v1200
      %v1224 = vunpack.c.l.s4 1983009808
      %v1225 = vunpack.c.0.s8 %v1224
      %v1226 = vlaneseq
      %v1227 = vshrl.u32 %v1226, 7
      %v1228 = vsub.s32 %v1225, %v1227
      %v1229 = vrot.slane %v1221, %v1228
      %v1231 = vunpack.c.l.s4 1983009808
      %v1232 = vunpack.c.0.s8 %v1231
      %v1233 = vlaneseq
      %v1234 = vshrl.u32 %v1233, 7
      %v1235 = vsub.s32 %v1232, %v1234
      %v1236 = vrot.slane %v1222, %v1235
      %v1237 = vcombine.low %v1213, %v1229
      %v1238 = vcombine.high %v1213, %v1229
      %v1240 = vunpack.c.l.s4 1934713408
      %v1241 = vunpack.c.0.s8 %v1240
      %v1242 = vlaneseq
      %v1243 = vshrl.u32 %v1242, 7
      %v1244 = vsub.s32 %v1241, %v1243
      %v1245 = vrot.slane %v1237, %v1244
      %v1247 = vunpack.c.l.s4 1934713408
      %v1248 = vunpack.c.0.s8 %v1247
      %v1249 = vlaneseq
      %v1250 = vshrl.u32 %v1249, 7
      %v1251 = vsub.s32 %v1248, %v1250
      %v1252 = vrot.slane %v1238, %v1251
      %v1253 = vcombine.low %v1220, %v1236
      %v1254 = vcombine.high %v1220, %v1236
      %v1256 = vunpack.c.l.s4 1934713408
      %v1257 = vunpack.c.0.s8 %v1256
      %v1258 = vlaneseq
      %v1259 = vshrl.u32 %v1258, 7
      %v1260 = vsub.s32 %v1257, %v1259
      %v1261 = vrot.slane %v1253, %v1260
      %v1263 = vunpack.c.l.s4 1934713408
      %v1264 = vunpack.c.0.s8 %v1263
      %v1265 = vlaneseq
      %v1266 = vshrl.u32 %v1265, 7
      %v1267 = vsub.s32 %v1264, %v1266
      %v1268 = vrot.slane %v1254, %v1267
      %v1269 = vcombine.high %v1245, 0.0
      %v1270 = vcombine.high %v1252, 0.0
      %v1271 = vcombine.high %v1261, 0.0
      %v1272 = vcombine.high %v1268, 0.0
      %v1273 = vcombine.low %v1245, %v1252
      %v1275 = vunpack.c.l.s4 1983009808
      %v1276 = vunpack.c.0.s8 %v1275
      %v1277 = vlaneseq
      %v1278 = vshrl.u32 %v1277, 7
      %v1279 = vsub.s32 %v1276, %v1278
      %v1280 = vrot.slane %v1273, %v1279
      %v1281 = vcombine.low %v1269, %v1270
      %v1283 = vunpack.c.l.s4 1983009808
      %v1284 = vunpack.c.0.s8 %v1283
      %v1285 = vlaneseq
      %v1286 = vshrl.u32 %v1285, 7
      %v1287 = vsub.s32 %v1284, %v1286
      %v1288 = vrot.slane %v1281, %v1287
      %v1289 = vcombine.low %v1261, %v1268
      %v1291 = vunpack.c.l.s4 1983009808
      %v1292 = vunpack.c.0.s8 %v1291
      %v1293 = vlaneseq
      %v1294 = vshrl.u32 %v1293, 7
      %v1295 = vsub.s32 %v1292, %v1294
      %v1296 = vrot.slane %v1289, %v1295
      %v1297 = vcombine.low %v1271, %v1272
      %v1299 = vunpack.c.l.s4 1983009808
      %v1300 = vunpack.c.0.s8 %v1299
      %v1301 = vlaneseq
      %v1302 = vshrl.u32 %v1301, 7
      %v1303 = vsub.s32 %v1300, %v1302
      %v1304 = vrot.slane %v1297, %v1303
      %v1305 = vcombine.low %v1280, %v1288
      %v1306 = vcombine.high %v1280, %v1288
      %v1308 = vunpack.c.l.s4 1934713408
      %v1309 = vunpack.c.0.s8 %v1308
      %v1310 = vlaneseq
      %v1311 = vshrl.u32 %v1310, 7
      %v1312 = vsub.s32 %v1309, %v1311
      %v1313 = vrot.slane %v1305, %v1312
      %v1315 = vunpack.c.l.s4 1934713408
      %v1316 = vunpack.c.0.s8 %v1315
      %v1317 = vlaneseq
      %v1318 = vshrl.u32 %v1317, 7
      %v1319 = vsub.s32 %v1316, %v1318
      %v1320 = vrot.slane %v1306, %v1319
      %v1321 = vcombine.low %v1296, %v1304
      %v1322 = vcombine.high %v1296, %v1304
      %v1324 = vunpack.c.l.s4 1934713408
      %v1325 = vunpack.c.0.s8 %v1324
      %v1326 = vlaneseq
      %v1327 = vshrl.u32 %v1326, 7
      %v1328 = vsub.s32 %v1325, %v1327
      %v1329 = vrot.slane %v1321, %v1328
      %v1331 = vunpack.c.l.s4 1934713408
      %v1332 = vunpack.c.0.s8 %v1331
      %v1333 = vlaneseq
      %v1334 = vshrl.u32 %v1333, 7
      %v1335 = vsub.s32 %v1332, %v1334
      %v1336 = vrot.slane %v1322, %v1335
      %v1337 = vcombine.low %v1313, %v1329
      %v1338 = vcombine.high %v1313, %v1329
      %v1339 = vcombine.low %v1320, %v1336
      %v1340 = vcombine.high %v1320, %v1336
      %v1341 = vpack.c.bf16 %v1337, %v1337
      %v1342 = vpack.c.bf16 %v1338, %v1338
      %v1343 = vpack.c.bf16 %v1339, %v1339
      %v1344 = vpack.c.bf16 %v1340, %v1340
      %1346 = vrot.lane.b32.xlu0 %v1038, 120
      %v1347 = vpop.permute.xlu0 %1346
      %1349 = vrot.lane.b32.xlu0 %v1038, 112
      %v1350 = vpop.permute.xlu0 %1349
      %1352 = vrot.lane.b32.xlu0 %v1038, 104
      %v1353 = vpop.permute.xlu0 %1352
      %v1355 = vcombine.low %v1038, %v1350
      %v1356 = vcombine.high %v1038, %v1350
      %v1358 = vunpack.c.l.s4 1983009808
      %v1359 = vunpack.c.0.s8 %v1358
      %v1360 = vlaneseq
      %v1361 = vshrl.u32 %v1360, 7
      %v1362 = vsub.s32 %v1359, %v1361
      %v1363 = vrot.slane %v1355, %v1362
      %v1365 = vunpack.c.l.s4 1983009808
      %v1366 = vunpack.c.0.s8 %v1365
      %v1367 = vlaneseq
      %v1368 = vshrl.u32 %v1367, 7
      %v1369 = vsub.s32 %v1366, %v1368
      %v1370 = vrot.slane %v1356, %v1369
      %v1371 = vcombine.low %v1347, %v1353
      %v1372 = vcombine.high %v1347, %v1353
      %v1374 = vunpack.c.l.s4 1983009808
      %v1375 = vunpack.c.0.s8 %v1374
      %v1376 = vlaneseq
      %v1377 = vshrl.u32 %v1376, 7
      %v1378 = vsub.s32 %v1375, %v1377
      %v1379 = vrot.slane %v1371, %v1378
      %v1381 = vunpack.c.l.s4 1983009808
      %v1382 = vunpack.c.0.s8 %v1381
      %v1383 = vlaneseq
      %v1384 = vshrl.u32 %v1383, 7
      %v1385 = vsub.s32 %v1382, %v1384
      %v1386 = vrot.slane %v1372, %v1385
      %v1387 = vcombine.low %v1363, %v1379
      %v1388 = vcombine.high %v1363, %v1379
      %v1390 = vunpack.c.l.s4 1934713408
      %v1391 = vunpack.c.0.s8 %v1390
      %v1392 = vlaneseq
      %v1393 = vshrl.u32 %v1392, 7
      %v1394 = vsub.s32 %v1391, %v1393
      %v1395 = vrot.slane %v1387, %v1394
      %v1397 = vunpack.c.l.s4 1934713408
      %v1398 = vunpack.c.0.s8 %v1397
      %v1399 = vlaneseq
      %v1400 = vshrl.u32 %v1399, 7
      %v1401 = vsub.s32 %v1398, %v1400
      %v1402 = vrot.slane %v1388, %v1401
      %v1403 = vcombine.low %v1370, %v1386
      %v1404 = vcombine.high %v1370, %v1386
      %v1406 = vunpack.c.l.s4 1934713408
      %v1407 = vunpack.c.0.s8 %v1406
      %v1408 = vlaneseq
      %v1409 = vshrl.u32 %v1408, 7
      %v1410 = vsub.s32 %v1407, %v1409
      %v1411 = vrot.slane %v1403, %v1410
      %v1413 = vunpack.c.l.s4 1934713408
      %v1414 = vunpack.c.0.s8 %v1413
      %v1415 = vlaneseq
      %v1416 = vshrl.u32 %v1415, 7
      %v1417 = vsub.s32 %v1414, %v1416
      %v1418 = vrot.slane %v1404, %v1417
      %v1419 = vcombine.high %v1395, 0.0
      %v1420 = vcombine.high %v1402, 0.0
      %v1421 = vcombine.high %v1411, 0.0
      %v1422 = vcombine.high %v1418, 0.0
      %v1423 = vcombine.low %v1395, %v1402
      %v1425 = vunpack.c.l.s4 1983009808
      %v1426 = vunpack.c.0.s8 %v1425
      %v1427 = vlaneseq
      %v1428 = vshrl.u32 %v1427, 7
      %v1429 = vsub.s32 %v1426, %v1428
      %v1430 = vrot.slane %v1423, %v1429
      %v1431 = vcombine.low %v1419, %v1420
      %v1433 = vunpack.c.l.s4 1983009808
      %v1434 = vunpack.c.0.s8 %v1433
      %v1435 = vlaneseq
      %v1436 = vshrl.u32 %v1435, 7
      %v1437 = vsub.s32 %v1434, %v1436
      %v1438 = vrot.slane %v1431, %v1437
      %v1439 = vcombine.low %v1411, %v1418
      %v1441 = vunpack.c.l.s4 1983009808
      %v1442 = vunpack.c.0.s8 %v1441
      %v1443 = vlaneseq
      %v1444 = vshrl.u32 %v1443, 7
      %v1445 = vsub.s32 %v1442, %v1444
      %v1446 = vrot.slane %v1439, %v1445
      %v1447 = vcombine.low %v1421, %v1422
      %v1449 = vunpack.c.l.s4 1983009808
      %v1450 = vunpack.c.0.s8 %v1449
      %v1451 = vlaneseq
      %v1452 = vshrl.u32 %v1451, 7
      %v1453 = vsub.s32 %v1450, %v1452
      %v1454 = vrot.slane %v1447, %v1453
      %v1455 = vcombine.low %v1430, %v1438
      %v1456 = vcombine.high %v1430, %v1438
      %v1458 = vunpack.c.l.s4 1934713408
      %v1459 = vunpack.c.0.s8 %v1458
      %v1460 = vlaneseq
      %v1461 = vshrl.u32 %v1460, 7
      %v1462 = vsub.s32 %v1459, %v1461
      %v1463 = vrot.slane %v1455, %v1462
      %v1465 = vunpack.c.l.s4 1934713408
      %v1466 = vunpack.c.0.s8 %v1465
      %v1467 = vlaneseq
      %v1468 = vshrl.u32 %v1467, 7
      %v1469 = vsub.s32 %v1466, %v1468
      %v1470 = vrot.slane %v1456, %v1469
      %v1471 = vcombine.low %v1446, %v1454
      %v1472 = vcombine.high %v1446, %v1454
      %v1474 = vunpack.c.l.s4 1934713408
      %v1475 = vunpack.c.0.s8 %v1474
      %v1476 = vlaneseq
      %v1477 = vshrl.u32 %v1476, 7
      %v1478 = vsub.s32 %v1475, %v1477
      %v1479 = vrot.slane %v1471, %v1478
      %v1481 = vunpack.c.l.s4 1934713408
      %v1482 = vunpack.c.0.s8 %v1481
      %v1483 = vlaneseq
      %v1484 = vshrl.u32 %v1483, 7
      %v1485 = vsub.s32 %v1482, %v1484
      %v1486 = vrot.slane %v1472, %v1485
      %v1487 = vcombine.low %v1463, %v1479
      %v1488 = vcombine.high %v1463, %v1479
      %v1489 = vcombine.low %v1470, %v1486
      %v1490 = vcombine.high %v1470, %v1486
      %v1491 = vpack.c.bf16 %v1487, %v1487
      %v1492 = vpack.c.bf16 %v1488, %v1488
      %v1493 = vpack.c.bf16 %v1489, %v1489
      %v1494 = vpack.c.bf16 %v1490, %v1490
      %vm1495 = vcmask 64512
      %v1497 = vsel %vm1495, %v1189, 0
      %v1500 = vsel %vm1495, %v1341, 0
      %1502 = vmatprep.subr.bf16.mxu0 0
      %1503 = vmatpush1.bf16.xpose.msra.mxu0 0
      %1504 = vmatprep.subr.bf16.mxu0 0
      %1505 = vmatpush1.bf16.xpose.msra.mxu0 0
      %1506 = vmatprep.subr.bf16.mxu0 0
      %1507 = vmatpush1.bf16.xpose.msra.mxu0 0
      %1508 = vmatprep.subr.bf16.mxu0 0
      %1509 = vmatpush1.bf16.xpose.msra.mxu0 0
      %1510 = vmatprep.subr.bf16.mxu0 0
      %1511 = vmatpush1.bf16.xpose.msra.mxu0 0
      %1512 = vmatprep.subr.bf16.mxu0 0
      %1513 = vmatpush1.bf16.xpose.msra.mxu0 0
      %1514 = vmatprep.subr.bf16.mxu0 0
      %1515 = vmatpush1.bf16.xpose.msra.mxu0 0
      %1516 = vmatprep.subr.bf16.mxu0 0
      %1517 = vmatpush1.bf16.xpose.msra.mxu0 %v1500
      %1518 = vmatprep.subr.bf16.mxu0 0
      %1519 = vmatpush2.bf16.xpose.msra.mxu0 0
      %1520 = vmatprep.subr.bf16.mxu0 0
      %1521 = vmatpush2.bf16.xpose.msra.mxu0 0
      %1522 = vmatprep.subr.bf16.mxu0 0
      %1523 = vmatpush2.bf16.xpose.msra.mxu0 0
      %1524 = vmatprep.subr.bf16.mxu0 0
      %1525 = vmatpush2.bf16.xpose.msra.mxu0 0
      %1526 = vmatprep.subr.bf16.mxu0 0
      %1527 = vmatpush2.bf16.xpose.msra.mxu0 0
      %1528 = vmatprep.subr.bf16.mxu0 0
      %1529 = vmatpush2.bf16.xpose.msra.mxu0 0
      %1530 = vmatprep.subr.bf16.mxu0 0
      %1531 = vmatpush2.bf16.xpose.msra.mxu0 0
      %1532 = vmatprep.subr.bf16.mxu0 0
      %1533 = vmatpush2.bf16.xpose.msra.mxu0 0
      %1534 = vmatprep.mubr.bf16.mxu0 0
      %1535 = vmatmul.mubr.bf16.gmra.mxu0 %v1497
      %v1536 = vpop.f32.mrf.mxu0
      %v1537 = vadd.f32 0.0, %v1536
      %v1538 = vpop.f32.mrf.mxu0
      %v1539 = vpop.f32.mrf.mxu0
      %v1540 = vpop.f32.mrf.mxu0
      %1541 = vdwg.mxu0
      %v1543 = vsel %vm1495, %v1190, 0
      %v1546 = vsel %vm1495, %v1342, 0
      %1548 = vmatprep.subr.bf16.mxu0 0
      %1549 = vmatpush1.bf16.xpose.msra.mxu0 0
      %1550 = vmatprep.subr.bf16.mxu0 0
      %1551 = vmatpush1.bf16.xpose.msra.mxu0 0
      %1552 = vmatprep.subr.bf16.mxu0 0
      %1553 = vmatpush1.bf16.xpose.msra.mxu0 0
      %1554 = vmatprep.subr.bf16.mxu0 0
      %1555 = vmatpush1.bf16.xpose.msra.mxu0 0
      %1556 = vmatprep.subr.bf16.mxu0 0
      %1557 = vmatpush1.bf16.xpose.msra.mxu0 0
      %1558 = vmatprep.subr.bf16.mxu0 0
      %1559 = vmatpush1.bf16.xpose.msra.mxu0 0
      %1560 = vmatprep.subr.bf16.mxu0 0
      %1561 = vmatpush1.bf16.xpose.msra.mxu0 0
      %1562 = vmatprep.subr.bf16.mxu0 0
      %1563 = vmatpush1.bf16.xpose.msra.mxu0 %v1546
      %1564 = vmatprep.subr.bf16.mxu0 0
      %1565 = vmatpush2.bf16.xpose.msra.mxu0 0
      %1566 = vmatprep.subr.bf16.mxu0 0
      %1567 = vmatpush2.bf16.xpose.msra.mxu0 0
      %1568 = vmatprep.subr.bf16.mxu0 0
      %1569 = vmatpush2.bf16.xpose.msra.mxu0 0
      %1570 = vmatprep.subr.bf16.mxu0 0
      %1571 = vmatpush2.bf16.xpose.msra.mxu0 0
      %1572 = vmatprep.subr.bf16.mxu0 0
      %1573 = vmatpush2.bf16.xpose.msra.mxu0 0
      %1574 = vmatprep.subr.bf16.mxu0 0
      %1575 = vmatpush2.bf16.xpose.msra.mxu0 0
      %1576 = vmatprep.subr.bf16.mxu0 0
      %1577 = vmatpush2.bf16.xpose.msra.mxu0 0
      %1578 = vmatprep.subr.bf16.mxu0 0
      %1579 = vmatpush2.bf16.xpose.msra.mxu0 0
      %1580 = vmatprep.mubr.bf16.mxu0 0
      %1581 = vmatmul.mubr.bf16.gmra.mxu0 %v1543
      %v1582 = vpop.f32.mrf.mxu0
      %v1583 = vadd.f32 0.0, %v1582
      %v1584 = vpop.f32.mrf.mxu0
      %v1585 = vpop.f32.mrf.mxu0
      %v1586 = vpop.f32.mrf.mxu0
      %1587 = vdwg.mxu0
      %v1589 = vsel %vm1495, %v1191, 0
      %v1592 = vsel %vm1495, %v1343, 0
      %1594 = vmatprep.subr.bf16.mxu0 0
      %1595 = vmatpush1.bf16.xpose.msra.mxu0 0
      %1596 = vmatprep.subr.bf16.mxu0 0
      %1597 = vmatpush1.bf16.xpose.msra.mxu0 0
      %1598 = vmatprep.subr.bf16.mxu0 0
      %1599 = vmatpush1.bf16.xpose.msra.mxu0 0
      %1600 = vmatprep.subr.bf16.mxu0 0
      %1601 = vmatpush1.bf16.xpose.msra.mxu0 0
      %1602 = vmatprep.subr.bf16.mxu0 0
      %1603 = vmatpush1.bf16.xpose.msra.mxu0 0
      %1604 = vmatprep.subr.bf16.mxu0 0
      %1605 = vmatpush1.bf16.xpose.msra.mxu0 0
      %1606 = vmatprep.subr.bf16.mxu0 0
      %1607 = vmatpush1.bf16.xpose.msra.mxu0 0
      %1608 = vmatprep.subr.bf16.mxu0 0
      %1609 = vmatpush1.bf16.xpose.msra.mxu0 %v1592
      %1610 = vmatprep.subr.bf16.mxu0 0
      %1611 = vmatpush2.bf16.xpose.msra.mxu0 0
      %1612 = vmatprep.subr.bf16.mxu0 0
      %1613 = vmatpush2.bf16.xpose.msra.mxu0 0
      %1614 = vmatprep.subr.bf16.mxu0 0
      %1615 = vmatpush2.bf16.xpose.msra.mxu0 0
      %1616 = vmatprep.subr.bf16.mxu0 0
      %1617 = vmatpush2.bf16.xpose.msra.mxu0 0
      %1618 = vmatprep.subr.bf16.mxu0 0
      %1619 = vmatpush2.bf16.xpose.msra.mxu0 0
      %1620 = vmatprep.subr.bf16.mxu0 0
      %1621 = vmatpush2.bf16.xpose.msra.mxu0 0
      %1622 = vmatprep.subr.bf16.mxu0 0
      %1623 = vmatpush2.bf16.xpose.msra.mxu0 0
      %1624 = vmatprep.subr.bf16.mxu0 0
      %1625 = vmatpush2.bf16.xpose.msra.mxu0 0
      %1626 = vmatprep.mubr.bf16.mxu0 0
      %1627 = vmatmul.mubr.bf16.gmra.mxu0 %v1589
      %v1628 = vpop.f32.mrf.mxu0
      %v1629 = vadd.f32 0.0, %v1628
      %v1630 = vpop.f32.mrf.mxu0
      %v1631 = vpop.f32.mrf.mxu0
      %v1632 = vpop.f32.mrf.mxu0
      %1633 = vdwg.mxu0
      %v1635 = vsel %vm1495, %v1192, 0
      %v1638 = vsel %vm1495, %v1344, 0
      %1640 = vmatprep.subr.bf16.mxu0 0
      %1641 = vmatpush1.bf16.xpose.msra.mxu0 0
      %1642 = vmatprep.subr.bf16.mxu0 0
      %1643 = vmatpush1.bf16.xpose.msra.mxu0 0
      %1644 = vmatprep.subr.bf16.mxu0 0
      %1645 = vmatpush1.bf16.xpose.msra.mxu0 0
      %1646 = vmatprep.subr.bf16.mxu0 0
      %1647 = vmatpush1.bf16.xpose.msra.mxu0 0
      %1648 = vmatprep.subr.bf16.mxu0 0
      %1649 = vmatpush1.bf16.xpose.msra.mxu0 0
      %1650 = vmatprep.subr.bf16.mxu0 0
      %1651 = vmatpush1.bf16.xpose.msra.mxu0 0
      %1652 = vmatprep.subr.bf16.mxu0 0
      %1653 = vmatpush1.bf16.xpose.msra.mxu0 0
      %1654 = vmatprep.subr.bf16.mxu0 0
      %1655 = vmatpush1.bf16.xpose.msra.mxu0 %v1638
      %1656 = vmatprep.subr.bf16.mxu0 0
      %1657 = vmatpush2.bf16.xpose.msra.mxu0 0
      %1658 = vmatprep.subr.bf16.mxu0 0
      %1659 = vmatpush2.bf16.xpose.msra.mxu0 0
      %1660 = vmatprep.subr.bf16.mxu0 0
      %1661 = vmatpush2.bf16.xpose.msra.mxu0 0
      %1662 = vmatprep.subr.bf16.mxu0 0
      %1663 = vmatpush2.bf16.xpose.msra.mxu0 0
      %1664 = vmatprep.subr.bf16.mxu0 0
      %1665 = vmatpush2.bf16.xpose.msra.mxu0 0
      %1666 = vmatprep.subr.bf16.mxu0 0
      %1667 = vmatpush2.bf16.xpose.msra.mxu0 0
      %1668 = vmatprep.subr.bf16.mxu0 0
      %1669 = vmatpush2.bf16.xpose.msra.mxu0 0
      %1670 = vmatprep.subr.bf16.mxu0 0
      %1671 = vmatpush2.bf16.xpose.msra.mxu0 0
      %1672 = vmatprep.mubr.bf16.mxu0 0
      %1673 = vmatmul.mubr.bf16.gmra.mxu0 %v1635
      %v1674 = vpop.f32.mrf.mxu0
      %v1675 = vadd.f32 0.0, %v1674
      %v1676 = vpop.f32.mrf.mxu0
      %v1677 = vpop.f32.mrf.mxu0
      %v1678 = vpop.f32.mrf.mxu0
      %1679 = vdwg.mxu0
      %v1680 = vmul.f32 %v1537, 0.35355338
      %v1681 = vmul.f32 %v1583, 0.35355338
      %v1682 = vmul.f32 %v1629, 0.35355338
      %v1683 = vmul.f32 %v1675, 0.35355338
      %v1684 = vlaneseq
      %v1685 = vand.u32 %v1684, 127
      %vm1686 = vcmp.lt.s32.totalorder %v1685, 6
      %v1687 = vsel %vm1686, %v1680, -1e+30
      %v1688 = vsel %vm1686, %v1681, -1e+30
      %v1689 = vsel %vm1686, %v1682, -1e+30
      %v1690 = vsel %vm1686, %v1683, -1e+30
      %v1691 = vsel %vm1495, %v1687, -inf
      %1692 = vmax.xlane.f32.xlu0 %v1691
      %v1693 = vpop.xlane.xlu0 %1692
      %v1694 = vsel %vm1495, %v1688, -inf
      %1695 = vmax.xlane.f32.xlu0 %v1694
      %v1696 = vpop.xlane.xlu0 %1695
      %v1697 = vsel %vm1495, %v1689, -inf
      %1698 = vmax.xlane.f32.xlu0 %v1697
      %v1699 = vpop.xlane.xlu0 %1698
      %v1700 = vsel %vm1495, %v1690, -inf
      %1701 = vmax.xlane.f32.xlu0 %v1700
      %v1702 = vpop.xlane.xlu0 %1701
      %v1703 = vsub.f32 %v1687, %v1693
      %v1704 = vsub.f32 %v1688, %v1696
      %v1705 = vsub.f32 %v1689, %v1699
      %v1706 = vsub.f32 %v1690, %v1702
      %v1707 = vmul.f32 %v1703, 1.442695
      %v1708 = vpow.pop %v1707
      %v1709 = vmul.f32 %v1704, 1.442695
      %v1710 = vpow.pop %v1709
      %v1711 = vmul.f32 %v1705, 1.442695
      %v1712 = vpow.pop %v1711
      %v1713 = vmul.f32 %v1706, 1.442695
      %v1714 = vpow.pop %v1713
      %v1715 = vsel %vm1495, %v1708, 0.0
      %1716 = vadd.xlane.f32.xlu0 %v1715
      %v1717 = vpop.xlane.xlu0 %1716
      %v1718 = vsel %vm1495, %v1710, 0.0
      %1719 = vadd.xlane.f32.xlu0 %v1718
      %v1720 = vpop.xlane.xlu0 %1719
      %v1721 = vsel %vm1495, %v1712, 0.0
      %1722 = vadd.xlane.f32.xlu0 %v1721
      %v1723 = vpop.xlane.xlu0 %1722
      %v1724 = vsel %vm1495, %v1714, 0.0
      %1725 = vadd.xlane.f32.xlu0 %v1724
      %v1726 = vpop.xlane.xlu0 %1725
      %v1727 = vrcp.pop %v1717
      %v1728 = vrcp.pop %v1720
      %v1729 = vrcp.pop %v1723
      %v1730 = vrcp.pop %v1726
      %v1731 = vmul.f32 %v1708, %v1727
      %v1732 = vmul.f32 %v1710, %v1728
      %v1733 = vmul.f32 %v1712, %v1729
      %v1734 = vmul.f32 %v1714, %v1730
      %v1735 = vpack.c.bf16 %v1731, %v1731
      %v1736 = vpack.c.bf16 %v1732, %v1732
      %v1737 = vpack.c.bf16 %v1733, %v1733
      %v1738 = vpack.c.bf16 %v1734, %v1734
      %v1740 = vsel %vm1495, %v1735, 0
      %vm1742 = vcmask 1043456
      %v1744 = vsel %vm1742, %v1491, 0
      %1746 = vmatprep.subr.bf16.mxu0 0
      %1747 = vmatpush1.bf16.msra.mxu0 0
      %1748 = vmatprep.subr.bf16.mxu0 0
      %1749 = vmatpush1.bf16.msra.mxu0 0
      %1750 = vmatprep.subr.bf16.mxu0 0
      %1751 = vmatpush1.bf16.msra.mxu0 0
      %1752 = vmatprep.subr.bf16.mxu0 0
      %1753 = vmatpush1.bf16.msra.mxu0 0
      %1754 = vmatprep.subr.bf16.mxu0 0
      %1755 = vmatpush1.bf16.msra.mxu0 0
      %1756 = vmatprep.subr.bf16.mxu0 0
      %1757 = vmatpush1.bf16.msra.mxu0 0
      %1758 = vmatprep.subr.bf16.mxu0 0
      %1759 = vmatpush1.bf16.msra.mxu0 0
      %1760 = vmatprep.subr.bf16.mxu0 0
      %1761 = vmatpush1.bf16.msra.mxu0 %v1744
      %1762 = vmatprep.subr.bf16.mxu0 0
      %1763 = vmatpush2.bf16.msra.mxu0 0
      %1764 = vmatprep.subr.bf16.mxu0 0
      %1765 = vmatpush2.bf16.msra.mxu0 0
      %1766 = vmatprep.subr.bf16.mxu0 0
      %1767 = vmatpush2.bf16.msra.mxu0 0
      %1768 = vmatprep.subr.bf16.mxu0 0
      %1769 = vmatpush2.bf16.msra.mxu0 0
      %1770 = vmatprep.subr.bf16.mxu0 0
      %1771 = vmatpush2.bf16.msra.mxu0 0
      %1772 = vmatprep.subr.bf16.mxu0 0
      %1773 = vmatpush2.bf16.msra.mxu0 0
      %1774 = vmatprep.subr.bf16.mxu0 0
      %1775 = vmatpush2.bf16.msra.mxu0 0
      %1776 = vmatprep.subr.bf16.mxu0 0
      %1777 = vmatpush2.bf16.msra.mxu0 0
      %1778 = vmatprep.mubr.bf16.mxu0 0
      %1779 = vmatmul.mubr.bf16.gmra.mxu0 %v1740
      %v1780 = vpop.f32.mrf.mxu0
      %v1781 = vadd.f32 0.0, %v1780
      %v1782 = vpop.f32.mrf.mxu0
      %v1783 = vpop.f32.mrf.mxu0
      %v1784 = vpop.f32.mrf.mxu0
      %1785 = vdwg.mxu0
      %v1787 = vsel %vm1495, %v1736, 0
      %v1790 = vsel %vm1742, %v1492, 0
      %1792 = vmatprep.subr.bf16.mxu0 0
      %1793 = vmatpush1.bf16.msra.mxu0 0
      %1794 = vmatprep.subr.bf16.mxu0 0
      %1795 = vmatpush1.bf16.msra.mxu0 0
      %1796 = vmatprep.subr.bf16.mxu0 0
      %1797 = vmatpush1.bf16.msra.mxu0 0
      %1798 = vmatprep.subr.bf16.mxu0 0
      %1799 = vmatpush1.bf16.msra.mxu0 0
      %1800 = vmatprep.subr.bf16.mxu0 0
      %1801 = vmatpush1.bf16.msra.mxu0 0
      %1802 = vmatprep.subr.bf16.mxu0 0
      %1803 = vmatpush1.bf16.msra.mxu0 0
      %1804 = vmatprep.subr.bf16.mxu0 0
      %1805 = vmatpush1.bf16.msra.mxu0 0
      %1806 = vmatprep.subr.bf16.mxu0 0
      %1807 = vmatpush1.bf16.msra.mxu0 %v1790
      %1808 = vmatprep.subr.bf16.mxu0 0
      %1809 = vmatpush2.bf16.msra.mxu0 0
      %1810 = vmatprep.subr.bf16.mxu0 0
      %1811 = vmatpush2.bf16.msra.mxu0 0
      %1812 = vmatprep.subr.bf16.mxu0 0
      %1813 = vmatpush2.bf16.msra.mxu0 0
      %1814 = vmatprep.subr.bf16.mxu0 0
      %1815 = vmatpush2.bf16.msra.mxu0 0
      %1816 = vmatprep.subr.bf16.mxu0 0
      %1817 = vmatpush2.bf16.msra.mxu0 0
      %1818 = vmatprep.subr.bf16.mxu0 0
      %1819 = vmatpush2.bf16.msra.mxu0 0
      %1820 = vmatprep.subr.bf16.mxu0 0
      %1821 = vmatpush2.bf16.msra.mxu0 0
      %1822 = vmatprep.subr.bf16.mxu0 0
      %1823 = vmatpush2.bf16.msra.mxu0 0
      %1824 = vmatprep.mubr.bf16.mxu0 0
      %1825 = vmatmul.mubr.bf16.gmra.mxu0 %v1787
      %v1826 = vpop.f32.mrf.mxu0
      %v1827 = vadd.f32 0.0, %v1826
      %v1828 = vpop.f32.mrf.mxu0
      %v1829 = vpop.f32.mrf.mxu0
      %v1830 = vpop.f32.mrf.mxu0
      %1831 = vdwg.mxu0
      %v1833 = vsel %vm1495, %v1737, 0
      %v1836 = vsel %vm1742, %v1493, 0
      %1838 = vmatprep.subr.bf16.mxu0 0
      %1839 = vmatpush1.bf16.msra.mxu0 0
      %1840 = vmatprep.subr.bf16.mxu0 0
      %1841 = vmatpush1.bf16.msra.mxu0 0
      %1842 = vmatprep.subr.bf16.mxu0 0
      %1843 = vmatpush1.bf16.msra.mxu0 0
      %1844 = vmatprep.subr.bf16.mxu0 0
      %1845 = vmatpush1.bf16.msra.mxu0 0
      %1846 = vmatprep.subr.bf16.mxu0 0
      %1847 = vmatpush1.bf16.msra.mxu0 0
      %1848 = vmatprep.subr.bf16.mxu0 0
      %1849 = vmatpush1.bf16.msra.mxu0 0
      %1850 = vmatprep.subr.bf16.mxu0 0
      %1851 = vmatpush1.bf16.msra.mxu0 0
      %1852 = vmatprep.subr.bf16.mxu0 0
      %1853 = vmatpush1.bf16.msra.mxu0 %v1836
      %1854 = vmatprep.subr.bf16.mxu0 0
      %1855 = vmatpush2.bf16.msra.mxu0 0
      %1856 = vmatprep.subr.bf16.mxu0 0
      %1857 = vmatpush2.bf16.msra.mxu0 0
      %1858 = vmatprep.subr.bf16.mxu0 0
      %1859 = vmatpush2.bf16.msra.mxu0 0
      %1860 = vmatprep.subr.bf16.mxu0 0
      %1861 = vmatpush2.bf16.msra.mxu0 0
      %1862 = vmatprep.subr.bf16.mxu0 0
      %1863 = vmatpush2.bf16.msra.mxu0 0
      %1864 = vmatprep.subr.bf16.mxu0 0
      %1865 = vmatpush2.bf16.msra.mxu0 0
      %1866 = vmatprep.subr.bf16.mxu0 0
      %1867 = vmatpush2.bf16.msra.mxu0 0
      %1868 = vmatprep.subr.bf16.mxu0 0
      %1869 = vmatpush2.bf16.msra.mxu0 0
      %1870 = vmatprep.mubr.bf16.mxu0 0
      %1871 = vmatmul.mubr.bf16.gmra.mxu0 %v1833
      %v1872 = vpop.f32.mrf.mxu0
      %v1873 = vadd.f32 0.0, %v1872
      %v1874 = vpop.f32.mrf.mxu0
      %v1875 = vpop.f32.mrf.mxu0
      %v1876 = vpop.f32.mrf.mxu0
      %1877 = vdwg.mxu0
      %v1879 = vsel %vm1495, %v1738, 0
      %v1882 = vsel %vm1742, %v1494, 0
      %1884 = vmatprep.subr.bf16.mxu0 0
      %1885 = vmatpush1.bf16.msra.mxu0 0
      %1886 = vmatprep.subr.bf16.mxu0 0
      %1887 = vmatpush1.bf16.msra.mxu0 0
      %1888 = vmatprep.subr.bf16.mxu0 0
      %1889 = vmatpush1.bf16.msra.mxu0 0
      %1890 = vmatprep.subr.bf16.mxu0 0
      %1891 = vmatpush1.bf16.msra.mxu0 0
      %1892 = vmatprep.subr.bf16.mxu0 0
      %1893 = vmatpush1.bf16.msra.mxu0 0
      %1894 = vmatprep.subr.bf16.mxu0 0
      %1895 = vmatpush1.bf16.msra.mxu0 0
      %1896 = vmatprep.subr.bf16.mxu0 0
      %1897 = vmatpush1.bf16.msra.mxu0 0
      %1898 = vmatprep.subr.bf16.mxu0 0
      %1899 = vmatpush1.bf16.msra.mxu0 %v1882
      %1900 = vmatprep.subr.bf16.mxu0 0
      %1901 = vmatpush2.bf16.msra.mxu0 0
      %1902 = vmatprep.subr.bf16.mxu0 0
      %1903 = vmatpush2.bf16.msra.mxu0 0
      %1904 = vmatprep.subr.bf16.mxu0 0
      %1905 = vmatpush2.bf16.msra.mxu0 0
      %1906 = vmatprep.subr.bf16.mxu0 0
      %1907 = vmatpush2.bf16.msra.mxu0 0
      %1908 = vmatprep.subr.bf16.mxu0 0
      %1909 = vmatpush2.bf16.msra.mxu0 0
      %1910 = vmatprep.subr.bf16.mxu0 0
      %1911 = vmatpush2.bf16.msra.mxu0 0
      %1912 = vmatprep.subr.bf16.mxu0 0
      %1913 = vmatpush2.bf16.msra.mxu0 0
      %1914 = vmatprep.subr.bf16.mxu0 0
      %1915 = vmatpush2.bf16.msra.mxu0 0
      %1916 = vmatprep.mubr.bf16.mxu0 0
      %1917 = vmatmul.mubr.bf16.gmra.mxu0 %v1879
      %v1918 = vpop.f32.mrf.mxu0
      %v1919 = vadd.f32 0.0, %v1918
      %v1920 = vpop.f32.mrf.mxu0
      %v1921 = vpop.f32.mrf.mxu0
      %v1922 = vpop.f32.mrf.mxu0
      %1923 = vdwg.mxu0
      %v1924 = vcombine.low %v1781, %v1873
      %v1925 = vcombine.high %v1781, %v1873
      %v1927 = vunpack.c.l.s4 1983009808
      %v1928 = vunpack.c.0.s8 %v1927
      %v1929 = vlaneseq
      %v1930 = vshrl.u32 %v1929, 7
      %v1931 = vsub.s32 %v1928, %v1930
      %v1932 = vrot.slane %v1924, %v1931
      %v1934 = vunpack.c.l.s4 1983009808
      %v1935 = vunpack.c.0.s8 %v1934
      %v1936 = vlaneseq
      %v1937 = vshrl.u32 %v1936, 7
      %v1938 = vsub.s32 %v1935, %v1937
      %v1939 = vrot.slane %v1925, %v1938
      %v1940 = vcombine.low %v1827, %v1919
      %v1941 = vcombine.high %v1827, %v1919
      %v1943 = vunpack.c.l.s4 1983009808
      %v1944 = vunpack.c.0.s8 %v1943
      %v1945 = vlaneseq
      %v1946 = vshrl.u32 %v1945, 7
      %v1947 = vsub.s32 %v1944, %v1946
      %v1948 = vrot.slane %v1940, %v1947
      %v1950 = vunpack.c.l.s4 1983009808
      %v1951 = vunpack.c.0.s8 %v1950
      %v1952 = vlaneseq
      %v1953 = vshrl.u32 %v1952, 7
      %v1954 = vsub.s32 %v1951, %v1953
      %v1955 = vrot.slane %v1941, %v1954
      %v1956 = vcombine.low %v1932, %v1948
      %v1957 = vcombine.high %v1932, %v1948
      %v1959 = vunpack.c.l.s4 1934713408
      %v1960 = vunpack.c.0.s8 %v1959
      %v1961 = vlaneseq
      %v1962 = vshrl.u32 %v1961, 7
      %v1963 = vsub.s32 %v1960, %v1962
      %v1964 = vrot.slane %v1956, %v1963
      %v1966 = vunpack.c.l.s4 1934713408
      %v1967 = vunpack.c.0.s8 %v1966
      %v1968 = vlaneseq
      %v1969 = vshrl.u32 %v1968, 7
      %v1970 = vsub.s32 %v1967, %v1969
      %v1971 = vrot.slane %v1957, %v1970
      %v1972 = vcombine.low %v1939, %v1955
      %v1973 = vcombine.high %v1939, %v1955
      %v1975 = vunpack.c.l.s4 1934713408
      %v1976 = vunpack.c.0.s8 %v1975
      %v1977 = vlaneseq
      %v1978 = vshrl.u32 %v1977, 7
      %v1979 = vsub.s32 %v1976, %v1978
      %v1980 = vrot.slane %v1972, %v1979
      %v1982 = vunpack.c.l.s4 1934713408
      %v1983 = vunpack.c.0.s8 %v1982
      %v1984 = vlaneseq
      %v1985 = vshrl.u32 %v1984, 7
      %v1986 = vsub.s32 %v1983, %v1985
      %v1987 = vrot.slane %v1973, %v1986
      %v1988 = vcombine.high %v1964, 0.0
      %v1989 = vcombine.high %v1971, 0.0
      %v1990 = vcombine.high %v1980, 0.0
      %v1991 = vcombine.high %v1987, 0.0
      %v1992 = vcombine.low %v1964, %v1971
      %v1994 = vunpack.c.l.s4 1983009808
      %v1995 = vunpack.c.0.s8 %v1994
      %v1996 = vlaneseq
      %v1997 = vshrl.u32 %v1996, 7
      %v1998 = vsub.s32 %v1995, %v1997
      %v1999 = vrot.slane %v1992, %v1998
      %v2000 = vcombine.low %v1988, %v1989
      %v2002 = vunpack.c.l.s4 1983009808
      %v2003 = vunpack.c.0.s8 %v2002
      %v2004 = vlaneseq
      %v2005 = vshrl.u32 %v2004, 7
      %v2006 = vsub.s32 %v2003, %v2005
      %v2007 = vrot.slane %v2000, %v2006
      %v2008 = vcombine.low %v1980, %v1987
      %v2010 = vunpack.c.l.s4 1983009808
      %v2011 = vunpack.c.0.s8 %v2010
      %v2012 = vlaneseq
      %v2013 = vshrl.u32 %v2012, 7
      %v2014 = vsub.s32 %v2011, %v2013
      %v2015 = vrot.slane %v2008, %v2014
      %v2016 = vcombine.low %v1990, %v1991
      %v2018 = vunpack.c.l.s4 1983009808
      %v2019 = vunpack.c.0.s8 %v2018
      %v2020 = vlaneseq
      %v2021 = vshrl.u32 %v2020, 7
      %v2022 = vsub.s32 %v2019, %v2021
      %v2023 = vrot.slane %v2016, %v2022
      %v2024 = vcombine.low %v1999, %v2007
      %v2025 = vcombine.high %v1999, %v2007
      %v2027 = vunpack.c.l.s4 1934713408
      %v2028 = vunpack.c.0.s8 %v2027
      %v2029 = vlaneseq
      %v2030 = vshrl.u32 %v2029, 7
      %v2031 = vsub.s32 %v2028, %v2030
      %v2032 = vrot.slane %v2024, %v2031
      %v2034 = vunpack.c.l.s4 1934713408
      %v2035 = vunpack.c.0.s8 %v2034
      %v2036 = vlaneseq
      %v2037 = vshrl.u32 %v2036, 7
      %v2038 = vsub.s32 %v2035, %v2037
      %v2039 = vrot.slane %v2025, %v2038
      %v2040 = vcombine.low %v2015, %v2023
      %v2041 = vcombine.high %v2015, %v2023
      %v2043 = vunpack.c.l.s4 1934713408
      %v2044 = vunpack.c.0.s8 %v2043
      %v2045 = vlaneseq
      %v2046 = vshrl.u32 %v2045, 7
      %v2047 = vsub.s32 %v2044, %v2046
      %v2048 = vrot.slane %v2040, %v2047
      %v2050 = vunpack.c.l.s4 1934713408
      %v2051 = vunpack.c.0.s8 %v2050
      %v2052 = vlaneseq
      %v2053 = vshrl.u32 %v2052, 7
      %v2054 = vsub.s32 %v2051, %v2053
      %v2055 = vrot.slane %v2041, %v2054
      %v2056 = vcombine.low %v2032, %v2048
      %v2057 = vcombine.high %v2032, %v2048
      %v2058 = vcombine.low %v2039, %v2055
      %v2059 = vcombine.high %v2039, %v2055
      %2061 = vrot.lane.b32.xlu0 %v2057, 8
      %v2062 = vpop.permute.xlu0 %2061
      %2065 = vrot.lane.b32.xlu0 %v2058, 16
      %v2066 = vpop.permute.xlu0 %2065
      %2069 = vrot.lane.b32.xlu0 %v2059, 24
      %v2070 = vpop.permute.xlu0 %2069
      %v2072 = vsel %vm1495, %v2056, %v2062
      %vm2073 = vcmask 130048
      %v2074 = vsel %vm2073, %v2072, %v2066
      %vm2075 = vcmask 195584
      %v2076 = vsel %vm2075, %v2074, %v2070
      %v2077 = vpack.c.bf16 %v2076, %v2076
      %v2078 = vld [vmem:[%s8] sm:$0xf]
      %v2079 = vld [vmem:[%s8 + $0x4] sm:$0xf]
      %v2080 = vld [vmem:[%s8 + $0x8] sm:$0xf]
      %v2081 = vld [vmem:[%s8 + $0xc] sm:$0xf]
      %v2082 = vld [vmem:[%s9] sm:$0x1]
      %v2084 = vlaneseq
      %v2085 = vshrl.u32 %v2084, 7
      %v2086 = vsub.s32 0, %v2085
      %v2087 = vrot.slane %v2082, %v2086
      %v2093 = vunpack.c.l.b16 %v2078
      %v2094 = vunpack.c.l.b16 %v2079
      %v2095 = vunpack.c.l.b16 %v2080
      %v2096 = vunpack.c.l.b16 %v2081
      %v2097 = vpack.c.b16 %v2094, %v2093
      %v2098 = vpack.c.b16 %v2096, %v2095
      %v2102 = vsel %vm932, %v2077, 0
      %2104 = vmatprep.subr.bf16.mxu0 0
      %2105 = vmatpush1.bf16.msra.mxu0 0
      %2106 = vmatprep.subr.bf16.mxu0 0
      %2107 = vmatpush1.bf16.msra.mxu0 0
      %2108 = vmatprep.subr.bf16.mxu0 0
      %2109 = vmatpush1.bf16.msra.mxu0 0
      %2110 = vmatprep.subr.bf16.mxu0 0
      %2111 = vmatpush1.bf16.msra.mxu0 0
      %2112 = vmatprep.subr.bf16.mxu0 0
      %2113 = vmatpush1.bf16.msra.mxu0 0
      %2114 = vmatprep.subr.bf16.mxu0 0
      %2115 = vmatpush1.bf16.msra.mxu0 0
      %2116 = vmatprep.subr.bf16.mxu0 0
      %2117 = vmatpush1.bf16.msra.mxu0 %v2098
      %2118 = vmatprep.subr.bf16.mxu0 0
      %2119 = vmatpush1.bf16.msra.mxu0 %v2097
      %2120 = vmatprep.subr.bf16.mxu0 0
      %2121 = vmatpush2.bf16.msra.mxu0 0
      %2122 = vmatprep.subr.bf16.mxu0 0
      %2123 = vmatpush2.bf16.msra.mxu0 0
      %2124 = vmatprep.subr.bf16.mxu0 0
      %2125 = vmatpush2.bf16.msra.mxu0 0
      %2126 = vmatprep.subr.bf16.mxu0 0
      %2127 = vmatpush2.bf16.msra.mxu0 0
      %2128 = vmatprep.subr.bf16.mxu0 0
      %2129 = vmatpush2.bf16.msra.mxu0 0
      %2130 = vmatprep.subr.bf16.mxu0 0
      %2131 = vmatpush2.bf16.msra.mxu0 0
      %2132 = vmatprep.subr.bf16.mxu0 0
      %2133 = vmatpush2.bf16.msra.mxu0 0
      %2134 = vmatprep.subr.bf16.mxu0 0
      %2135 = vmatpush2.bf16.msra.mxu0 0
      %2136 = vmatprep.mubr.bf16.mxu0 0
      %2137 = vmatmul.mubr.bf16.gmra.mxu0 %v2102
      %v2138 = vpop.f32.mrf.mxu0
      %v2139 = vadd.f32 %v2087, %v2138
      %v2140 = vpop.f32.mrf.mxu0
      %v2141 = vpop.f32.mrf.mxu0
      %v2142 = vpop.f32.mrf.mxu0
      %2143 = vdwg.mxu0
      %v2144 = vadd.f32 %v899, %v2139
      %v2145 = vld [vmem:[%s10] sm:$0x1]
      %v2146 = vld [vmem:[%s11] sm:$0x1]
      %v2147 = vsel %vm932, %v2144, 0.0
      %2148 = vadd.xlane.f32.xlu0 %v2147
      %v2149 = vpop.xlane.xlu0 %2148
      %v2150 = vrcp.pop 32.0
      %v2151 = vmul.f32 %v2149, %v2150
      %v2152 = vsub.f32 %v2144, %v2151
      %v2153 = vmul.f32 %v2152, %v2152
      %v2154 = vsel %vm932, %v2153, 0.0
      %2155 = vadd.xlane.f32.xlu0 %v2154
      %v2156 = vpop.xlane.xlu0 %2155
      %v2157 = vmul.f32 %v2156, %v2150
      %v2158 = vadd.f32 %v2157, 1e-05
      %v2159 = vrsqrt.pop %v2158
      %v2160 = vmul.f32 %v2152, %v2159
      %v2162 = vlaneseq
      %v2163 = vshrl.u32 %v2162, 7
      %v2164 = vsub.s32 0, %v2163
      %v2165 = vrot.slane %v2145, %v2164
      %v2167 = vmul.f32 %v2160, %v2165
      %v2169 = vlaneseq
      %v2170 = vshrl.u32 %v2169, 7
      %v2171 = vsub.s32 0, %v2170
      %v2172 = vrot.slane %v2146, %v2171
      %v2174 = vadd.f32 %v2167, %v2172
      %v2175 = vadd.f32 %v2174, %v900
      %v2176 = vpack.c.bf16 %v2175, %v2175
      %v2177 = vld [vmem:[%s12] sm:$0xf]
      %v2178 = vld [vmem:[%s12 + $0x4] sm:$0xf]
      %v2179 = vld [vmem:[%s12 + $0x8] sm:$0xf]
      %v2180 = vld [vmem:[%s12 + $0xc] sm:$0xf]
      %v2181 = vld [vmem:[%s13] sm:$0x1]
      %v2183 = vlaneseq
      %v2184 = vshrl.u32 %v2183, 7
      %v2185 = vsub.s32 0, %v2184
      %v2186 = vrot.slane %v2181, %v2185
      %v2192 = vunpack.c.l.b16 %v2177
      %v2193 = vunpack.c.l.b16 %v2178
      %v2194 = vunpack.c.l.b16 %v2179
      %v2195 = vunpack.c.l.b16 %v2180
      %v2196 = vpack.c.b16 %v2193, %v2192
      %v2197 = vpack.c.b16 %v2195, %v2194
      %v2201 = vsel %vm932, %v2176, 0
      %2203 = vmatprep.subr.bf16.mxu0 0
      %2204 = vmatpush1.bf16.msra.mxu0 0
      %2205 = vmatprep.subr.bf16.mxu0 0
      %2206 = vmatpush1.bf16.msra.mxu0 0
      %2207 = vmatprep.subr.bf16.mxu0 0
      %2208 = vmatpush1.bf16.msra.mxu0 0
      %2209 = vmatprep.subr.bf16.mxu0 0
      %2210 = vmatpush1.bf16.msra.mxu0 0
      %2211 = vmatprep.subr.bf16.mxu0 0
      %2212 = vmatpush1.bf16.msra.mxu0 0
      %2213 = vmatprep.subr.bf16.mxu0 0
      %2214 = vmatpush1.bf16.msra.mxu0 0
      %2215 = vmatprep.subr.bf16.mxu0 0
      %2216 = vmatpush1.bf16.msra.mxu0 %v2197
      %2217 = vmatprep.subr.bf16.mxu0 0
      %2218 = vmatpush1.bf16.msra.mxu0 %v2196
      %2219 = vmatprep.subr.bf16.mxu0 0
      %2220 = vmatpush2.bf16.msra.mxu0 0
      %2221 = vmatprep.subr.bf16.mxu0 0
      %2222 = vmatpush2.bf16.msra.mxu0 0
      %2223 = vmatprep.subr.bf16.mxu0 0
      %2224 = vmatpush2.bf16.msra.mxu0 0
      %2225 = vmatprep.subr.bf16.mxu0 0
      %2226 = vmatpush2.bf16.msra.mxu0 0
      %2227 = vmatprep.subr.bf16.mxu0 0
      %2228 = vmatpush2.bf16.msra.mxu0 0
      %2229 = vmatprep.subr.bf16.mxu0 0
      %2230 = vmatpush2.bf16.msra.mxu0 0
      %2231 = vmatprep.subr.bf16.mxu0 0
      %2232 = vmatpush2.bf16.msra.mxu0 0
      %2233 = vmatprep.subr.bf16.mxu0 0
      %2234 = vmatpush2.bf16.msra.mxu0 0
      %2235 = vmatprep.mubr.bf16.mxu0 0
      %2236 = vmatmul.mubr.bf16.gmra.mxu0 %v2201
      %v2237 = vpop.f32.mrf.mxu0
      %v2238 = vadd.f32 %v2186, %v2237
      %v2239 = vpop.f32.mrf.mxu0
      %v2240 = vpop.f32.mrf.mxu0
      %v2241 = vpop.f32.mrf.mxu0
      %2242 = vdwg.mxu0
      %v2243 = vld [vmem:[%s14] sm:$0xf]
      %v2244 = vld [vmem:[%s14 + $0x4] sm:$0xf]
      %v2245 = vld [vmem:[%s14 + $0x8] sm:$0xf]
      %v2246 = vld [vmem:[%s14 + $0xc] sm:$0xf]
      %v2247 = vld [vmem:[%s15] sm:$0x1]
      %v2249 = vlaneseq
      %v2250 = vshrl.u32 %v2249, 7
      %v2251 = vsub.s32 0, %v2250
      %v2252 = vrot.slane %v2247, %v2251
      %v2257 = vunpack.c.l.b16 %v901
      %v2258 = vunpack.c.l.b16 %v902
      %v2259 = vunpack.c.l.b16 %v903
      %v2260 = vpack.c.b16 %v2258, %v2257
      %v2261 = vpack.c.b16 %v2259, %v2259
      %v2266 = vunpack.c.l.b16 %v2243
      %v2267 = vunpack.c.l.b16 %v2244
      %v2268 = vunpack.c.l.b16 %v2245
      %v2269 = vunpack.c.l.b16 %v2246
      %v2270 = vpack.c.b16 %v2267, %v2266
      %v2271 = vpack.c.b16 %v2269, %v2268
      %v2275 = vsel %vm932, %v2260, 0
      %v2278 = vsel %vm932, %v2261, 0
      %2280 = vmatprep.subr.bf16.mxu0 0
      %2281 = vmatpush1.bf16.msra.mxu0 0
      %2282 = vmatprep.subr.bf16.mxu0 0
      %2283 = vmatpush1.bf16.msra.mxu0 0
      %2284 = vmatprep.subr.bf16.mxu0 0
      %2285 = vmatpush1.bf16.msra.mxu0 0
      %2286 = vmatprep.subr.bf16.mxu0 0
      %2287 = vmatpush1.bf16.msra.mxu0 0
      %2288 = vmatprep.subr.bf16.mxu0 0
      %2289 = vmatpush1.bf16.msra.mxu0 0
      %2290 = vmatprep.subr.bf16.mxu0 0
      %2291 = vmatpush1.bf16.msra.mxu0 0
      %2292 = vmatprep.subr.bf16.mxu0 0
      %2293 = vmatpush1.bf16.msra.mxu0 %v2271
      %2294 = vmatprep.subr.bf16.mxu0 0
      %2295 = vmatpush1.bf16.msra.mxu0 %v2270
      %2296 = vmatprep.subr.bf16.mxu0 0
      %2297 = vmatpush2.bf16.msra.mxu0 0
      %2298 = vmatprep.subr.bf16.mxu0 0
      %2299 = vmatpush2.bf16.msra.mxu0 0
      %2300 = vmatprep.subr.bf16.mxu0 0
      %2301 = vmatpush2.bf16.msra.mxu0 0
      %2302 = vmatprep.subr.bf16.mxu0 0
      %2303 = vmatpush2.bf16.msra.mxu0 0
      %2304 = vmatprep.subr.bf16.mxu0 0
      %2305 = vmatpush2.bf16.msra.mxu0 0
      %2306 = vmatprep.subr.bf16.mxu0 0
      %2307 = vmatpush2.bf16.msra.mxu0 0
      %2308 = vmatprep.subr.bf16.mxu0 0
      %2309 = vmatpush2.bf16.msra.mxu0 0
      %2310 = vmatprep.subr.bf16.mxu0 0
      %2311 = vmatpush2.bf16.msra.mxu0 0
      %2312 = vmatprep.mubr.bf16.mxu0 0
      %2313 = vmatmul.mubr.bf16.gmra.mxu0 %v2275
      %v2314 = vpop.f32.mrf.mxu0
      %v2315 = vadd.f32 %v2252, %v2314
      %v2316 = vpop.f32.mrf.mxu0
      %v2317 = vpop.f32.mrf.mxu0
      %v2318 = vadd.f32 %v2252, %v2317
      %v2319 = vpop.f32.mrf.mxu0
      %2320 = vmatprep.mubr.bf16.mxu0 0
      %2321 = vmatmul.mubr.bf16.gmra.mxu0 %v2278
      %v2322 = vpop.f32.mrf.mxu0
      %v2323 = vadd.f32 %v2252, %v2322
      %v2324 = vpop.f32.mrf.mxu0
      %v2325 = vpop.f32.mrf.mxu0
      %v2326 = vpop.f32.mrf.mxu0
      %2327 = vdwg.mxu0
      %v2328 = vld [vmem:[%s16] sm:$0xf]
      %v2329 = vld [vmem:[%s16 + $0x4] sm:$0xf]
      %v2330 = vld [vmem:[%s16 + $0x8] sm:$0xf]
      %v2331 = vld [vmem:[%s16 + $0xc] sm:$0xf]
      %v2332 = vld [vmem:[%s17] sm:$0x1]
      %v2334 = vlaneseq
      %v2335 = vshrl.u32 %v2334, 7
      %v2336 = vsub.s32 0, %v2335
      %v2337 = vrot.slane %v2332, %v2336
      %v2342 = vunpack.c.l.b16 %v904
      %v2343 = vunpack.c.l.b16 %v905
      %v2344 = vunpack.c.l.b16 %v906
      %v2345 = vpack.c.b16 %v2343, %v2342
      %v2346 = vpack.c.b16 %v2344, %v2344
      %v2351 = vunpack.c.l.b16 %v2328
      %v2352 = vunpack.c.l.b16 %v2329
      %v2353 = vunpack.c.l.b16 %v2330
      %v2354 = vunpack.c.l.b16 %v2331
      %v2355 = vpack.c.b16 %v2352, %v2351
      %v2356 = vpack.c.b16 %v2354, %v2353
      %v2360 = vsel %vm932, %v2345, 0
      %v2363 = vsel %vm932, %v2346, 0
      %2365 = vmatprep.subr.bf16.mxu0 0
      %2366 = vmatpush1.bf16.msra.mxu0 0
      %2367 = vmatprep.subr.bf16.mxu0 0
      %2368 = vmatpush1.bf16.msra.mxu0 0
      %2369 = vmatprep.subr.bf16.mxu0 0
      %2370 = vmatpush1.bf16.msra.mxu0 0
      %2371 = vmatprep.subr.bf16.mxu0 0
      %2372 = vmatpush1.bf16.msra.mxu0 0
      %2373 = vmatprep.subr.bf16.mxu0 0
      %2374 = vmatpush1.bf16.msra.mxu0 0
      %2375 = vmatprep.subr.bf16.mxu0 0
      %2376 = vmatpush1.bf16.msra.mxu0 0
      %2377 = vmatprep.subr.bf16.mxu0 0
      %2378 = vmatpush1.bf16.msra.mxu0 %v2356
      %2379 = vmatprep.subr.bf16.mxu0 0
      %2380 = vmatpush1.bf16.msra.mxu0 %v2355
      %2381 = vmatprep.subr.bf16.mxu0 0
      %2382 = vmatpush2.bf16.msra.mxu0 0
      %2383 = vmatprep.subr.bf16.mxu0 0
      %2384 = vmatpush2.bf16.msra.mxu0 0
      %2385 = vmatprep.subr.bf16.mxu0 0
      %2386 = vmatpush2.bf16.msra.mxu0 0
      %2387 = vmatprep.subr.bf16.mxu0 0
      %2388 = vmatpush2.bf16.msra.mxu0 0
      %2389 = vmatprep.subr.bf16.mxu0 0
      %2390 = vmatpush2.bf16.msra.mxu0 0
      %2391 = vmatprep.subr.bf16.mxu0 0
      %2392 = vmatpush2.bf16.msra.mxu0 0
      %2393 = vmatprep.subr.bf16.mxu0 0
      %2394 = vmatpush2.bf16.msra.mxu0 0
      %2395 = vmatprep.subr.bf16.mxu0 0
      %2396 = vmatpush2.bf16.msra.mxu0 0
      %2397 = vmatprep.mubr.bf16.mxu0 0
      %2398 = vmatmul.mubr.bf16.gmra.mxu0 %v2360
      %v2399 = vpop.f32.mrf.mxu0
      %v2400 = vadd.f32 %v2337, %v2399
      %v2401 = vpop.f32.mrf.mxu0
      %v2402 = vpop.f32.mrf.mxu0
      %v2403 = vadd.f32 %v2337, %v2402
      %v2404 = vpop.f32.mrf.mxu0
      %2405 = vmatprep.mubr.bf16.mxu0 0
      %2406 = vmatmul.mubr.bf16.gmra.mxu0 %v2363
      %v2407 = vpop.f32.mrf.mxu0
      %v2408 = vadd.f32 %v2337, %v2407
      %v2409 = vpop.f32.mrf.mxu0
      %v2410 = vpop.f32.mrf.mxu0
      %v2411 = vpop.f32.mrf.mxu0
      %2412 = vdwg.mxu0
      %2414 = vrot.lane.b32.xlu0 %v2238, 120
      %v2415 = vpop.permute.xlu0 %2414
      %2417 = vrot.lane.b32.xlu0 %v2238, 112
      %v2418 = vpop.permute.xlu0 %2417
      %2420 = vrot.lane.b32.xlu0 %v2238, 104
      %v2421 = vpop.permute.xlu0 %2420
      %v2423 = vcombine.low %v2238, %v2418
      %v2424 = vcombine.high %v2238, %v2418
      %v2426 = vunpack.c.l.s4 1983009808
      %v2427 = vunpack.c.0.s8 %v2426
      %v2428 = vlaneseq
      %v2429 = vshrl.u32 %v2428, 7
      %v2430 = vsub.s32 %v2427, %v2429
      %v2431 = vrot.slane %v2423, %v2430
      %v2433 = vunpack.c.l.s4 1983009808
      %v2434 = vunpack.c.0.s8 %v2433
      %v2435 = vlaneseq
      %v2436 = vshrl.u32 %v2435, 7
      %v2437 = vsub.s32 %v2434, %v2436
      %v2438 = vrot.slane %v2424, %v2437
      %v2439 = vcombine.low %v2415, %v2421
      %v2440 = vcombine.high %v2415, %v2421
      %v2442 = vunpack.c.l.s4 1983009808
      %v2443 = vunpack.c.0.s8 %v2442
      %v2444 = vlaneseq
      %v2445 = vshrl.u32 %v2444, 7
      %v2446 = vsub.s32 %v2443, %v2445
      %v2447 = vrot.slane %v2439, %v2446
      %v2449 = vunpack.c.l.s4 1983009808
      %v2450 = vunpack.c.0.s8 %v2449
      %v2451 = vlaneseq
      %v2452 = vshrl.u32 %v2451, 7
      %v2453 = vsub.s32 %v2450, %v2452
      %v2454 = vrot.slane %v2440, %v2453
      %v2455 = vcombine.low %v2431, %v2447
      %v2456 = vcombine.high %v2431, %v2447
      %v2458 = vunpack.c.l.s4 1934713408
      %v2459 = vunpack.c.0.s8 %v2458
      %v2460 = vlaneseq
      %v2461 = vshrl.u32 %v2460, 7
      %v2462 = vsub.s32 %v2459, %v2461
      %v2463 = vrot.slane %v2455, %v2462
      %v2465 = vunpack.c.l.s4 1934713408
      %v2466 = vunpack.c.0.s8 %v2465
      %v2467 = vlaneseq
      %v2468 = vshrl.u32 %v2467, 7
      %v2469 = vsub.s32 %v2466, %v2468
      %v2470 = vrot.slane %v2456, %v2469
      %v2471 = vcombine.low %v2438, %v2454
      %v2472 = vcombine.high %v2438, %v2454
      %v2474 = vunpack.c.l.s4 1934713408
      %v2475 = vunpack.c.0.s8 %v2474
      %v2476 = vlaneseq
      %v2477 = vshrl.u32 %v2476, 7
      %v2478 = vsub.s32 %v2475, %v2477
      %v2479 = vrot.slane %v2471, %v2478
      %v2481 = vunpack.c.l.s4 1934713408
      %v2482 = vunpack.c.0.s8 %v2481
      %v2483 = vlaneseq
      %v2484 = vshrl.u32 %v2483, 7
      %v2485 = vsub.s32 %v2482, %v2484
      %v2486 = vrot.slane %v2472, %v2485
      %v2487 = vcombine.high %v2463, 0.0
      %v2488 = vcombine.high %v2470, 0.0
      %v2489 = vcombine.high %v2479, 0.0
      %v2490 = vcombine.high %v2486, 0.0
      %v2491 = vcombine.low %v2463, %v2470
      %v2493 = vunpack.c.l.s4 1983009808
      %v2494 = vunpack.c.0.s8 %v2493
      %v2495 = vlaneseq
      %v2496 = vshrl.u32 %v2495, 7
      %v2497 = vsub.s32 %v2494, %v2496
      %v2498 = vrot.slane %v2491, %v2497
      %v2499 = vcombine.low %v2487, %v2488
      %v2501 = vunpack.c.l.s4 1983009808
      %v2502 = vunpack.c.0.s8 %v2501
      %v2503 = vlaneseq
      %v2504 = vshrl.u32 %v2503, 7
      %v2505 = vsub.s32 %v2502, %v2504
      %v2506 = vrot.slane %v2499, %v2505
      %v2507 = vcombine.low %v2479, %v2486
      %v2509 = vunpack.c.l.s4 1983009808
      %v2510 = vunpack.c.0.s8 %v2509
      %v2511 = vlaneseq
      %v2512 = vshrl.u32 %v2511, 7
      %v2513 = vsub.s32 %v2510, %v2512
      %v2514 = vrot.slane %v2507, %v2513
      %v2515 = vcombine.low %v2489, %v2490
      %v2517 = vunpack.c.l.s4 1983009808
      %v2518 = vunpack.c.0.s8 %v2517
      %v2519 = vlaneseq
      %v2520 = vshrl.u32 %v2519, 7
      %v2521 = vsub.s32 %v2518, %v2520
      %v2522 = vrot.slane %v2515, %v2521
      %v2523 = vcombine.low %v2498, %v2506
      %v2524 = vcombine.high %v2498, %v2506
      %v2526 = vunpack.c.l.s4 1934713408
      %v2527 = vunpack.c.0.s8 %v2526
      %v2528 = vlaneseq
      %v2529 = vshrl.u32 %v2528, 7
      %v2530 = vsub.s32 %v2527, %v2529
      %v2531 = vrot.slane %v2523, %v2530
      %v2533 = vunpack.c.l.s4 1934713408
      %v2534 = vunpack.c.0.s8 %v2533
      %v2535 = vlaneseq
      %v2536 = vshrl.u32 %v2535, 7
      %v2537 = vsub.s32 %v2534, %v2536
      %v2538 = vrot.slane %v2524, %v2537
      %v2539 = vcombine.low %v2514, %v2522
      %v2540 = vcombine.high %v2514, %v2522
      %v2542 = vunpack.c.l.s4 1934713408
      %v2543 = vunpack.c.0.s8 %v2542
      %v2544 = vlaneseq
      %v2545 = vshrl.u32 %v2544, 7
      %v2546 = vsub.s32 %v2543, %v2545
      %v2547 = vrot.slane %v2539, %v2546
      %v2549 = vunpack.c.l.s4 1934713408
      %v2550 = vunpack.c.0.s8 %v2549
      %v2551 = vlaneseq
      %v2552 = vshrl.u32 %v2551, 7
      %v2553 = vsub.s32 %v2550, %v2552
      %v2554 = vrot.slane %v2540, %v2553
      %v2555 = vcombine.low %v2531, %v2547
      %v2556 = vcombine.high %v2531, %v2547
      %v2557 = vcombine.low %v2538, %v2554
      %v2558 = vcombine.high %v2538, %v2554
      %v2559 = vpack.c.bf16 %v2555, %v2555
      %v2560 = vpack.c.bf16 %v2556, %v2556
      %v2561 = vpack.c.bf16 %v2557, %v2557
      %v2562 = vpack.c.bf16 %v2558, %v2558
      %2566 = vrot.lane.b32.xlu0 %v2315, 120
      %v2567 = vpop.permute.xlu0 %2566
      %2568 = vrot.lane.b32.xlu0 %v2318, 120
      %v2569 = vpop.permute.xlu0 %2568
      %2570 = vrot.lane.b32.xlu0 %v2323, 120
      %v2571 = vpop.permute.xlu0 %2570
      %2575 = vrot.lane.b32.xlu0 %v2315, 112
      %v2576 = vpop.permute.xlu0 %2575
      %2577 = vrot.lane.b32.xlu0 %v2318, 112
      %v2578 = vpop.permute.xlu0 %2577
      %2579 = vrot.lane.b32.xlu0 %v2323, 112
      %v2580 = vpop.permute.xlu0 %2579
      %2584 = vrot.lane.b32.xlu0 %v2315, 104
      %v2585 = vpop.permute.xlu0 %2584
      %2586 = vrot.lane.b32.xlu0 %v2318, 104
      %v2587 = vpop.permute.xlu0 %2586
      %2588 = vrot.lane.b32.xlu0 %v2323, 104
      %v2589 = vpop.permute.xlu0 %2588
      %v2593 = vcombine.low %v2315, %v2576
      %v2594 = vcombine.high %v2315, %v2576
      %v2596 = vunpack.c.l.s4 1983009808
      %v2597 = vunpack.c.0.s8 %v2596
      %v2598 = vlaneseq
      %v2599 = vshrl.u32 %v2598, 7
      %v2600 = vsub.s32 %v2597, %v2599
      %v2601 = vrot.slane %v2593, %v2600
      %v2603 = vunpack.c.l.s4 1983009808
      %v2604 = vunpack.c.0.s8 %v2603
      %v2605 = vlaneseq
      %v2606 = vshrl.u32 %v2605, 7
      %v2607 = vsub.s32 %v2604, %v2606
      %v2608 = vrot.slane %v2594, %v2607
      %v2609 = vcombine.low %v2567, %v2585
      %v2610 = vcombine.high %v2567, %v2585
      %v2612 = vunpack.c.l.s4 1983009808
      %v2613 = vunpack.c.0.s8 %v2612
      %v2614 = vlaneseq
      %v2615 = vshrl.u32 %v2614, 7
      %v2616 = vsub.s32 %v2613, %v2615
      %v2617 = vrot.slane %v2609, %v2616
      %v2619 = vunpack.c.l.s4 1983009808
      %v2620 = vunpack.c.0.s8 %v2619
      %v2621 = vlaneseq
      %v2622 = vshrl.u32 %v2621, 7
      %v2623 = vsub.s32 %v2620, %v2622
      %v2624 = vrot.slane %v2610, %v2623
      %v2625 = vcombine.low %v2601, %v2617
      %v2626 = vcombine.high %v2601, %v2617
      %v2628 = vunpack.c.l.s4 1934713408
      %v2629 = vunpack.c.0.s8 %v2628
      %v2630 = vlaneseq
      %v2631 = vshrl.u32 %v2630, 7
      %v2632 = vsub.s32 %v2629, %v2631
      %v2633 = vrot.slane %v2625, %v2632
      %v2635 = vunpack.c.l.s4 1934713408
      %v2636 = vunpack.c.0.s8 %v2635
      %v2637 = vlaneseq
      %v2638 = vshrl.u32 %v2637, 7
      %v2639 = vsub.s32 %v2636, %v2638
      %v2640 = vrot.slane %v2626, %v2639
      %v2641 = vcombine.low %v2608, %v2624
      %v2642 = vcombine.high %v2608, %v2624
      %v2644 = vunpack.c.l.s4 1934713408
      %v2645 = vunpack.c.0.s8 %v2644
      %v2646 = vlaneseq
      %v2647 = vshrl.u32 %v2646, 7
      %v2648 = vsub.s32 %v2645, %v2647
      %v2649 = vrot.slane %v2641, %v2648
      %v2651 = vunpack.c.l.s4 1934713408
      %v2652 = vunpack.c.0.s8 %v2651
      %v2653 = vlaneseq
      %v2654 = vshrl.u32 %v2653, 7
      %v2655 = vsub.s32 %v2652, %v2654
      %v2656 = vrot.slane %v2642, %v2655
      %v2657 = vcombine.high %v2633, 0.0
      %v2658 = vcombine.high %v2640, 0.0
      %v2659 = vcombine.high %v2649, 0.0
      %v2660 = vcombine.high %v2656, 0.0
      %v2661 = vcombine.low %v2318, %v2578
      %v2662 = vcombine.high %v2318, %v2578
      %v2664 = vunpack.c.l.s4 1983009808
      %v2665 = vunpack.c.0.s8 %v2664
      %v2666 = vlaneseq
      %v2667 = vshrl.u32 %v2666, 7
      %v2668 = vsub.s32 %v2665, %v2667
      %v2669 = vrot.slane %v2661, %v2668
      %v2671 = vunpack.c.l.s4 1983009808
      %v2672 = vunpack.c.0.s8 %v2671
      %v2673 = vlaneseq
      %v2674 = vshrl.u32 %v2673, 7
      %v2675 = vsub.s32 %v2672, %v2674
      %v2676 = vrot.slane %v2662, %v2675
      %v2677 = vcombine.low %v2569, %v2587
      %v2678 = vcombine.high %v2569, %v2587
      %v2680 = vunpack.c.l.s4 1983009808
      %v2681 = vunpack.c.0.s8 %v2680
      %v2682 = vlaneseq
      %v2683 = vshrl.u32 %v2682, 7
      %v2684 = vsub.s32 %v2681, %v2683
      %v2685 = vrot.slane %v2677, %v2684
      %v2687 = vunpack.c.l.s4 1983009808
      %v2688 = vunpack.c.0.s8 %v2687
      %v2689 = vlaneseq
      %v2690 = vshrl.u32 %v2689, 7
      %v2691 = vsub.s32 %v2688, %v2690
      %v2692 = vrot.slane %v2678, %v2691
      %v2693 = vcombine.low %v2669, %v2685
      %v2694 = vcombine.high %v2669, %v2685
      %v2696 = vunpack.c.l.s4 1934713408
      %v2697 = vunpack.c.0.s8 %v2696
      %v2698 = vlaneseq
      %v2699 = vshrl.u32 %v2698, 7
      %v2700 = vsub.s32 %v2697, %v2699
      %v2701 = vrot.slane %v2693, %v2700
      %v2703 = vunpack.c.l.s4 1934713408
      %v2704 = vunpack.c.0.s8 %v2703
      %v2705 = vlaneseq
      %v2706 = vshrl.u32 %v2705, 7
      %v2707 = vsub.s32 %v2704, %v2706
      %v2708 = vrot.slane %v2694, %v2707
      %v2709 = vcombine.low %v2676, %v2692
      %v2710 = vcombine.high %v2676, %v2692
      %v2712 = vunpack.c.l.s4 1934713408
      %v2713 = vunpack.c.0.s8 %v2712
      %v2714 = vlaneseq
      %v2715 = vshrl.u32 %v2714, 7
      %v2716 = vsub.s32 %v2713, %v2715
      %v2717 = vrot.slane %v2709, %v2716
      %v2719 = vunpack.c.l.s4 1934713408
      %v2720 = vunpack.c.0.s8 %v2719
      %v2721 = vlaneseq
      %v2722 = vshrl.u32 %v2721, 7
      %v2723 = vsub.s32 %v2720, %v2722
      %v2724 = vrot.slane %v2710, %v2723
      %v2725 = vcombine.high %v2701, 0.0
      %v2726 = vcombine.high %v2708, 0.0
      %v2727 = vcombine.high %v2717, 0.0
      %v2728 = vcombine.high %v2724, 0.0
      %v2729 = vcombine.low %v2323, %v2580
      %v2730 = vcombine.high %v2323, %v2580
      %v2732 = vunpack.c.l.s4 1983009808
      %v2733 = vunpack.c.0.s8 %v2732
      %v2734 = vlaneseq
      %v2735 = vshrl.u32 %v2734, 7
      %v2736 = vsub.s32 %v2733, %v2735
      %v2737 = vrot.slane %v2729, %v2736
      %v2739 = vunpack.c.l.s4 1983009808
      %v2740 = vunpack.c.0.s8 %v2739
      %v2741 = vlaneseq
      %v2742 = vshrl.u32 %v2741, 7
      %v2743 = vsub.s32 %v2740, %v2742
      %v2744 = vrot.slane %v2730, %v2743
      %v2745 = vcombine.low %v2571, %v2589
      %v2746 = vcombine.high %v2571, %v2589
      %v2748 = vunpack.c.l.s4 1983009808
      %v2749 = vunpack.c.0.s8 %v2748
      %v2750 = vlaneseq
      %v2751 = vshrl.u32 %v2750, 7
      %v2752 = vsub.s32 %v2749, %v2751
      %v2753 = vrot.slane %v2745, %v2752
      %v2755 = vunpack.c.l.s4 1983009808
      %v2756 = vunpack.c.0.s8 %v2755
      %v2757 = vlaneseq
      %v2758 = vshrl.u32 %v2757, 7
      %v2759 = vsub.s32 %v2756, %v2758
      %v2760 = vrot.slane %v2746, %v2759
      %v2761 = vcombine.low %v2737, %v2753
      %v2762 = vcombine.high %v2737, %v2753
      %v2764 = vunpack.c.l.s4 1934713408
      %v2765 = vunpack.c.0.s8 %v2764
      %v2766 = vlaneseq
      %v2767 = vshrl.u32 %v2766, 7
      %v2768 = vsub.s32 %v2765, %v2767
      %v2769 = vrot.slane %v2761, %v2768
      %v2771 = vunpack.c.l.s4 1934713408
      %v2772 = vunpack.c.0.s8 %v2771
      %v2773 = vlaneseq
      %v2774 = vshrl.u32 %v2773, 7
      %v2775 = vsub.s32 %v2772, %v2774
      %v2776 = vrot.slane %v2762, %v2775
      %v2777 = vcombine.low %v2744, %v2760
      %v2778 = vcombine.high %v2744, %v2760
      %v2780 = vunpack.c.l.s4 1934713408
      %v2781 = vunpack.c.0.s8 %v2780
      %v2782 = vlaneseq
      %v2783 = vshrl.u32 %v2782, 7
      %v2784 = vsub.s32 %v2781, %v2783
      %v2785 = vrot.slane %v2777, %v2784
      %v2787 = vunpack.c.l.s4 1934713408
      %v2788 = vunpack.c.0.s8 %v2787
      %v2789 = vlaneseq
      %v2790 = vshrl.u32 %v2789, 7
      %v2791 = vsub.s32 %v2788, %v2790
      %v2792 = vrot.slane %v2778, %v2791
      %v2793 = vcombine.high %v2769, 0.0
      %v2794 = vcombine.high %v2776, 0.0
      %v2795 = vcombine.high %v2785, 0.0
      %v2796 = vcombine.high %v2792, 0.0
      %v2797 = vcombine.low %v2633, %v2640
      %v2799 = vunpack.c.l.s4 1983009808
      %v2800 = vunpack.c.0.s8 %v2799
      %v2801 = vlaneseq
      %v2802 = vshrl.u32 %v2801, 7
      %v2803 = vsub.s32 %v2800, %v2802
      %v2804 = vrot.slane %v2797, %v2803
      %v2805 = vcombine.low %v2657, %v2658
      %v2807 = vunpack.c.l.s4 1983009808
      %v2808 = vunpack.c.0.s8 %v2807
      %v2809 = vlaneseq
      %v2810 = vshrl.u32 %v2809, 7
      %v2811 = vsub.s32 %v2808, %v2810
      %v2812 = vrot.slane %v2805, %v2811
      %v2813 = vcombine.low %v2649, %v2656
      %v2815 = vunpack.c.l.s4 1983009808
      %v2816 = vunpack.c.0.s8 %v2815
      %v2817 = vlaneseq
      %v2818 = vshrl.u32 %v2817, 7
      %v2819 = vsub.s32 %v2816, %v2818
      %v2820 = vrot.slane %v2813, %v2819
      %v2821 = vcombine.low %v2659, %v2660
      %v2823 = vunpack.c.l.s4 1983009808
      %v2824 = vunpack.c.0.s8 %v2823
      %v2825 = vlaneseq
      %v2826 = vshrl.u32 %v2825, 7
      %v2827 = vsub.s32 %v2824, %v2826
      %v2828 = vrot.slane %v2821, %v2827
      %v2829 = vcombine.low %v2804, %v2812
      %v2830 = vcombine.high %v2804, %v2812
      %v2832 = vunpack.c.l.s4 1934713408
      %v2833 = vunpack.c.0.s8 %v2832
      %v2834 = vlaneseq
      %v2835 = vshrl.u32 %v2834, 7
      %v2836 = vsub.s32 %v2833, %v2835
      %v2837 = vrot.slane %v2829, %v2836
      %v2839 = vunpack.c.l.s4 1934713408
      %v2840 = vunpack.c.0.s8 %v2839
      %v2841 = vlaneseq
      %v2842 = vshrl.u32 %v2841, 7
      %v2843 = vsub.s32 %v2840, %v2842
      %v2844 = vrot.slane %v2830, %v2843
      %v2845 = vcombine.low %v2820, %v2828
      %v2846 = vcombine.high %v2820, %v2828
      %v2848 = vunpack.c.l.s4 1934713408
      %v2849 = vunpack.c.0.s8 %v2848
      %v2850 = vlaneseq
      %v2851 = vshrl.u32 %v2850, 7
      %v2852 = vsub.s32 %v2849, %v2851
      %v2853 = vrot.slane %v2845, %v2852
      %v2855 = vunpack.c.l.s4 1934713408
      %v2856 = vunpack.c.0.s8 %v2855
      %v2857 = vlaneseq
      %v2858 = vshrl.u32 %v2857, 7
      %v2859 = vsub.s32 %v2856, %v2858
      %v2860 = vrot.slane %v2846, %v2859
      %v2861 = vcombine.low %v2837, %v2853
      %v2862 = vcombine.high %v2837, %v2853
      %v2863 = vcombine.low %v2844, %v2860
      %v2864 = vcombine.high %v2844, %v2860
      %v2865 = vcombine.low %v2701, %v2708
      %v2867 = vunpack.c.l.s4 1983009808
      %v2868 = vunpack.c.0.s8 %v2867
      %v2869 = vlaneseq
      %v2870 = vshrl.u32 %v2869, 7
      %v2871 = vsub.s32 %v2868, %v2870
      %v2872 = vrot.slane %v2865, %v2871
      %v2873 = vcombine.low %v2725, %v2726
      %v2875 = vunpack.c.l.s4 1983009808
      %v2876 = vunpack.c.0.s8 %v2875
      %v2877 = vlaneseq
      %v2878 = vshrl.u32 %v2877, 7
      %v2879 = vsub.s32 %v2876, %v2878
      %v2880 = vrot.slane %v2873, %v2879
      %v2881 = vcombine.low %v2717, %v2724
      %v2883 = vunpack.c.l.s4 1983009808
      %v2884 = vunpack.c.0.s8 %v2883
      %v2885 = vlaneseq
      %v2886 = vshrl.u32 %v2885, 7
      %v2887 = vsub.s32 %v2884, %v2886
      %v2888 = vrot.slane %v2881, %v2887
      %v2889 = vcombine.low %v2727, %v2728
      %v2891 = vunpack.c.l.s4 1983009808
      %v2892 = vunpack.c.0.s8 %v2891
      %v2893 = vlaneseq
      %v2894 = vshrl.u32 %v2893, 7
      %v2895 = vsub.s32 %v2892, %v2894
      %v2896 = vrot.slane %v2889, %v2895
      %v2897 = vcombine.low %v2872, %v2880
      %v2898 = vcombine.high %v2872, %v2880
      %v2900 = vunpack.c.l.s4 1934713408
      %v2901 = vunpack.c.0.s8 %v2900
      %v2902 = vlaneseq
      %v2903 = vshrl.u32 %v2902, 7
      %v2904 = vsub.s32 %v2901, %v2903
      %v2905 = vrot.slane %v2897, %v2904
      %v2907 = vunpack.c.l.s4 1934713408
      %v2908 = vunpack.c.0.s8 %v2907
      %v2909 = vlaneseq
      %v2910 = vshrl.u32 %v2909, 7
      %v2911 = vsub.s32 %v2908, %v2910
      %v2912 = vrot.slane %v2898, %v2911
      %v2913 = vcombine.low %v2888, %v2896
      %v2914 = vcombine.high %v2888, %v2896
      %v2916 = vunpack.c.l.s4 1934713408
      %v2917 = vunpack.c.0.s8 %v2916
      %v2918 = vlaneseq
      %v2919 = vshrl.u32 %v2918, 7
      %v2920 = vsub.s32 %v2917, %v2919
      %v2921 = vrot.slane %v2913, %v2920
      %v2923 = vunpack.c.l.s4 1934713408
      %v2924 = vunpack.c.0.s8 %v2923
      %v2925 = vlaneseq
      %v2926 = vshrl.u32 %v2925, 7
      %v2927 = vsub.s32 %v2924, %v2926
      %v2928 = vrot.slane %v2914, %v2927
      %v2929 = vcombine.low %v2905, %v2921
      %v2930 = vcombine.high %v2905, %v2921
      %v2931 = vcombine.low %v2912, %v2928
      %v2932 = vcombine.high %v2912, %v2928
      %v2933 = vcombine.low %v2769, %v2776
      %v2935 = vunpack.c.l.s4 1983009808
      %v2936 = vunpack.c.0.s8 %v2935
      %v2937 = vlaneseq
      %v2938 = vshrl.u32 %v2937, 7
      %v2939 = vsub.s32 %v2936, %v2938
      %v2940 = vrot.slane %v2933, %v2939
      %v2941 = vcombine.low %v2793, %v2794
      %v2943 = vunpack.c.l.s4 1983009808
      %v2944 = vunpack.c.0.s8 %v2943
      %v2945 = vlaneseq
      %v2946 = vshrl.u32 %v2945, 7
      %v2947 = vsub.s32 %v2944, %v2946
      %v2948 = vrot.slane %v2941, %v2947
      %v2949 = vcombine.low %v2785, %v2792
      %v2951 = vunpack.c.l.s4 1983009808
      %v2952 = vunpack.c.0.s8 %v2951
      %v2953 = vlaneseq
      %v2954 = vshrl.u32 %v2953, 7
      %v2955 = vsub.s32 %v2952, %v2954
      %v2956 = vrot.slane %v2949, %v2955
      %v2957 = vcombine.low %v2795, %v2796
      %v2959 = vunpack.c.l.s4 1983009808
      %v2960 = vunpack.c.0.s8 %v2959
      %v2961 = vlaneseq
      %v2962 = vshrl.u32 %v2961, 7
      %v2963 = vsub.s32 %v2960, %v2962
      %v2964 = vrot.slane %v2957, %v2963
      %v2965 = vcombine.low %v2940, %v2948
      %v2966 = vcombine.high %v2940, %v2948
      %v2968 = vunpack.c.l.s4 1934713408
      %v2969 = vunpack.c.0.s8 %v2968
      %v2970 = vlaneseq
      %v2971 = vshrl.u32 %v2970, 7
      %v2972 = vsub.s32 %v2969, %v2971
      %v2973 = vrot.slane %v2965, %v2972
      %v2975 = vunpack.c.l.s4 1934713408
      %v2976 = vunpack.c.0.s8 %v2975
      %v2977 = vlaneseq
      %v2978 = vshrl.u32 %v2977, 7
      %v2979 = vsub.s32 %v2976, %v2978
      %v2980 = vrot.slane %v2966, %v2979
      %v2981 = vcombine.low %v2956, %v2964
      %v2982 = vcombine.high %v2956, %v2964
      %v2984 = vunpack.c.l.s4 1934713408
      %v2985 = vunpack.c.0.s8 %v2984
      %v2986 = vlaneseq
      %v2987 = vshrl.u32 %v2986, 7
      %v2988 = vsub.s32 %v2985, %v2987
      %v2989 = vrot.slane %v2981, %v2988
      %v2991 = vunpack.c.l.s4 1934713408
      %v2992 = vunpack.c.0.s8 %v2991
      %v2993 = vlaneseq
      %v2994 = vshrl.u32 %v2993, 7
      %v2995 = vsub.s32 %v2992, %v2994
      %v2996 = vrot.slane %v2982, %v2995
      %v2997 = vcombine.low %v2973, %v2989
      %v2998 = vcombine.high %v2973, %v2989
      %v2999 = vcombine.low %v2980, %v2996
      %v3000 = vcombine.high %v2980, %v2996
      %v3001 = vpack.c.bf16 %v2929, %v2861
      %v3002 = vpack.c.bf16 %v2997, %v2997
      %v3003 = vpack.c.bf16 %v2930, %v2862
      %v3004 = vpack.c.bf16 %v2998, %v2998
      %v3005 = vpack.c.bf16 %v2931, %v2863
      %v3006 = vpack.c.bf16 %v2999, %v2999
      %v3007 = vpack.c.bf16 %v2932, %v2864
      %v3008 = vpack.c.bf16 %v3000, %v3000
      %3012 = vrot.lane.b32.xlu0 %v2400, 120
      %v3013 = vpop.permute.xlu0 %3012
      %3014 = vrot.lane.b32.xlu0 %v2403, 120
      %v3015 = vpop.permute.xlu0 %3014
      %3016 = vrot.lane.b32.xlu0 %v2408, 120
      %v3017 = vpop.permute.xlu0 %3016
      %3021 = vrot.lane.b32.xlu0 %v2400, 112
      %v3022 = vpop.permute.xlu0 %3021
      %3023 = vrot.lane.b32.xlu0 %v2403, 112
      %v3024 = vpop.permute.xlu0 %3023
      %3025 = vrot.lane.b32.xlu0 %v2408, 112
      %v3026 = vpop.permute.xlu0 %3025
      %3030 = vrot.lane.b32.xlu0 %v2400, 104
      %v3031 = vpop.permute.xlu0 %3030
      %3032 = vrot.lane.b32.xlu0 %v2403, 104
      %v3033 = vpop.permute.xlu0 %3032
      %3034 = vrot.lane.b32.xlu0 %v2408, 104
      %v3035 = vpop.permute.xlu0 %3034
      %v3039 = vcombine.low %v2400, %v3022
      %v3040 = vcombine.high %v2400, %v3022
      %v3042 = vunpack.c.l.s4 1983009808
      %v3043 = vunpack.c.0.s8 %v3042
      %v3044 = vlaneseq
      %v3045 = vshrl.u32 %v3044, 7
      %v3046 = vsub.s32 %v3043, %v3045
      %v3047 = vrot.slane %v3039, %v3046
      %v3049 = vunpack.c.l.s4 1983009808
      %v3050 = vunpack.c.0.s8 %v3049
      %v3051 = vlaneseq
      %v3052 = vshrl.u32 %v3051, 7
      %v3053 = vsub.s32 %v3050, %v3052
      %v3054 = vrot.slane %v3040, %v3053
      %v3055 = vcombine.low %v3013, %v3031
      %v3056 = vcombine.high %v3013, %v3031
      %v3058 = vunpack.c.l.s4 1983009808
      %v3059 = vunpack.c.0.s8 %v3058
      %v3060 = vlaneseq
      %v3061 = vshrl.u32 %v3060, 7
      %v3062 = vsub.s32 %v3059, %v3061
      %v3063 = vrot.slane %v3055, %v3062
      %v3065 = vunpack.c.l.s4 1983009808
      %v3066 = vunpack.c.0.s8 %v3065
      %v3067 = vlaneseq
      %v3068 = vshrl.u32 %v3067, 7
      %v3069 = vsub.s32 %v3066, %v3068
      %v3070 = vrot.slane %v3056, %v3069
      %v3071 = vcombine.low %v3047, %v3063
      %v3072 = vcombine.high %v3047, %v3063
      %v3074 = vunpack.c.l.s4 1934713408
      %v3075 = vunpack.c.0.s8 %v3074
      %v3076 = vlaneseq
      %v3077 = vshrl.u32 %v3076, 7
      %v3078 = vsub.s32 %v3075, %v3077
      %v3079 = vrot.slane %v3071, %v3078
      %v3081 = vunpack.c.l.s4 1934713408
      %v3082 = vunpack.c.0.s8 %v3081
      %v3083 = vlaneseq
      %v3084 = vshrl.u32 %v3083, 7
      %v3085 = vsub.s32 %v3082, %v3084
      %v3086 = vrot.slane %v3072, %v3085
      %v3087 = vcombine.low %v3054, %v3070
      %v3088 = vcombine.high %v3054, %v3070
      %v3090 = vunpack.c.l.s4 1934713408
      %v3091 = vunpack.c.0.s8 %v3090
      %v3092 = vlaneseq
      %v3093 = vshrl.u32 %v3092, 7
      %v3094 = vsub.s32 %v3091, %v3093
      %v3095 = vrot.slane %v3087, %v3094
      %v3097 = vunpack.c.l.s4 1934713408
      %v3098 = vunpack.c.0.s8 %v3097
      %v3099 = vlaneseq
      %v3100 = vshrl.u32 %v3099, 7
      %v3101 = vsub.s32 %v3098, %v3100
      %v3102 = vrot.slane %v3088, %v3101
      %v3103 = vcombine.high %v3079, 0.0
      %v3104 = vcombine.high %v3086, 0.0
      %v3105 = vcombine.high %v3095, 0.0
      %v3106 = vcombine.high %v3102, 0.0
      %v3107 = vcombine.low %v2403, %v3024
      %v3108 = vcombine.high %v2403, %v3024
      %v3110 = vunpack.c.l.s4 1983009808
      %v3111 = vunpack.c.0.s8 %v3110
      %v3112 = vlaneseq
      %v3113 = vshrl.u32 %v3112, 7
      %v3114 = vsub.s32 %v3111, %v3113
      %v3115 = vrot.slane %v3107, %v3114
      %v3117 = vunpack.c.l.s4 1983009808
      %v3118 = vunpack.c.0.s8 %v3117
      %v3119 = vlaneseq
      %v3120 = vshrl.u32 %v3119, 7
      %v3121 = vsub.s32 %v3118, %v3120
      %v3122 = vrot.slane %v3108, %v3121
      %v3123 = vcombine.low %v3015, %v3033
      %v3124 = vcombine.high %v3015, %v3033
      %v3126 = vunpack.c.l.s4 1983009808
      %v3127 = vunpack.c.0.s8 %v3126
      %v3128 = vlaneseq
      %v3129 = vshrl.u32 %v3128, 7
      %v3130 = vsub.s32 %v3127, %v3129
      %v3131 = vrot.slane %v3123, %v3130
      %v3133 = vunpack.c.l.s4 1983009808
      %v3134 = vunpack.c.0.s8 %v3133
      %v3135 = vlaneseq
      %v3136 = vshrl.u32 %v3135, 7
      %v3137 = vsub.s32 %v3134, %v3136
      %v3138 = vrot.slane %v3124, %v3137
      %v3139 = vcombine.low %v3115, %v3131
      %v3140 = vcombine.high %v3115, %v3131
      %v3142 = vunpack.c.l.s4 1934713408
      %v3143 = vunpack.c.0.s8 %v3142
      %v3144 = vlaneseq
      %v3145 = vshrl.u32 %v3144, 7
      %v3146 = vsub.s32 %v3143, %v3145
      %v3147 = vrot.slane %v3139, %v3146
      %v3149 = vunpack.c.l.s4 1934713408
      %v3150 = vunpack.c.0.s8 %v3149
      %v3151 = vlaneseq
      %v3152 = vshrl.u32 %v3151, 7
      %v3153 = vsub.s32 %v3150, %v3152
      %v3154 = vrot.slane %v3140, %v3153
      %v3155 = vcombine.low %v3122, %v3138
      %v3156 = vcombine.high %v3122, %v3138
      %v3158 = vunpack.c.l.s4 1934713408
      %v3159 = vunpack.c.0.s8 %v3158
      %v3160 = vlaneseq
      %v3161 = vshrl.u32 %v3160, 7
      %v3162 = vsub.s32 %v3159, %v3161
      %v3163 = vrot.slane %v3155, %v3162
      %v3165 = vunpack.c.l.s4 1934713408
      %v3166 = vunpack.c.0.s8 %v3165
      %v3167 = vlaneseq
      %v3168 = vshrl.u32 %v3167, 7
      %v3169 = vsub.s32 %v3166, %v3168
      %v3170 = vrot.slane %v3156, %v3169
      %v3171 = vcombine.high %v3147, 0.0
      %v3172 = vcombine.high %v3154, 0.0
      %v3173 = vcombine.high %v3163, 0.0
      %v3174 = vcombine.high %v3170, 0.0
      %v3175 = vcombine.low %v2408, %v3026
      %v3176 = vcombine.high %v2408, %v3026
      %v3178 = vunpack.c.l.s4 1983009808
      %v3179 = vunpack.c.0.s8 %v3178
      %v3180 = vlaneseq
      %v3181 = vshrl.u32 %v3180, 7
      %v3182 = vsub.s32 %v3179, %v3181
      %v3183 = vrot.slane %v3175, %v3182
      %v3185 = vunpack.c.l.s4 1983009808
      %v3186 = vunpack.c.0.s8 %v3185
      %v3187 = vlaneseq
      %v3188 = vshrl.u32 %v3187, 7
      %v3189 = vsub.s32 %v3186, %v3188
      %v3190 = vrot.slane %v3176, %v3189
      %v3191 = vcombine.low %v3017, %v3035
      %v3192 = vcombine.high %v3017, %v3035
      %v3194 = vunpack.c.l.s4 1983009808
      %v3195 = vunpack.c.0.s8 %v3194
      %v3196 = vlaneseq
      %v3197 = vshrl.u32 %v3196, 7
      %v3198 = vsub.s32 %v3195, %v3197
      %v3199 = vrot.slane %v3191, %v3198
      %v3201 = vunpack.c.l.s4 1983009808
      %v3202 = vunpack.c.0.s8 %v3201
      %v3203 = vlaneseq
      %v3204 = vshrl.u32 %v3203, 7
      %v3205 = vsub.s32 %v3202, %v3204
      %v3206 = vrot.slane %v3192, %v3205
      %v3207 = vcombine.low %v3183, %v3199
      %v3208 = vcombine.high %v3183, %v3199
      %v3210 = vunpack.c.l.s4 1934713408
      %v3211 = vunpack.c.0.s8 %v3210
      %v3212 = vlaneseq
      %v3213 = vshrl.u32 %v3212, 7
      %v3214 = vsub.s32 %v3211, %v3213
      %v3215 = vrot.slane %v3207, %v3214
      %v3217 = vunpack.c.l.s4 1934713408
      %v3218 = vunpack.c.0.s8 %v3217
      %v3219 = vlaneseq
      %v3220 = vshrl.u32 %v3219, 7
      %v3221 = vsub.s32 %v3218, %v3220
      %v3222 = vrot.slane %v3208, %v3221
      %v3223 = vcombine.low %v3190, %v3206
      %v3224 = vcombine.high %v3190, %v3206
      %v3226 = vunpack.c.l.s4 1934713408
      %v3227 = vunpack.c.0.s8 %v3226
      %v3228 = vlaneseq
      %v3229 = vshrl.u32 %v3228, 7
      %v3230 = vsub.s32 %v3227, %v3229
      %v3231 = vrot.slane %v3223, %v3230
      %v3233 = vunpack.c.l.s4 1934713408
      %v3234 = vunpack.c.0.s8 %v3233
      %v3235 = vlaneseq
      %v3236 = vshrl.u32 %v3235, 7
      %v3237 = vsub.s32 %v3234, %v3236
      %v3238 = vrot.slane %v3224, %v3237
      %v3239 = vcombine.high %v3215, 0.0
      %v3240 = vcombine.high %v3222, 0.0
      %v3241 = vcombine.high %v3231, 0.0
      %v3242 = vcombine.high %v3238, 0.0
      %v3243 = vcombine.low %v3079, %v3086
      %v3245 = vunpack.c.l.s4 1983009808
      %v3246 = vunpack.c.0.s8 %v3245
      %v3247 = vlaneseq
      %v3248 = vshrl.u32 %v3247, 7
      %v3249 = vsub.s32 %v3246, %v3248
      %v3250 = vrot.slane %v3243, %v3249
      %v3251 = vcombine.low %v3103, %v3104
      %v3253 = vunpack.c.l.s4 1983009808
      %v3254 = vunpack.c.0.s8 %v3253
      %v3255 = vlaneseq
      %v3256 = vshrl.u32 %v3255, 7
      %v3257 = vsub.s32 %v3254, %v3256
      %v3258 = vrot.slane %v3251, %v3257
      %v3259 = vcombine.low %v3095, %v3102
      %v3261 = vunpack.c.l.s4 1983009808
      %v3262 = vunpack.c.0.s8 %v3261
      %v3263 = vlaneseq
      %v3264 = vshrl.u32 %v3263, 7
      %v3265 = vsub.s32 %v3262, %v3264
      %v3266 = vrot.slane %v3259, %v3265
      %v3267 = vcombine.low %v3105, %v3106
      %v3269 = vunpack.c.l.s4 1983009808
      %v3270 = vunpack.c.0.s8 %v3269
      %v3271 = vlaneseq
      %v3272 = vshrl.u32 %v3271, 7
      %v3273 = vsub.s32 %v3270, %v3272
      %v3274 = vrot.slane %v3267, %v3273
      %v3275 = vcombine.low %v3250, %v3258
      %v3276 = vcombine.high %v3250, %v3258
      %v3278 = vunpack.c.l.s4 1934713408
      %v3279 = vunpack.c.0.s8 %v3278
      %v3280 = vlaneseq
      %v3281 = vshrl.u32 %v3280, 7
      %v3282 = vsub.s32 %v3279, %v3281
      %v3283 = vrot.slane %v3275, %v3282
      %v3285 = vunpack.c.l.s4 1934713408
      %v3286 = vunpack.c.0.s8 %v3285
      %v3287 = vlaneseq
      %v3288 = vshrl.u32 %v3287, 7
      %v3289 = vsub.s32 %v3286, %v3288
      %v3290 = vrot.slane %v3276, %v3289
      %v3291 = vcombine.low %v3266, %v3274
      %v3292 = vcombine.high %v3266, %v3274
      %v3294 = vunpack.c.l.s4 1934713408
      %v3295 = vunpack.c.0.s8 %v3294
      %v3296 = vlaneseq
      %v3297 = vshrl.u32 %v3296, 7
      %v3298 = vsub.s32 %v3295, %v3297
      %v3299 = vrot.slane %v3291, %v3298
      %v3301 = vunpack.c.l.s4 1934713408
      %v3302 = vunpack.c.0.s8 %v3301
      %v3303 = vlaneseq
      %v3304 = vshrl.u32 %v3303, 7
      %v3305 = vsub.s32 %v3302, %v3304
      %v3306 = vrot.slane %v3292, %v3305
      %v3307 = vcombine.low %v3283, %v3299
      %v3308 = vcombine.high %v3283, %v3299
      %v3309 = vcombine.low %v3290, %v3306
      %v3310 = vcombine.high %v3290, %v3306
      %v3311 = vcombine.low %v3147, %v3154
      %v3313 = vunpack.c.l.s4 1983009808
      %v3314 = vunpack.c.0.s8 %v3313
      %v3315 = vlaneseq
      %v3316 = vshrl.u32 %v3315, 7
      %v3317 = vsub.s32 %v3314, %v3316
      %v3318 = vrot.slane %v3311, %v3317
      %v3319 = vcombine.low %v3171, %v3172
      %v3321 = vunpack.c.l.s4 1983009808
      %v3322 = vunpack.c.0.s8 %v3321
      %v3323 = vlaneseq
      %v3324 = vshrl.u32 %v3323, 7
      %v3325 = vsub.s32 %v3322, %v3324
      %v3326 = vrot.slane %v3319, %v3325
      %v3327 = vcombine.low %v3163, %v3170
      %v3329 = vunpack.c.l.s4 1983009808
      %v3330 = vunpack.c.0.s8 %v3329
      %v3331 = vlaneseq
      %v3332 = vshrl.u32 %v3331, 7
      %v3333 = vsub.s32 %v3330, %v3332
      %v3334 = vrot.slane %v3327, %v3333
      %v3335 = vcombine.low %v3173, %v3174
      %v3337 = vunpack.c.l.s4 1983009808
      %v3338 = vunpack.c.0.s8 %v3337
      %v3339 = vlaneseq
      %v3340 = vshrl.u32 %v3339, 7
      %v3341 = vsub.s32 %v3338, %v3340
      %v3342 = vrot.slane %v3335, %v3341
      %v3343 = vcombine.low %v3318, %v3326
      %v3344 = vcombine.high %v3318, %v3326
      %v3346 = vunpack.c.l.s4 1934713408
      %v3347 = vunpack.c.0.s8 %v3346
      %v3348 = vlaneseq
      %v3349 = vshrl.u32 %v3348, 7
      %v3350 = vsub.s32 %v3347, %v3349
      %v3351 = vrot.slane %v3343, %v3350
      %v3353 = vunpack.c.l.s4 1934713408
      %v3354 = vunpack.c.0.s8 %v3353
      %v3355 = vlaneseq
      %v3356 = vshrl.u32 %v3355, 7
      %v3357 = vsub.s32 %v3354, %v3356
      %v3358 = vrot.slane %v3344, %v3357
      %v3359 = vcombine.low %v3334, %v3342
      %v3360 = vcombine.high %v3334, %v3342
      %v3362 = vunpack.c.l.s4 1934713408
      %v3363 = vunpack.c.0.s8 %v3362
      %v3364 = vlaneseq
      %v3365 = vshrl.u32 %v3364, 7
      %v3366 = vsub.s32 %v3363, %v3365
      %v3367 = vrot.slane %v3359, %v3366
      %v3369 = vunpack.c.l.s4 1934713408
      %v3370 = vunpack.c.0.s8 %v3369
      %v3371 = vlaneseq
      %v3372 = vshrl.u32 %v3371, 7
      %v3373 = vsub.s32 %v3370, %v3372
      %v3374 = vrot.slane %v3360, %v3373
      %v3375 = vcombine.low %v3351, %v3367
      %v3376 = vcombine.high %v3351, %v3367
      %v3377 = vcombine.low %v3358, %v3374
      %v3378 = vcombine.high %v3358, %v3374
      %v3379 = vcombine.low %v3215, %v3222
      %v3381 = vunpack.c.l.s4 1983009808
      %v3382 = vunpack.c.0.s8 %v3381
      %v3383 = vlaneseq
      %v3384 = vshrl.u32 %v3383, 7
      %v3385 = vsub.s32 %v3382, %v3384
      %v3386 = vrot.slane %v3379, %v3385
      %v3387 = vcombine.low %v3239, %v3240
      %v3389 = vunpack.c.l.s4 1983009808
      %v3390 = vunpack.c.0.s8 %v3389
      %v3391 = vlaneseq
      %v3392 = vshrl.u32 %v3391, 7
      %v3393 = vsub.s32 %v3390, %v3392
      %v3394 = vrot.slane %v3387, %v3393
      %v3395 = vcombine.low %v3231, %v3238
      %v3397 = vunpack.c.l.s4 1983009808
      %v3398 = vunpack.c.0.s8 %v3397
      %v3399 = vlaneseq
      %v3400 = vshrl.u32 %v3399, 7
      %v3401 = vsub.s32 %v3398, %v3400
      %v3402 = vrot.slane %v3395, %v3401
      %v3403 = vcombine.low %v3241, %v3242
      %v3405 = vunpack.c.l.s4 1983009808
      %v3406 = vunpack.c.0.s8 %v3405
      %v3407 = vlaneseq
      %v3408 = vshrl.u32 %v3407, 7
      %v3409 = vsub.s32 %v3406, %v3408
      %v3410 = vrot.slane %v3403, %v3409
      %v3411 = vcombine.low %v3386, %v3394
      %v3412 = vcombine.high %v3386, %v3394
      %v3414 = vunpack.c.l.s4 1934713408
      %v3415 = vunpack.c.0.s8 %v3414
      %v3416 = vlaneseq
      %v3417 = vshrl.u32 %v3416, 7
      %v3418 = vsub.s32 %v3415, %v3417
      %v3419 = vrot.slane %v3411, %v3418
      %v3421 = vunpack.c.l.s4 1934713408
      %v3422 = vunpack.c.0.s8 %v3421
      %v3423 = vlaneseq
      %v3424 = vshrl.u32 %v3423, 7
      %v3425 = vsub.s32 %v3422, %v3424
      %v3426 = vrot.slane %v3412, %v3425
      %v3427 = vcombine.low %v3402, %v3410
      %v3428 = vcombine.high %v3402, %v3410
      %v3430 = vunpack.c.l.s4 1934713408
      %v3431 = vunpack.c.0.s8 %v3430
      %v3432 = vlaneseq
      %v3433 = vshrl.u32 %v3432, 7
      %v3434 = vsub.s32 %v3431, %v3433
      %v3435 = vrot.slane %v3427, %v3434
      %v3437 = vunpack.c.l.s4 1934713408
      %v3438 = vunpack.c.0.s8 %v3437
      %v3439 = vlaneseq
      %v3440 = vshrl.u32 %v3439, 7
      %v3441 = vsub.s32 %v3438, %v3440
      %v3442 = vrot.slane %v3428, %v3441
      %v3443 = vcombine.low %v3419, %v3435
      %v3444 = vcombine.high %v3419, %v3435
      %v3445 = vcombine.low %v3426, %v3442
      %v3446 = vcombine.high %v3426, %v3442
      %v3447 = vpack.c.bf16 %v3375, %v3307
      %v3448 = vpack.c.bf16 %v3443, %v3443
      %v3449 = vpack.c.bf16 %v3376, %v3308
      %v3450 = vpack.c.bf16 %v3444, %v3444
      %v3451 = vpack.c.bf16 %v3377, %v3309
      %v3452 = vpack.c.bf16 %v3445, %v3445
      %v3453 = vpack.c.bf16 %v3378, %v3310
      %v3454 = vpack.c.bf16 %v3446, %v3446
      %v3456 = vsel %vm1495, %v2559, 0
      %v3459 = vsel %vm1495, %v3001, 0
      %v3462 = vsel %vm1495, %v3002, 0
      %3464 = vmatprep.subr.bf16.mxu0 0
      %3465 = vmatpush1.bf16.xpose.msra.mxu0 0
      %3466 = vmatprep.subr.bf16.mxu0 0
      %3467 = vmatpush1.bf16.xpose.msra.mxu0 0
      %3468 = vmatprep.subr.bf16.mxu0 0
      %3469 = vmatpush1.bf16.xpose.msra.mxu0 0
      %3470 = vmatprep.subr.bf16.mxu0 0
      %3471 = vmatpush1.bf16.xpose.msra.mxu0 0
      %3472 = vmatprep.subr.bf16.mxu0 0
      %3473 = vmatpush1.bf16.xpose.msra.mxu0 0
      %3474 = vmatprep.subr.bf16.mxu0 0
      %3475 = vmatpush1.bf16.xpose.msra.mxu0 0
      %3476 = vmatprep.subr.bf16.mxu0 0
      %3477 = vmatpush1.bf16.xpose.msra.mxu0 %v3462
      %3478 = vmatprep.subr.bf16.mxu0 0
      %3479 = vmatpush1.bf16.xpose.msra.mxu0 %v3459
      %3480 = vmatprep.subr.bf16.mxu0 0
      %3481 = vmatpush2.bf16.xpose.msra.mxu0 0
      %3482 = vmatprep.subr.bf16.mxu0 0
      %3483 = vmatpush2.bf16.xpose.msra.mxu0 0
      %3484 = vmatprep.subr.bf16.mxu0 0
      %3485 = vmatpush2.bf16.xpose.msra.mxu0 0
      %3486 = vmatprep.subr.bf16.mxu0 0
      %3487 = vmatpush2.bf16.xpose.msra.mxu0 0
      %3488 = vmatprep.subr.bf16.mxu0 0
      %3489 = vmatpush2.bf16.xpose.msra.mxu0 0
      %3490 = vmatprep.subr.bf16.mxu0 0
      %3491 = vmatpush2.bf16.xpose.msra.mxu0 0
      %3492 = vmatprep.subr.bf16.mxu0 0
      %3493 = vmatpush2.bf16.xpose.msra.mxu0 0
      %3494 = vmatprep.subr.bf16.mxu0 0
      %3495 = vmatpush2.bf16.xpose.msra.mxu0 0
      %3496 = vmatprep.mubr.bf16.mxu0 0
      %3497 = vmatmul.mubr.bf16.gmra.mxu0 %v3456
      %v3498 = vpop.f32.mrf.mxu0
      %v3499 = vadd.f32 0.0, %v3498
      %v3500 = vpop.f32.mrf.mxu0
      %v3501 = vpop.f32.mrf.mxu0
      %v3502 = vpop.f32.mrf.mxu0
      %3503 = vdwg.mxu0
      %v3505 = vsel %vm1495, %v2560, 0
      %v3508 = vsel %vm1495, %v3003, 0
      %v3511 = vsel %vm1495, %v3004, 0
      %3513 = vmatprep.subr.bf16.mxu0 0
      %3514 = vmatpush1.bf16.xpose.msra.mxu0 0
      %3515 = vmatprep.subr.bf16.mxu0 0
      %3516 = vmatpush1.bf16.xpose.msra.mxu0 0
      %3517 = vmatprep.subr.bf16.mxu0 0
      %3518 = vmatpush1.bf16.xpose.msra.mxu0 0
      %3519 = vmatprep.subr.bf16.mxu0 0
      %3520 = vmatpush1.bf16.xpose.msra.mxu0 0
      %3521 = vmatprep.subr.bf16.mxu0 0
      %3522 = vmatpush1.bf16.xpose.msra.mxu0 0
      %3523 = vmatprep.subr.bf16.mxu0 0
      %3524 = vmatpush1.bf16.xpose.msra.mxu0 0
      %3525 = vmatprep.subr.bf16.mxu0 0
      %3526 = vmatpush1.bf16.xpose.msra.mxu0 %v3511
      %3527 = vmatprep.subr.bf16.mxu0 0
      %3528 = vmatpush1.bf16.xpose.msra.mxu0 %v3508
      %3529 = vmatprep.subr.bf16.mxu0 0
      %3530 = vmatpush2.bf16.xpose.msra.mxu0 0
      %3531 = vmatprep.subr.bf16.mxu0 0
      %3532 = vmatpush2.bf16.xpose.msra.mxu0 0
      %3533 = vmatprep.subr.bf16.mxu0 0
      %3534 = vmatpush2.bf16.xpose.msra.mxu0 0
      %3535 = vmatprep.subr.bf16.mxu0 0
      %3536 = vmatpush2.bf16.xpose.msra.mxu0 0
      %3537 = vmatprep.subr.bf16.mxu0 0
      %3538 = vmatpush2.bf16.xpose.msra.mxu0 0
      %3539 = vmatprep.subr.bf16.mxu0 0
      %3540 = vmatpush2.bf16.xpose.msra.mxu0 0
      %3541 = vmatprep.subr.bf16.mxu0 0
      %3542 = vmatpush2.bf16.xpose.msra.mxu0 0
      %3543 = vmatprep.subr.bf16.mxu0 0
      %3544 = vmatpush2.bf16.xpose.msra.mxu0 0
      %3545 = vmatprep.mubr.bf16.mxu0 0
      %3546 = vmatmul.mubr.bf16.gmra.mxu0 %v3505
      %v3547 = vpop.f32.mrf.mxu0
      %v3548 = vadd.f32 0.0, %v3547
      %v3549 = vpop.f32.mrf.mxu0
      %v3550 = vpop.f32.mrf.mxu0
      %v3551 = vpop.f32.mrf.mxu0
      %3552 = vdwg.mxu0
      %v3554 = vsel %vm1495, %v2561, 0
      %v3557 = vsel %vm1495, %v3005, 0
      %v3560 = vsel %vm1495, %v3006, 0
      %3562 = vmatprep.subr.bf16.mxu0 0
      %3563 = vmatpush1.bf16.xpose.msra.mxu0 0
      %3564 = vmatprep.subr.bf16.mxu0 0
      %3565 = vmatpush1.bf16.xpose.msra.mxu0 0
      %3566 = vmatprep.subr.bf16.mxu0 0
      %3567 = vmatpush1.bf16.xpose.msra.mxu0 0
      %3568 = vmatprep.subr.bf16.mxu0 0
      %3569 = vmatpush1.bf16.xpose.msra.mxu0 0
      %3570 = vmatprep.subr.bf16.mxu0 0
      %3571 = vmatpush1.bf16.xpose.msra.mxu0 0
      %3572 = vmatprep.subr.bf16.mxu0 0
      %3573 = vmatpush1.bf16.xpose.msra.mxu0 0
      %3574 = vmatprep.subr.bf16.mxu0 0
      %3575 = vmatpush1.bf16.xpose.msra.mxu0 %v3560
      %3576 = vmatprep.subr.bf16.mxu0 0
      %3577 = vmatpush1.bf16.xpose.msra.mxu0 %v3557
      %3578 = vmatprep.subr.bf16.mxu0 0
      %3579 = vmatpush2.bf16.xpose.msra.mxu0 0
      %3580 = vmatprep.subr.bf16.mxu0 0
      %3581 = vmatpush2.bf16.xpose.msra.mxu0 0
      %3582 = vmatprep.subr.bf16.mxu0 0
      %3583 = vmatpush2.bf16.xpose.msra.mxu0 0
      %3584 = vmatprep.subr.bf16.mxu0 0
      %3585 = vmatpush2.bf16.xpose.msra.mxu0 0
      %3586 = vmatprep.subr.bf16.mxu0 0
      %3587 = vmatpush2.bf16.xpose.msra.mxu0 0
      %3588 = vmatprep.subr.bf16.mxu0 0
      %3589 = vmatpush2.bf16.xpose.msra.mxu0 0
      %3590 = vmatprep.subr.bf16.mxu0 0
      %3591 = vmatpush2.bf16.xpose.msra.mxu0 0
      %3592 = vmatprep.subr.bf16.mxu0 0
      %3593 = vmatpush2.bf16.xpose.msra.mxu0 0
      %3594 = vmatprep.mubr.bf16.mxu0 0
      %3595 = vmatmul.mubr.bf16.gmra.mxu0 %v3554
      %v3596 = vpop.f32.mrf.mxu0
      %v3597 = vadd.f32 0.0, %v3596
      %v3598 = vpop.f32.mrf.mxu0
      %v3599 = vpop.f32.mrf.mxu0
      %v3600 = vpop.f32.mrf.mxu0
      %3601 = vdwg.mxu0
      %v3603 = vsel %vm1495, %v2562, 0
      %v3606 = vsel %vm1495, %v3007, 0
      %v3609 = vsel %vm1495, %v3008, 0
      %3611 = vmatprep.subr.bf16.mxu0 0
      %3612 = vmatpush1.bf16.xpose.msra.mxu0 0
      %3613 = vmatprep.subr.bf16.mxu0 0
      %3614 = vmatpush1.bf16.xpose.msra.mxu0 0
      %3615 = vmatprep.subr.bf16.mxu0 0
      %3616 = vmatpush1.bf16.xpose.msra.mxu0 0
      %3617 = vmatprep.subr.bf16.mxu0 0
      %3618 = vmatpush1.bf16.xpose.msra.mxu0 0
      %3619 = vmatprep.subr.bf16.mxu0 0
      %3620 = vmatpush1.bf16.xpose.msra.mxu0 0
      %3621 = vmatprep.subr.bf16.mxu0 0
      %3622 = vmatpush1.bf16.xpose.msra.mxu0 0
      %3623 = vmatprep.subr.bf16.mxu0 0
      %3624 = vmatpush1.bf16.xpose.msra.mxu0 %v3609
      %3625 = vmatprep.subr.bf16.mxu0 0
      %3626 = vmatpush1.bf16.xpose.msra.mxu0 %v3606
      %3627 = vmatprep.subr.bf16.mxu0 0
      %3628 = vmatpush2.bf16.xpose.msra.mxu0 0
      %3629 = vmatprep.subr.bf16.mxu0 0
      %3630 = vmatpush2.bf16.xpose.msra.mxu0 0
      %3631 = vmatprep.subr.bf16.mxu0 0
      %3632 = vmatpush2.bf16.xpose.msra.mxu0 0
      %3633 = vmatprep.subr.bf16.mxu0 0
      %3634 = vmatpush2.bf16.xpose.msra.mxu0 0
      %3635 = vmatprep.subr.bf16.mxu0 0
      %3636 = vmatpush2.bf16.xpose.msra.mxu0 0
      %3637 = vmatprep.subr.bf16.mxu0 0
      %3638 = vmatpush2.bf16.xpose.msra.mxu0 0
      %3639 = vmatprep.subr.bf16.mxu0 0
      %3640 = vmatpush2.bf16.xpose.msra.mxu0 0
      %3641 = vmatprep.subr.bf16.mxu0 0
      %3642 = vmatpush2.bf16.xpose.msra.mxu0 0
      %3643 = vmatprep.mubr.bf16.mxu0 0
      %3644 = vmatmul.mubr.bf16.gmra.mxu0 %v3603
      %v3645 = vpop.f32.mrf.mxu0
      %v3646 = vadd.f32 0.0, %v3645
      %v3647 = vpop.f32.mrf.mxu0
      %v3648 = vpop.f32.mrf.mxu0
      %v3649 = vpop.f32.mrf.mxu0
      %3650 = vdwg.mxu0
      %v3651 = vmul.f32 %v3499, 0.35355338
      %v3652 = vmul.f32 %v3548, 0.35355338
      %v3653 = vmul.f32 %v3597, 0.35355338
      %v3654 = vmul.f32 %v3646, 0.35355338
      %vm3655 = vcmp.lt.s32.totalorder %v1685, 20
      %v3656 = vsel %vm3655, %v3651, -1e+30
      %v3657 = vsel %vm3655, %v3652, -1e+30
      %v3658 = vsel %vm3655, %v3653, -1e+30
      %v3659 = vsel %vm3655, %v3654, -1e+30
      %v3660 = vsel %vm2075, %v3656, -inf
      %3661 = vmax.xlane.f32.xlu0 %v3660
      %v3662 = vpop.xlane.xlu0 %3661
      %v3663 = vsel %vm2075, %v3657, -inf
      %3664 = vmax.xlane.f32.xlu0 %v3663
      %v3665 = vpop.xlane.xlu0 %3664
      %v3666 = vsel %vm2075, %v3658, -inf
      %3667 = vmax.xlane.f32.xlu0 %v3666
      %v3668 = vpop.xlane.xlu0 %3667
      %v3669 = vsel %vm2075, %v3659, -inf
      %3670 = vmax.xlane.f32.xlu0 %v3669
      %v3671 = vpop.xlane.xlu0 %3670
      %v3672 = vsub.f32 %v3656, %v3662
      %v3673 = vsub.f32 %v3657, %v3665
      %v3674 = vsub.f32 %v3658, %v3668
      %v3675 = vsub.f32 %v3659, %v3671
      %v3676 = vmul.f32 %v3672, 1.442695
      %v3677 = vpow.pop %v3676
      %v3678 = vmul.f32 %v3673, 1.442695
      %v3679 = vpow.pop %v3678
      %v3680 = vmul.f32 %v3674, 1.442695
      %v3681 = vpow.pop %v3680
      %v3682 = vmul.f32 %v3675, 1.442695
      %v3683 = vpow.pop %v3682
      %v3684 = vsel %vm2075, %v3677, 0.0
      %3685 = vadd.xlane.f32.xlu0 %v3684
      %v3686 = vpop.xlane.xlu0 %3685
      %v3687 = vsel %vm2075, %v3679, 0.0
      %3688 = vadd.xlane.f32.xlu0 %v3687
      %v3689 = vpop.xlane.xlu0 %3688
      %v3690 = vsel %vm2075, %v3681, 0.0
      %3691 = vadd.xlane.f32.xlu0 %v3690
      %v3692 = vpop.xlane.xlu0 %3691
      %v3693 = vsel %vm2075, %v3683, 0.0
      %3694 = vadd.xlane.f32.xlu0 %v3693
      %v3695 = vpop.xlane.xlu0 %3694
      %v3696 = vrcp.pop %v3686
      %v3697 = vrcp.pop %v3689
      %v3698 = vrcp.pop %v3692
      %v3699 = vrcp.pop %v3695
      %v3700 = vmul.f32 %v3677, %v3696
      %v3701 = vmul.f32 %v3679, %v3697
      %v3702 = vmul.f32 %v3681, %v3698
      %v3703 = vmul.f32 %v3683, %v3699
      %v3704 = vpack.c.bf16 %v3700, %v3700
      %v3705 = vpack.c.bf16 %v3701, %v3701
      %v3706 = vpack.c.bf16 %v3702, %v3702
      %v3707 = vpack.c.bf16 %v3703, %v3703
      %v3709 = vsel %vm2075, %v3704, 0
      %v3712 = vsel %vm1742, %v3448, 0
      %3714 = vmatprep.subr.bf16.mxu0 0
      %3715 = vmatpush1.bf16.msra.mxu0 0
      %3716 = vmatprep.subr.bf16.mxu0 0
      %3717 = vmatpush1.bf16.msra.mxu0 0
      %3718 = vmatprep.subr.bf16.mxu0 0
      %3719 = vmatpush1.bf16.msra.mxu0 0
      %3720 = vmatprep.subr.bf16.mxu0 0
      %3721 = vmatpush1.bf16.msra.mxu0 0
      %3722 = vmatprep.subr.bf16.mxu0 0
      %3723 = vmatpush1.bf16.msra.mxu0 0
      %3724 = vmatprep.subr.bf16.mxu0 0
      %3725 = vmatpush1.bf16.msra.mxu0 0
      %3726 = vmatprep.subr.bf16.mxu0 0
      %3727 = vmatpush1.bf16.msra.mxu0 %v3712
      %3728 = vmatprep.subr.bf16.mxu0 0
      %3729 = vmatpush1.bf16.msra.mxu0 %v3447
      %3730 = vmatprep.subr.bf16.mxu0 0
      %3731 = vmatpush2.bf16.msra.mxu0 0
      %3732 = vmatprep.subr.bf16.mxu0 0
      %3733 = vmatpush2.bf16.msra.mxu0 0
      %3734 = vmatprep.subr.bf16.mxu0 0
      %3735 = vmatpush2.bf16.msra.mxu0 0
      %3736 = vmatprep.subr.bf16.mxu0 0
      %3737 = vmatpush2.bf16.msra.mxu0 0
      %3738 = vmatprep.subr.bf16.mxu0 0
      %3739 = vmatpush2.bf16.msra.mxu0 0
      %3740 = vmatprep.subr.bf16.mxu0 0
      %3741 = vmatpush2.bf16.msra.mxu0 0
      %3742 = vmatprep.subr.bf16.mxu0 0
      %3743 = vmatpush2.bf16.msra.mxu0 0
      %3744 = vmatprep.subr.bf16.mxu0 0
      %3745 = vmatpush2.bf16.msra.mxu0 0
      %3746 = vmatprep.mubr.bf16.mxu0 0
      %3747 = vmatmul.mubr.bf16.gmra.mxu0 %v3709
      %v3748 = vpop.f32.mrf.mxu0
      %v3749 = vadd.f32 0.0, %v3748
      %v3750 = vpop.f32.mrf.mxu0
      %v3751 = vpop.f32.mrf.mxu0
      %v3752 = vpop.f32.mrf.mxu0
      %3753 = vdwg.mxu0
      %v3755 = vsel %vm2075, %v3705, 0
      %v3758 = vsel %vm1742, %v3450, 0
      %3760 = vmatprep.subr.bf16.mxu0 0
      %3761 = vmatpush1.bf16.msra.mxu0 0
      %3762 = vmatprep.subr.bf16.mxu0 0
      %3763 = vmatpush1.bf16.msra.mxu0 0
      %3764 = vmatprep.subr.bf16.mxu0 0
      %3765 = vmatpush1.bf16.msra.mxu0 0
      %3766 = vmatprep.subr.bf16.mxu0 0
      %3767 = vmatpush1.bf16.msra.mxu0 0
      %3768 = vmatprep.subr.bf16.mxu0 0
      %3769 = vmatpush1.bf16.msra.mxu0 0
      %3770 = vmatprep.subr.bf16.mxu0 0
      %3771 = vmatpush1.bf16.msra.mxu0 0
      %3772 = vmatprep.subr.bf16.mxu0 0
      %3773 = vmatpush1.bf16.msra.mxu0 %v3758
      %3774 = vmatprep.subr.bf16.mxu0 0
      %3775 = vmatpush1.bf16.msra.mxu0 %v3449
      %3776 = vmatprep.subr.bf16.mxu0 0
      %3777 = vmatpush2.bf16.msra.mxu0 0
      %3778 = vmatprep.subr.bf16.mxu0 0
      %3779 = vmatpush2.bf16.msra.mxu0 0
      %3780 = vmatprep.subr.bf16.mxu0 0
      %3781 = vmatpush2.bf16.msra.mxu0 0
      %3782 = vmatprep.subr.bf16.mxu0 0
      %3783 = vmatpush2.bf16.msra.mxu0 0
      %3784 = vmatprep.subr.bf16.mxu0 0
      %3785 = vmatpush2.bf16.msra.mxu0 0
      %3786 = vmatprep.subr.bf16.mxu0 0
      %3787 = vmatpush2.bf16.msra.mxu0 0
      %3788 = vmatprep.subr.bf16.mxu0 0
      %3789 = vmatpush2.bf16.msra.mxu0 0
      %3790 = vmatprep.subr.bf16.mxu0 0
      %3791 = vmatpush2.bf16.msra.mxu0 0
      %3792 = vmatprep.mubr.bf16.mxu0 0
      %3793 = vmatmul.mubr.bf16.gmra.mxu0 %v3755
      %v3794 = vpop.f32.mrf.mxu0
      %v3795 = vadd.f32 0.0, %v3794
      %v3796 = vpop.f32.mrf.mxu0
      %v3797 = vpop.f32.mrf.mxu0
      %v3798 = vpop.f32.mrf.mxu0
      %3799 = vdwg.mxu0
      %v3801 = vsel %vm2075, %v3706, 0
      %v3804 = vsel %vm1742, %v3452, 0
      %3806 = vmatprep.subr.bf16.mxu0 0
      %3807 = vmatpush1.bf16.msra.mxu0 0
      %3808 = vmatprep.subr.bf16.mxu0 0
      %3809 = vmatpush1.bf16.msra.mxu0 0
      %3810 = vmatprep.subr.bf16.mxu0 0
      %3811 = vmatpush1.bf16.msra.mxu0 0
      %3812 = vmatprep.subr.bf16.mxu0 0
      %3813 = vmatpush1.bf16.msra.mxu0 0
      %3814 = vmatprep.subr.bf16.mxu0 0
      %3815 = vmatpush1.bf16.msra.mxu0 0
      %3816 = vmatprep.subr.bf16.mxu0 0
      %3817 = vmatpush1.bf16.msra.mxu0 0
      %3818 = vmatprep.subr.bf16.mxu0 0
      %3819 = vmatpush1.bf16.msra.mxu0 %v3804
      %3820 = vmatprep.subr.bf16.mxu0 0
      %3821 = vmatpush1.bf16.msra.mxu0 %v3451
      %3822 = vmatprep.subr.bf16.mxu0 0
      %3823 = vmatpush2.bf16.msra.mxu0 0
      %3824 = vmatprep.subr.bf16.mxu0 0
      %3825 = vmatpush2.bf16.msra.mxu0 0
      %3826 = vmatprep.subr.bf16.mxu0 0
      %3827 = vmatpush2.bf16.msra.mxu0 0
      %3828 = vmatprep.subr.bf16.mxu0 0
      %3829 = vmatpush2.bf16.msra.mxu0 0
      %3830 = vmatprep.subr.bf16.mxu0 0
      %3831 = vmatpush2.bf16.msra.mxu0 0
      %3832 = vmatprep.subr.bf16.mxu0 0
      %3833 = vmatpush2.bf16.msra.mxu0 0
      %3834 = vmatprep.subr.bf16.mxu0 0
      %3835 = vmatpush2.bf16.msra.mxu0 0
      %3836 = vmatprep.subr.bf16.mxu0 0
      %3837 = vmatpush2.bf16.msra.mxu0 0
      %3838 = vmatprep.mubr.bf16.mxu0 0
      %3839 = vmatmul.mubr.bf16.gmra.mxu0 %v3801
      %v3840 = vpop.f32.mrf.mxu0
      %v3841 = vadd.f32 0.0, %v3840
      %v3842 = vpop.f32.mrf.mxu0
      %v3843 = vpop.f32.mrf.mxu0
      %v3844 = vpop.f32.mrf.mxu0
      %3845 = vdwg.mxu0
      %v3847 = vsel %vm2075, %v3707, 0
      %v3850 = vsel %vm1742, %v3454, 0
      %3852 = vmatprep.subr.bf16.mxu0 0
      %3853 = vmatpush1.bf16.msra.mxu0 0
      %3854 = vmatprep.subr.bf16.mxu0 0
      %3855 = vmatpush1.bf16.msra.mxu0 0
      %3856 = vmatprep.subr.bf16.mxu0 0
      %3857 = vmatpush1.bf16.msra.mxu0 0
      %3858 = vmatprep.subr.bf16.mxu0 0
      %3859 = vmatpush1.bf16.msra.mxu0 0
      %3860 = vmatprep.subr.bf16.mxu0 0
      %3861 = vmatpush1.bf16.msra.mxu0 0
      %3862 = vmatprep.subr.bf16.mxu0 0
      %3863 = vmatpush1.bf16.msra.mxu0 0
      %3864 = vmatprep.subr.bf16.mxu0 0
      %3865 = vmatpush1.bf16.msra.mxu0 %v3850
      %3866 = vmatprep.subr.bf16.mxu0 0
      %3867 = vmatpush1.bf16.msra.mxu0 %v3453
      %3868 = vmatprep.subr.bf16.mxu0 0
      %3869 = vmatpush2.bf16.msra.mxu0 0
      %3870 = vmatprep.subr.bf16.mxu0 0
      %3871 = vmatpush2.bf16.msra.mxu0 0
      %3872 = vmatprep.subr.bf16.mxu0 0
      %3873 = vmatpush2.bf16.msra.mxu0 0
      %3874 = vmatprep.subr.bf16.mxu0 0
      %3875 = vmatpush2.bf16.msra.mxu0 0
      %3876 = vmatprep.subr.bf16.mxu0 0
      %3877 = vmatpush2.bf16.msra.mxu0 0
      %3878 = vmatprep.subr.bf16.mxu0 0
      %3879 = vmatpush2.bf16.msra.mxu0 0
      %3880 = vmatprep.subr.bf16.mxu0 0
      %3881 = vmatpush2.bf16.msra.mxu0 0
      %3882 = vmatprep.subr.bf16.mxu0 0
      %3883 = vmatpush2.bf16.msra.mxu0 0
      %3884 = vmatprep.mubr.bf16.mxu0 0
      %3885 = vmatmul.mubr.bf16.gmra.mxu0 %v3847
      %v3886 = vpop.f32.mrf.mxu0
      %v3887 = vadd.f32 0.0, %v3886
      %v3888 = vpop.f32.mrf.mxu0
      %v3889 = vpop.f32.mrf.mxu0
      %v3890 = vpop.f32.mrf.mxu0
      %3891 = vdwg.mxu0
      %v3892 = vcombine.low %v3749, %v3841
      %v3893 = vcombine.high %v3749, %v3841
      %v3895 = vunpack.c.l.s4 1983009808
      %v3896 = vunpack.c.0.s8 %v3895
      %v3897 = vlaneseq
      %v3898 = vshrl.u32 %v3897, 7
      %v3899 = vsub.s32 %v3896, %v3898
      %v3900 = vrot.slane %v3892, %v3899
      %v3902 = vunpack.c.l.s4 1983009808
      %v3903 = vunpack.c.0.s8 %v3902
      %v3904 = vlaneseq
      %v3905 = vshrl.u32 %v3904, 7
      %v3906 = vsub.s32 %v3903, %v3905
      %v3907 = vrot.slane %v3893, %v3906
      %v3908 = vcombine.low %v3795, %v3887
      %v3909 = vcombine.high %v3795, %v3887
      %v3911 = vunpack.c.l.s4 1983009808
      %v3912 = vunpack.c.0.s8 %v3911
      %v3913 = vlaneseq
      %v3914 = vshrl.u32 %v3913, 7
      %v3915 = vsub.s32 %v3912, %v3914
      %v3916 = vrot.slane %v3908, %v3915
      %v3918 = vunpack.c.l.s4 1983009808
      %v3919 = vunpack.c.0.s8 %v3918
      %v3920 = vlaneseq
      %v3921 = vshrl.u32 %v3920, 7
      %v3922 = vsub.s32 %v3919, %v3921
      %v3923 = vrot.slane %v3909, %v3922
      %v3924 = vcombine.low %v3900, %v3916
      %v3925 = vcombine.high %v3900, %v3916
      %v3927 = vunpack.c.l.s4 1934713408
      %v3928 = vunpack.c.0.s8 %v3927
      %v3929 = vlaneseq
      %v3930 = vshrl.u32 %v3929, 7
      %v3931 = vsub.s32 %v3928, %v3930
      %v3932 = vrot.slane %v3924, %v3931
      %v3934 = vunpack.c.l.s4 1934713408
      %v3935 = vunpack.c.0.s8 %v3934
      %v3936 = vlaneseq
      %v3937 = vshrl.u32 %v3936, 7
      %v3938 = vsub.s32 %v3935, %v3937
      %v3939 = vrot.slane %v3925, %v3938
      %v3940 = vcombine.low %v3907, %v3923
      %v3941 = vcombine.high %v3907, %v3923
      %v3943 = vunpack.c.l.s4 1934713408
      %v3944 = vunpack.c.0.s8 %v3943
      %v3945 = vlaneseq
      %v3946 = vshrl.u32 %v3945, 7
      %v3947 = vsub.s32 %v3944, %v3946
      %v3948 = vrot.slane %v3940, %v3947
      %v3950 = vunpack.c.l.s4 1934713408
      %v3951 = vunpack.c.0.s8 %v3950
      %v3952 = vlaneseq
      %v3953 = vshrl.u32 %v3952, 7
      %v3954 = vsub.s32 %v3951, %v3953
      %v3955 = vrot.slane %v3941, %v3954
      %v3956 = vcombine.high %v3932, 0.0
      %v3957 = vcombine.high %v3939, 0.0
      %v3958 = vcombine.high %v3948, 0.0
      %v3959 = vcombine.high %v3955, 0.0
      %v3960 = vcombine.low %v3932, %v3939
      %v3962 = vunpack.c.l.s4 1983009808
      %v3963 = vunpack.c.0.s8 %v3962
      %v3964 = vlaneseq
      %v3965 = vshrl.u32 %v3964, 7
      %v3966 = vsub.s32 %v3963, %v3965
      %v3967 = vrot.slane %v3960, %v3966
      %v3968 = vcombine.low %v3956, %v3957
      %v3970 = vunpack.c.l.s4 1983009808
      %v3971 = vunpack.c.0.s8 %v3970
      %v3972 = vlaneseq
      %v3973 = vshrl.u32 %v3972, 7
      %v3974 = vsub.s32 %v3971, %v3973
      %v3975 = vrot.slane %v3968, %v3974
      %v3976 = vcombine.low %v3948, %v3955
      %v3978 = vunpack.c.l.s4 1983009808
      %v3979 = vunpack.c.0.s8 %v3978
      %v3980 = vlaneseq
      %v3981 = vshrl.u32 %v3980, 7
      %v3982 = vsub.s32 %v3979, %v3981
      %v3983 = vrot.slane %v3976, %v3982
      %v3984 = vcombine.low %v3958, %v3959
      %v3986 = vunpack.c.l.s4 1983009808
      %v3987 = vunpack.c.0.s8 %v3986
      %v3988 = vlaneseq
      %v3989 = vshrl.u32 %v3988, 7
      %v3990 = vsub.s32 %v3987, %v3989
      %v3991 = vrot.slane %v3984, %v3990
      %v3992 = vcombine.low %v3967, %v3975
      %v3993 = vcombine.high %v3967, %v3975
      %v3995 = vunpack.c.l.s4 1934713408
      %v3996 = vunpack.c.0.s8 %v3995
      %v3997 = vlaneseq
      %v3998 = vshrl.u32 %v3997, 7
      %v3999 = vsub.s32 %v3996, %v3998
      %v4000 = vrot.slane %v3992, %v3999
      %v4002 = vunpack.c.l.s4 1934713408
      %v4003 = vunpack.c.0.s8 %v4002
      %v4004 = vlaneseq
      %v4005 = vshrl.u32 %v4004, 7
      %v4006 = vsub.s32 %v4003, %v4005
      %v4007 = vrot.slane %v3993, %v4006
      %v4008 = vcombine.low %v3983, %v3991
      %v4009 = vcombine.high %v3983, %v3991
      %v4011 = vunpack.c.l.s4 1934713408
      %v4012 = vunpack.c.0.s8 %v4011
      %v4013 = vlaneseq
      %v4014 = vshrl.u32 %v4013, 7
      %v4015 = vsub.s32 %v4012, %v4014
      %v4016 = vrot.slane %v4008, %v4015
      %v4018 = vunpack.c.l.s4 1934713408
      %v4019 = vunpack.c.0.s8 %v4018
      %v4020 = vlaneseq
      %v4021 = vshrl.u32 %v4020, 7
      %v4022 = vsub.s32 %v4019, %v4021
      %v4023 = vrot.slane %v4009, %v4022
      %v4024 = vcombine.low %v4000, %v4016
      %v4025 = vcombine.high %v4000, %v4016
      %v4026 = vcombine.low %v4007, %v4023
      %v4027 = vcombine.high %v4007, %v4023
      %4029 = vrot.lane.b32.xlu0 %v4025, 8
      %v4030 = vpop.permute.xlu0 %4029
      %4033 = vrot.lane.b32.xlu0 %v4026, 16
      %v4034 = vpop.permute.xlu0 %4033
      %4037 = vrot.lane.b32.xlu0 %v4027, 24
      %v4038 = vpop.permute.xlu0 %4037
      %v4040 = vsel %vm1495, %v4024, %v4030
      %v4041 = vsel %vm2073, %v4040, %v4034
      %v4042 = vsel %vm2075, %v4041, %v4038
      %v4043 = vpack.c.bf16 %v4042, %v4042
      %v4044 = vld [vmem:[%s18] sm:$0xf]
      %v4045 = vld [vmem:[%s18 + $0x4] sm:$0xf]
      %v4046 = vld [vmem:[%s18 + $0x8] sm:$0xf]
      %v4047 = vld [vmem:[%s18 + $0xc] sm:$0xf]
      %v4048 = vld [vmem:[%s19] sm:$0x1]
      %v4050 = vlaneseq
      %v4051 = vshrl.u32 %v4050, 7
      %v4052 = vsub.s32 0, %v4051
      %v4053 = vrot.slane %v4048, %v4052
      %v4059 = vunpack.c.l.b16 %v4044
      %v4060 = vunpack.c.l.b16 %v4045
      %v4061 = vunpack.c.l.b16 %v4046
      %v4062 = vunpack.c.l.b16 %v4047
      %v4063 = vpack.c.b16 %v4060, %v4059
      %v4064 = vpack.c.b16 %v4062, %v4061
      %v4068 = vsel %vm932, %v4043, 0
      %4070 = vmatprep.subr.bf16.mxu0 0
      %4071 = vmatpush1.bf16.msra.mxu0 0
      %4072 = vmatprep.subr.bf16.mxu0 0
      %4073 = vmatpush1.bf16.msra.mxu0 0
      %4074 = vmatprep.subr.bf16.mxu0 0
      %4075 = vmatpush1.bf16.msra.mxu0 0
      %4076 = vmatprep.subr.bf16.mxu0 0
      %4077 = vmatpush1.bf16.msra.mxu0 0
      %4078 = vmatprep.subr.bf16.mxu0 0
      %4079 = vmatpush1.bf16.msra.mxu0 0
      %4080 = vmatprep.subr.bf16.mxu0 0
      %4081 = vmatpush1.bf16.msra.mxu0 0
      %4082 = vmatprep.subr.bf16.mxu0 0
      %4083 = vmatpush1.bf16.msra.mxu0 %v4064
      %4084 = vmatprep.subr.bf16.mxu0 0
      %4085 = vmatpush1.bf16.msra.mxu0 %v4063
      %4086 = vmatprep.subr.bf16.mxu0 0
      %4087 = vmatpush2.bf16.msra.mxu0 0
      %4088 = vmatprep.subr.bf16.mxu0 0
      %4089 = vmatpush2.bf16.msra.mxu0 0
      %4090 = vmatprep.subr.bf16.mxu0 0
      %4091 = vmatpush2.bf16.msra.mxu0 0
      %4092 = vmatprep.subr.bf16.mxu0 0
      %4093 = vmatpush2.bf16.msra.mxu0 0
      %4094 = vmatprep.subr.bf16.mxu0 0
      %4095 = vmatpush2.bf16.msra.mxu0 0
      %4096 = vmatprep.subr.bf16.mxu0 0
      %4097 = vmatpush2.bf16.msra.mxu0 0
      %4098 = vmatprep.subr.bf16.mxu0 0
      %4099 = vmatpush2.bf16.msra.mxu0 0
      %4100 = vmatprep.subr.bf16.mxu0 0
      %4101 = vmatpush2.bf16.msra.mxu0 0
      %4102 = vmatprep.mubr.bf16.mxu0 0
      %4103 = vmatmul.mubr.bf16.gmra.mxu0 %v4068
      %v4104 = vpop.f32.mrf.mxu0
      %v4105 = vadd.f32 %v4053, %v4104
      %v4106 = vpop.f32.mrf.mxu0
      %v4107 = vpop.f32.mrf.mxu0
      %v4108 = vpop.f32.mrf.mxu0
      %4109 = vdwg.mxu0
      %v4110 = vadd.f32 %v2174, %v4105
      %v4111 = vld [vmem:[%s20] sm:$0x1]
      %v4112 = vld [vmem:[%s21] sm:$0x1]
      %v4113 = vsel %vm932, %v4110, 0.0
      %4114 = vadd.xlane.f32.xlu0 %v4113
      %v4115 = vpop.xlane.xlu0 %4114
      %v4116 = vmul.f32 %v4115, %v2150
      %v4117 = vsub.f32 %v4110, %v4116
      %v4118 = vmul.f32 %v4117, %v4117
      %v4119 = vsel %vm932, %v4118, 0.0
      %4120 = vadd.xlane.f32.xlu0 %v4119
      %v4121 = vpop.xlane.xlu0 %4120
      %v4122 = vmul.f32 %v4121, %v2150
      %v4123 = vadd.f32 %v4122, 1e-05
      %v4124 = vrsqrt.pop %v4123
      %v4125 = vmul.f32 %v4117, %v4124
      %v4127 = vlaneseq
      %v4128 = vshrl.u32 %v4127, 7
      %v4129 = vsub.s32 0, %v4128
      %v4130 = vrot.slane %v4111, %v4129
      %v4132 = vmul.f32 %v4125, %v4130
      %v4134 = vlaneseq
      %v4135 = vshrl.u32 %v4134, 7
      %v4136 = vsub.s32 0, %v4135
      %v4137 = vrot.slane %v4112, %v4136
      %v4139 = vadd.f32 %v4132, %v4137
      %v4140 = vpack.c.bf16 %v4139, %v4139
      %v4141 = vld [vmem:[%s22] sm:$0xf]
      %v4142 = vld [vmem:[%s22 + $0x4] sm:$0xf]
      %v4143 = vld [vmem:[%s22 + $0x8] sm:$0xf]
      %v4144 = vld [vmem:[%s22 + $0xc] sm:$0xf]
      %v4145 = vld [vmem:[%s23] sm:$0x1]
      %v4147 = vlaneseq
      %v4148 = vshrl.u32 %v4147, 7
      %v4149 = vsub.s32 0, %v4148
      %v4150 = vrot.slane %v4145, %v4149
      %v4156 = vunpack.c.l.b16 %v4141
      %v4157 = vunpack.c.l.b16 %v4142
      %v4158 = vunpack.c.l.b16 %v4143
      %v4159 = vunpack.c.l.b16 %v4144
      %v4160 = vpack.c.b16 %v4157, %v4156
      %v4161 = vpack.c.b16 %v4159, %v4158
      %v4165 = vsel %vm932, %v4140, 0
      %4167 = vmatprep.subr.bf16.mxu0 0
      %4168 = vmatpush1.bf16.msra.mxu0 0
      %4169 = vmatprep.subr.bf16.mxu0 0
      %4170 = vmatpush1.bf16.msra.mxu0 0
      %4171 = vmatprep.subr.bf16.mxu0 0
      %4172 = vmatpush1.bf16.msra.mxu0 0
      %4173 = vmatprep.subr.bf16.mxu0 0
      %4174 = vmatpush1.bf16.msra.mxu0 0
      %4175 = vmatprep.subr.bf16.mxu0 0
      %4176 = vmatpush1.bf16.msra.mxu0 0
      %4177 = vmatprep.subr.bf16.mxu0 0
      %4178 = vmatpush1.bf16.msra.mxu0 0
      %4179 = vmatprep.subr.bf16.mxu0 0
      %4180 = vmatpush1.bf16.msra.mxu0 %v4161
      %4181 = vmatprep.subr.bf16.mxu0 0
      %4182 = vmatpush1.bf16.msra.mxu0 %v4160
      %4183 = vmatprep.subr.bf16.mxu0 0
      %4184 = vmatpush2.bf16.msra.mxu0 0
      %4185 = vmatprep.subr.bf16.mxu0 0
      %4186 = vmatpush2.bf16.msra.mxu0 0
      %4187 = vmatprep.subr.bf16.mxu0 0
      %4188 = vmatpush2.bf16.msra.mxu0 0
      %4189 = vmatprep.subr.bf16.mxu0 0
      %4190 = vmatpush2.bf16.msra.mxu0 0
      %4191 = vmatprep.subr.bf16.mxu0 0
      %4192 = vmatpush2.bf16.msra.mxu0 0
      %4193 = vmatprep.subr.bf16.mxu0 0
      %4194 = vmatpush2.bf16.msra.mxu0 0
      %4195 = vmatprep.subr.bf16.mxu0 0
      %4196 = vmatpush2.bf16.msra.mxu0 0
      %4197 = vmatprep.subr.bf16.mxu0 0
      %4198 = vmatpush2.bf16.msra.mxu0 0
      %4199 = vmatprep.mubr.bf16.mxu0 0
      %4200 = vmatmul.mubr.bf16.gmra.mxu0 %v4165
      %v4201 = vpop.f32.mrf.mxu0
      %v4202 = vadd.f32 %v4150, %v4201
      %v4203 = vpop.f32.mrf.mxu0
      %v4204 = vpop.f32.mrf.mxu0
      %v4205 = vpop.f32.mrf.mxu0
      %4206 = vdwg.mxu0
      %v4207 = vmax.f32 %v4202, 0.0
      %v4208 = vpack.c.bf16 %v4207, %v4207
      %v4209 = vld [vmem:[%s24] sm:$0xf]
      %v4210 = vld [vmem:[%s24 + $0x4] sm:$0xf]
      %v4211 = vld [vmem:[%s24 + $0x8] sm:$0xf]
      %v4212 = vld [vmem:[%s24 + $0xc] sm:$0xf]
      %v4213 = vld [vmem:[%s24 + $0x10] sm:$0xf]
      %v4214 = vld [vmem:[%s24 + $0x14] sm:$0xf]
      %v4215 = vld [vmem:[%s24 + $0x18] sm:$0xf]
      %v4216 = vld [vmem:[%s24 + $0x1c] sm:$0xf]
      %v4217 = vld [vmem:[%s25] sm:$0x1]
      %v4219 = vlaneseq
      %v4220 = vshrl.u32 %v4219, 7
      %v4221 = vsub.s32 0, %v4220
      %v4222 = vrot.slane %v4217, %v4221
      %v4232 = vunpack.c.l.b16 %v4209
      %v4233 = vunpack.c.l.b16 %v4210
      %v4234 = vunpack.c.l.b16 %v4211
      %v4235 = vunpack.c.l.b16 %v4212
      %v4236 = vunpack.c.l.b16 %v4213
      %v4237 = vunpack.c.l.b16 %v4214
      %v4238 = vunpack.c.l.b16 %v4215
      %v4239 = vunpack.c.l.b16 %v4216
      %v4240 = vpack.c.b16 %v4233, %v4232
      %v4241 = vpack.c.b16 %v4235, %v4234
      %v4242 = vpack.c.b16 %v4237, %v4236
      %v4243 = vpack.c.b16 %v4239, %v4238
      %vm4248 = vcmask 523264
      %v4250 = vsel %vm4248, %v4208, 0
      %4252 = vmatprep.subr.bf16.mxu0 0
      %4253 = vmatpush1.bf16.msra.mxu0 0
      %4254 = vmatprep.subr.bf16.mxu0 0
      %4255 = vmatpush1.bf16.msra.mxu0 0
      %4256 = vmatprep.subr.bf16.mxu0 0
      %4257 = vmatpush1.bf16.msra.mxu0 0
      %4258 = vmatprep.subr.bf16.mxu0 0
      %4259 = vmatpush1.bf16.msra.mxu0 0
      %4260 = vmatprep.subr.bf16.mxu0 0
      %4261 = vmatpush1.bf16.msra.mxu0 %v4243
      %4262 = vmatprep.subr.bf16.mxu0 0
      %4263 = vmatpush1.bf16.msra.mxu0 %v4242
      %4264 = vmatprep.subr.bf16.mxu0 0
      %4265 = vmatpush1.bf16.msra.mxu0 %v4241
      %4266 = vmatprep.subr.bf16.mxu0 0
      %4267 = vmatpush1.bf16.msra.mxu0 %v4240
      %4268 = vmatprep.subr.bf16.mxu0 0
      %4269 = vmatpush2.bf16.msra.mxu0 0
      %4270 = vmatprep.subr.bf16.mxu0 0
      %4271 = vmatpush2.bf16.msra.mxu0 0
      %4272 = vmatprep.subr.bf16.mxu0 0
      %4273 = vmatpush2.bf16.msra.mxu0 0
      %4274 = vmatprep.subr.bf16.mxu0 0
      %4275 = vmatpush2.bf16.msra.mxu0 0
      %4276 = vmatprep.subr.bf16.mxu0 0
      %4277 = vmatpush2.bf16.msra.mxu0 0
      %4278 = vmatprep.subr.bf16.mxu0 0
      %4279 = vmatpush2.bf16.msra.mxu0 0
      %4280 = vmatprep.subr.bf16.mxu0 0
      %4281 = vmatpush2.bf16.msra.mxu0 0
      %4282 = vmatprep.subr.bf16.mxu0 0
      %4283 = vmatpush2.bf16.msra.mxu0 0
      %4284 = vmatprep.mubr.bf16.mxu0 0
      %4285 = vmatmul.mubr.bf16.gmra.mxu0 %v4250
      %v4286 = vpop.f32.mrf.mxu0
      %v4287 = vadd.f32 %v4222, %v4286
      %v4288 = vpop.f32.mrf.mxu0
      %v4289 = vpop.f32.mrf.mxu0
      %v4290 = vpop.f32.mrf.mxu0
      %4291 = vdwg.mxu0
      %v4292 = vadd.f32 %v4139, %v4287
      %v4293 = vld [vmem:[%s26] sm:$0x1]
      %v4294 = vld [vmem:[%s27] sm:$0x1]
      %v4295 = vsel %vm932, %v4292, 0.0
      %4296 = vadd.xlane.f32.xlu0 %v4295
      %v4297 = vpop.xlane.xlu0 %4296
      %v4298 = vmul.f32 %v4297, %v2150
      %v4299 = vsub.f32 %v4292, %v4298
      %v4300 = vmul.f32 %v4299, %v4299
      %v4301 = vsel %vm932, %v4300, 0.0
      %4302 = vadd.xlane.f32.xlu0 %v4301
      %v4303 = vpop.xlane.xlu0 %4302
      %v4304 = vmul.f32 %v4303, %v2150
      %v4305 = vadd.f32 %v4304, 1e-05
      %v4306 = vrsqrt.pop %v4305
      %v4307 = vmul.f32 %v4299, %v4306
      %v4309 = vlaneseq
      %v4310 = vshrl.u32 %v4309, 7
      %v4311 = vsub.s32 0, %v4310
      %v4312 = vrot.slane %v4293, %v4311
      %v4314 = vmul.f32 %v4307, %v4312
      %v4316 = vlaneseq
      %v4317 = vshrl.u32 %v4316, 7
      %v4318 = vsub.s32 0, %v4317
      %v4319 = vrot.slane %v4294, %v4318
      %v4321 = vadd.f32 %v4314, %v4319
      %4322 = vst.msk [vmem:[%s897] sm:$0xff] %vm932, %v4321
      %p4323 = scmp.lt.s32.totalorder %s39, 1
      %s4324 = scalar_select %p4323, %s39, 1
      %s4325 = smul.addr %s4324, 8
      %s4326 = scalar_lea.vmem %s28, %s4325
      // Predicated region
      $region133: #{transformer_decoder_layer_forward.1} parent=131 // pred_check
        %p4327 = pneg %p665
      $region134: #{transformer_decoder_layer_forward.1} parent=131 // pred_check_branch
        %4329 = sbr.rel (%p4327) target = $region136
      $region135: #{transformer_decoder_layer_forward.1} parent=131 // pred_region
        _
      $region136: #{transformer_decoder_layer_forward.1} parent=131 // pred_fallthru
        _
    $region132: #{transformer_decoder_layer_forward.1} parent=5 // pred_fallthru
      _
    %p4330 = scmp.le.s32.totalorder 2, %s34
    // Predicated region
    $region137: #{transformer_decoder_layer_forward.1} parent=5 // pred_check
      %p4331 = pneg %p4330
    $region138: #{transformer_decoder_layer_forward.1} parent=5 // pred_check_branch
      %4333 = sbr.rel (%p4331) target = $region140
    $region139: #{transformer_decoder_layer_forward.1} parent=5 // pred_region
      %s4334 = ssub.s32 %s34, 2
      // Predicated region
      $region141: #{transformer_decoder_layer_forward.1} parent=139 // pred_check
        %p4335 = pneg %p671
      $region142: #{transformer_decoder_layer_forward.1} parent=139 // pred_check_branch
        %4337 = sbr.rel (%p4335) target = $region144
      $region143: #{transformer_decoder_layer_forward.1} parent=139 // pred_region
        %p4338 = scmp.lt.s32.totalorder %s40, 1
        %s4339 = scalar_select %p4338, %s40, 1
        %s4340 = smul.addr %s4339, 8
        %s4341 = scalar_lea.vmem %s28, %s4340
      $region144: #{transformer_decoder_layer_forward.1} parent=139 // pred_fallthru
        _
    $region140: #{transformer_decoder_layer_forward.1} parent=5 // pred_fallthru
      _
  $region6: #{transformer_decoder_layer_forward.1} parent=0 // loop_footer
    %s38 = sadd.s32 1, %s34
  $region7: #{transformer_decoder_layer_forward.1} parent=0 // loop_footer_branch
    %33 = sbr.rel target = $region3
  $region8: #{transformer_decoder_layer_forward.1} parent=0 // loop_exit
    _

</llo_original>
